<compile_context>
chip_gen: v7x
topology: tpu7x:2x2x1
jax: 0.10.0
libtpu: 0.0.40
codegen_flags: <defaults>
</compile_context>

<pallas_src>
import numpy as np
import jax
import jax.numpy as jnp
from jax.experimental import pallas as pl
from jax.experimental.pallas import tpu as pltpu

HID_GRU = 64   # GRU hidden size
SEQ_T = 24     # Linear(72, ...) on inputs[:, :, -3:].reshape(B, -1) forces T * 3 == 72


def _sigmoid_ref(v):
    return 1.0 / (1.0 + jnp.exp(-v))


def critic_kernel(
    # data
    seqflat_ref, mlpin_ref, xu_ref,
    # pre-GRU per-timestep MLP (Linear->Tanh->Linear->Tanh)
    w1_ref, b1_ref, w2_ref, b2_ref,
    # fused GRU weights: [W_ir|W_iz|W_in] (128,192), folded input biases (1,192),
    # [W_hr|W_hz|W_hn] (64,192), b_hn (1,64)
    wi_ref, bi_ref, wh_ref, bhn_ref,
    # MLP branch (72 -> 128 -> 128 -> 64, Tanh after each)
    m1_ref, mb1_ref, m2_ref, mb2_ref, m3_ref, mb3_ref,
    # output head: first Linear split as [h|m] block (128,256) and [x|u] block (S+A,256)
    o1hm_ref, o1xu_ref, ob1_ref,
    o2_ref, ob2_ref, o3_ref, ob3_ref,
    # output
    out_ref,
):
    f32 = jnp.float32
    B = mlpin_ref.shape[0]
    TB = seqflat_ref.shape[0]
    T = TB // B
    H = HID_GRU

    def dot(a, b):
        return jnp.dot(a, b, preferred_element_type=f32)

    def sigmoid(v):
        # exact identity; tanh is a single EUP op (no exp + divide on the recurrent path)
        return 0.5 * (jnp.tanh(0.5 * v) + 1.0)

    # ---- pre-GRU per-timestep MLP, hoisted out of the recurrence: all T*B rows at once ----
    a = jnp.tanh(dot(seqflat_ref[...], w1_ref[...]) + b1_ref[...])      # (T*B, 128)
    a = jnp.tanh(dot(a, w2_ref[...]) + b2_ref[...])                     # (T*B, 128)

    # ---- input-side GRU gate projections for all timesteps in one matmul (biases folded) ----
    gi = dot(a, wi_ref[...]) + bi_ref[...]                              # (T*B, 192)

    wh = wh_ref[...]                                                    # (64, 192)
    bhn = jnp.broadcast_to(bhn_ref[...], (B, H))                        # hoisted broadcast

    # ---- GRU recurrence: one fused (B,64)@(64,192) matmul per step, fully unrolled ----
    h = jnp.zeros((B, H), f32)
    for t in range(T):                                                  # T is static -> full unroll
        git = gi[t * B:(t + 1) * B, :]                                  # static slice, (B, 192)
        g = dot(h, wh)                                                  # (B, 192)
        r = sigmoid(git[:, 0:H] + g[:, 0:H])
        z = sigmoid(git[:, H:2 * H] + g[:, H:2 * H])
        n = jnp.tanh(git[:, 2 * H:3 * H] + r * (g[:, 2 * H:3 * H] + bhn))
        h = (1.0 - z) * n + z * h
    # h == predictions[:, -1]

    # ---- MLP branch on inputs[:, :, -3:].reshape(B, -1) ----
    m = jnp.tanh(dot(mlpin_ref[...], m1_ref[...]) + mb1_ref[...])
    m = jnp.tanh(dot(m, m2_ref[...]) + mb2_ref[...])
    m = jnp.tanh(dot(m, m3_ref[...]) + mb3_ref[...])                    # (B, 64)

    # ---- output head ----
    # tanh is elementwise, so tanh(concat([h, m, x, u])) @ O1 splits across segments.
    hm = jnp.concatenate([jnp.tanh(h), jnp.tanh(m)], axis=-1)           # (B, 128)
    y = dot(hm, o1hm_ref[...]) + ob1_ref[...]                           # single K=128 matmul
    txu = jnp.tanh(xu_ref[...])                                         # (B, S+A)
    o1xu = o1xu_ref[...]                                                # (S+A, 256)
    for k in range(txu.shape[-1]):                                      # tiny K handled on the VPU
        y = y + txu[:, k:k + 1] * o1xu[k:k + 1, :]
    y = jnp.tanh(y)
    y = jnp.tanh(dot(y, o2_ref[...]) + ob2_ref[...])                    # (B, 128)
    # final Linear(128, 1) as a lane reduction (avoid an N=1 MXU matmul + masked store)
    out_ref[...] = jnp.sum(y * o3_ref[...], axis=-1, keepdims=True) + ob3_ref[...]


def pack_params(params):
    """Fuse/repack PyTorch-style per-gate parameters into the kernel layout."""
    (w1, b1, w2, b2,
     wir, wiz, win, whr, whz, whn,
     bir, biz, binn, bhr, bhz, bhn,
     m1, mb1, m2, mb2, m3, mb3,
     o1h, o1m, o1x, o1u, ob1, o2, ob2, o3, ob3) = params
    wi_all = jnp.concatenate([wir, wiz, win], axis=1)                   # (128, 192)
    bi_all = jnp.concatenate([bir + bhr, biz + bhz, binn], axis=1)      # (1, 192)  folded biases
    wh_all = jnp.concatenate([whr, whz, whn], axis=1)                   # (64, 192)
    o1hm = jnp.concatenate([o1h, o1m], axis=0)                          # (128, 256)
    o1xu = jnp.concatenate([o1x, o1u], axis=0)                          # (S+A, 256)
    o3row = jnp.transpose(o3)                                           # (1, 128)
    return (w1, b1, w2, b2, wi_all, bi_all, wh_all, bhn,
            m1, mb1, m2, mb2, m3, mb3,
            o1hm, o1xu, ob1, o2, ob2, o3row, ob3)


def critic_forward(inputs, x, u, params):
    """inputs: (B, T, D_in), x: (B, S), u: (B, A); returns (B, 1)."""
    B, T, D = inputs.shape
    assert T == SEQ_T, "PyTorch module hard-codes Linear(72, ...) => seq length must be 24"
    seq_flat = jnp.transpose(inputs, (1, 0, 2)).reshape(T * B, D)       # glue: time-major, flattened
    mlp_in = inputs[:, :, -3:].reshape(B, T * 3)                        # glue: (B, 72)
    xu = jnp.concatenate([x, u], axis=1)                                # glue: (B, S+A)
    args = (seq_flat, mlp_in, xu) + tuple(pack_params(params))
    vmem = pl.BlockSpec(memory_space=pltpu.MemorySpace.VMEM)
    return pl.pallas_call(
        critic_kernel,
        out_shape=jax.ShapeDtypeStruct((B, 1), jnp.float32),
        in_specs=[vmem] * len(args),
        out_specs=vmem,
    )(*args)


def init_params(key, input_size, state_size, action_size):
    # TODO(synk): `network_initializer` is not defined in the provided source; use a
    # deterministic uniform(-1/sqrt(fan_in), 1/sqrt(fan_in)) init instead.
    keys = iter(jax.random.split(key, 64))

    def lin(fi, fo):
        lim = 1.0 / float(np.sqrt(fi))
        w = jax.random.uniform(next(keys), (fi, fo), jnp.float32, -lim, lim)
        b = jax.random.uniform(next(keys), (1, fo), jnp.float32, -lim, lim)
        return w, b

    w1, b1 = lin(input_size, 128)
    w2, b2 = lin(128, 128)
    wir, bir = lin(128, HID_GRU)
    wiz, biz = lin(128, HID_GRU)
    win, binn = lin(128, HID_GRU)
    whr, bhr = lin(HID_GRU, HID_GRU)
    whz, bhz = lin(HID_GRU, HID_GRU)
    whn, bhn = lin(HID_GRU, HID_GRU)
    m1, mb1 = lin(72, 128)
    m2, mb2 = lin(128, 128)
    m3, mb3 = lin(128, 64)
    cat_dim = 128 + state_size + action_size
    o1, ob1 = lin(cat_dim, 256)
    o1h, o1m = o1[:64], o1[64:128]
    o1x, o1u = o1[128:128 + state_size], o1[128 + state_size:]
    o2, ob2 = lin(256, 128)
    o3, ob3 = lin(128, 1)
    return (w1, b1, w2, b2,
            wir, wiz, win, whr, whz, whn,
            bir, biz, binn, bhr, bhz, bhn,
            m1, mb1, m2, mb2, m3, mb3,
            o1h, o1m, o1x, o1u, ob1, o2, ob2, o3, ob3)


def critic_reference(inputs, x, u, params):
    """Pure-JAX reference (mirrors torch semantics) for validation."""
    (w1, b1, w2, b2,
     wir, wiz, win, whr, whz, whn,
     bir, biz, binn, bhr, bhz, bhn,
     m1, mb1, m2, mb2, m3, mb3,
     o1h, o1m, o1x, o1u, ob1, o2, ob2, o3, ob3) = params
    B, T, _ = inputs.shape
    a = jnp.tanh(inputs @ w1 + b1)
    a = jnp.tanh(a @ w2 + b2)                              # (B, T, 128)
    h = jnp.zeros((B, HID_GRU), jnp.float32)
    for t in range(T):
        xt = a[:, t]
        r = _sigmoid_ref(xt @ wir + bir + h @ whr + bhr)
        z = _sigmoid_ref(xt @ wiz + biz + h @ whz + bhz)
        n = jnp.tanh(xt @ win + binn + r * (h @ whn + bhn))
        h = (1.0 - z) * n + z * h
    m = jnp.tanh(inputs[:, :, -3:].reshape(B, -1) @ m1 + mb1)
    m = jnp.tanh(m @ m2 + mb2)
    m = jnp.tanh(m @ m3 + mb3)
    cat = jnp.concatenate([h, m, x, u], axis=1)
    o1 = jnp.concatenate([o1h, o1m, o1x, o1u], axis=0)
    y = jnp.tanh(cat)
    y = jnp.tanh(y @ o1 + ob1)
    y = jnp.tanh(y @ o2 + ob2)
    return y @ o3 + ob3


if __name__ == "__main__":
    B, T, D_IN, STATE, ACTION = 2, SEQ_T, 8, 4, 2
    key = jax.random.PRNGKey(0)
    k1, k2, k3, kp = jax.random.split(key, 4)
    inputs = jax.random.normal(k1, (B, T, D_IN), jnp.float32)
    x_state = jax.random.normal(k2, (B, STATE), jnp.float32)
    u_action = jax.random.normal(k3, (B, ACTION), jnp.float32)
    params = init_params(kp, D_IN, STATE, ACTION)

    out = critic_forward(inputs, x_state, u_action, params)
    out = jax.block_until_ready(out)
    assert out.shape == (B, 1) and out.dtype == jnp.float32

    ref = critic_reference(inputs, x_state, u_action, params)
    np.testing.assert_allclose(np.asarray(out), np.asarray(ref), rtol=2e-3, atol=2e-3)

    print("KERNEL_OK")
</pallas_src>

<mosaic_0001>
module attributes {stable_mosaic.version = 11 : i64} {
  func.func @critic_kernel(%arg0: memref<48x8xf32, #tpu.memory_space<vmem>>, %arg1: memref<2x72xf32, #tpu.memory_space<vmem>>, %arg2: memref<2x6xf32, #tpu.memory_space<vmem>>, %arg3: memref<8x128xf32, #tpu.memory_space<vmem>>, %arg4: memref<1x128xf32, #tpu.memory_space<vmem>>, %arg5: memref<128x128xf32, #tpu.memory_space<vmem>>, %arg6: memref<1x128xf32, #tpu.memory_space<vmem>>, %arg7: memref<128x192xf32, #tpu.memory_space<vmem>>, %arg8: memref<1x192xf32, #tpu.memory_space<vmem>>, %arg9: memref<64x192xf32, #tpu.memory_space<vmem>>, %arg10: memref<1x64xf32, #tpu.memory_space<vmem>>, %arg11: memref<72x128xf32, #tpu.memory_space<vmem>>, %arg12: memref<1x128xf32, #tpu.memory_space<vmem>>, %arg13: memref<128x128xf32, #tpu.memory_space<vmem>>, %arg14: memref<1x128xf32, #tpu.memory_space<vmem>>, %arg15: memref<128x64xf32, #tpu.memory_space<vmem>>, %arg16: memref<1x64xf32, #tpu.memory_space<vmem>>, %arg17: memref<128x256xf32, #tpu.memory_space<vmem>>, %arg18: memref<6x256xf32, #tpu.memory_space<vmem>>, %arg19: memref<1x256xf32, #tpu.memory_space<vmem>>, %arg20: memref<256x128xf32, #tpu.memory_space<vmem>>, %arg21: memref<1x128xf32, #tpu.memory_space<vmem>>, %arg22: memref<1x128xf32, #tpu.memory_space<vmem>>, %arg23: memref<1x1xf32, #tpu.memory_space<vmem>>, %arg24: memref<2x1xf32, #tpu.memory_space<vmem>>) attributes {dimension_semantics = [], scalar_prefetch = 0 : i64, scratch_operands = 0 : i64, tpu.core_type = #tpu.core_type<tc>} {
    %c0 = arith.constant 0 : index
    %c0_0 = arith.constant 0 : index
    %0 = vector.load %arg0[%c0, %c0_0] : memref<48x8xf32, #tpu.memory_space<vmem>>, vector<48x8xf32>
    %c0_1 = arith.constant 0 : index
    %c0_2 = arith.constant 0 : index
    %1 = vector.load %arg3[%c0_1, %c0_2] : memref<8x128xf32, #tpu.memory_space<vmem>>, vector<8x128xf32>
    %cst = arith.constant dense<0.000000e+00> : vector<48x128xf32>
    %2 = tpu.matmul %0, %1, %cst {dimension_numbers = #tpu.dot_dimension_numbers<[1], [0], [0], [1], [0, 0, 1, 1], [], []>} : vector<48x8xf32>, vector<8x128xf32>, vector<48x128xf32> -> vector<48x128xf32>
    %c0_3 = arith.constant 0 : index
    %c0_4 = arith.constant 0 : index
    %3 = vector.load %arg4[%c0_3, %c0_4] : memref<1x128xf32, #tpu.memory_space<vmem>>, vector<1x128xf32>
    %4 = vector.broadcast %3 : vector<1x128xf32> to vector<48x128xf32>
    %5 = arith.addf %2, %4 : vector<48x128xf32>
    %6 = math.tanh %5 : vector<48x128xf32>
    %c0_5 = arith.constant 0 : index
    %c0_6 = arith.constant 0 : index
    %7 = vector.load %arg5[%c0_5, %c0_6] : memref<128x128xf32, #tpu.memory_space<vmem>>, vector<128x128xf32>
    %cst_7 = arith.constant dense<0.000000e+00> : vector<48x128xf32>
    %8 = tpu.matmul %6, %7, %cst_7 {dimension_numbers = #tpu.dot_dimension_numbers<[1], [0], [0], [1], [0, 0, 1, 1], [], []>} : vector<48x128xf32>, vector<128x128xf32>, vector<48x128xf32> -> vector<48x128xf32>
    %c0_8 = arith.constant 0 : index
    %c0_9 = arith.constant 0 : index
    %9 = vector.load %arg6[%c0_8, %c0_9] : memref<1x128xf32, #tpu.memory_space<vmem>>, vector<1x128xf32>
    %10 = vector.broadcast %9 : vector<1x128xf32> to vector<48x128xf32>
    %11 = arith.addf %8, %10 : vector<48x128xf32>
    %12 = math.tanh %11 : vector<48x128xf32>
    %c0_10 = arith.constant 0 : index
    %c0_11 = arith.constant 0 : index
    %13 = vector.load %arg7[%c0_10, %c0_11] : memref<128x192xf32, #tpu.memory_space<vmem>>, vector<128x192xf32>
    %cst_12 = arith.constant dense<0.000000e+00> : vector<48x192xf32>
    %14 = tpu.matmul %12, %13, %cst_12 {dimension_numbers = #tpu.dot_dimension_numbers<[1], [0], [0], [1], [0, 0, 1, 1], [], []>} : vector<48x128xf32>, vector<128x192xf32>, vector<48x192xf32> -> vector<48x192xf32>
    %c0_13 = arith.constant 0 : index
    %c0_14 = arith.constant 0 : index
    %15 = vector.load %arg8[%c0_13, %c0_14] : memref<1x192xf32, #tpu.memory_space<vmem>>, vector<1x192xf32>
    %16 = vector.broadcast %15 : vector<1x192xf32> to vector<48x192xf32>
    %17 = arith.addf %14, %16 : vector<48x192xf32>
    %c0_15 = arith.constant 0 : index
    %c0_16 = arith.constant 0 : index
    %18 = vector.load %arg9[%c0_15, %c0_16] : memref<64x192xf32, #tpu.memory_space<vmem>>, vector<64x192xf32>
    %c0_17 = arith.constant 0 : index
    %c0_18 = arith.constant 0 : index
    %19 = vector.load %arg10[%c0_17, %c0_18] : memref<1x64xf32, #tpu.memory_space<vmem>>, vector<1x64xf32>
    %20 = vector.shape_cast %19 : vector<1x64xf32> to vector<1x64xf32>
    %21 = vector.broadcast %20 : vector<1x64xf32> to vector<2x64xf32>
    %cst_19 = arith.constant 0.000000e+00 : f32
    %22 = vector.broadcast %cst_19 : f32 to vector<2x64xf32>
    %23 = vector.extract_strided_slice %17 {offsets = [0, 0], sizes = [2, 192], strides = [1, 1]} : vector<48x192xf32> to vector<2x192xf32>
    %cst_20 = arith.constant dense<0.000000e+00> : vector<2x192xf32>
    %24 = tpu.matmul %22, %18, %cst_20 {dimension_numbers = #tpu.dot_dimension_numbers<[1], [0], [0], [1], [0, 0, 1, 1], [], []>} : vector<2x64xf32>, vector<64x192xf32>, vector<2x192xf32> -> vector<2x192xf32>
    %25 = vector.extract_strided_slice %23 {offsets = [0, 0], sizes = [2, 64], strides = [1, 1]} : vector<2x192xf32> to vector<2x64xf32>
    %26 = vector.extract_strided_slice %24 {offsets = [0, 0], sizes = [2, 64], strides = [1, 1]} : vector<2x192xf32> to vector<2x64xf32>
    %27 = arith.addf %25, %26 : vector<2x64xf32>
    %cst_21 = arith.constant 5.000000e-01 : f32
    %28 = vector.broadcast %cst_21 : f32 to vector<2x64xf32>
    %29 = arith.mulf %28, %27 : vector<2x64xf32>
    %30 = math.tanh %29 : vector<2x64xf32>
    %cst_22 = arith.constant 1.000000e+00 : f32
    %31 = vector.broadcast %cst_22 : f32 to vector<2x64xf32>
    %32 = arith.addf %30, %31 : vector<2x64xf32>
    %cst_23 = arith.constant 5.000000e-01 : f32
    %33 = vector.broadcast %cst_23 : f32 to vector<2x64xf32>
    %34 = arith.mulf %33, %32 : vector<2x64xf32>
    %35 = vector.extract_strided_slice %23 {offsets = [0, 64], sizes = [2, 64], strides = [1, 1]} : vector<2x192xf32> to vector<2x64xf32>
    %36 = vector.extract_strided_slice %24 {offsets = [0, 64], sizes = [2, 64], strides = [1, 1]} : vector<2x192xf32> to vector<2x64xf32>
    %37 = arith.addf %35, %36 : vector<2x64xf32>
    %cst_24 = arith.constant 5.000000e-01 : f32
    %38 = vector.broadcast %cst_24 : f32 to vector<2x64xf32>
    %39 = arith.mulf %38, %37 : vector<2x64xf32>
    %40 = math.tanh %39 : vector<2x64xf32>
    %cst_25 = arith.constant 1.000000e+00 : f32
    %41 = vector.broadcast %cst_25 : f32 to vector<2x64xf32>
    %42 = arith.addf %40, %41 : vector<2x64xf32>
    %cst_26 = arith.constant 5.000000e-01 : f32
    %43 = vector.broadcast %cst_26 : f32 to vector<2x64xf32>
    %44 = arith.mulf %43, %42 : vector<2x64xf32>
    %45 = vector.extract_strided_slice %23 {offsets = [0, 128], sizes = [2, 64], strides = [1, 1]} : vector<2x192xf32> to vector<2x64xf32>
    %46 = vector.extract_strided_slice %24 {offsets = [0, 128], sizes = [2, 64], strides = [1, 1]} : vector<2x192xf32> to vector<2x64xf32>
    %47 = arith.addf %46, %21 : vector<2x64xf32>
    %48 = arith.mulf %34, %47 : vector<2x64xf32>
    %49 = arith.addf %45, %48 : vector<2x64xf32>
    %50 = math.tanh %49 : vector<2x64xf32>
    %cst_27 = arith.constant 1.000000e+00 : f32
    %51 = vector.broadcast %cst_27 : f32 to vector<2x64xf32>
    %52 = arith.subf %51, %44 : vector<2x64xf32>
    %53 = arith.mulf %52, %50 : vector<2x64xf32>
    %54 = arith.mulf %44, %22 : vector<2x64xf32>
    %55 = arith.addf %53, %54 : vector<2x64xf32>
    %56 = vector.extract_strided_slice %17 {offsets = [2, 0], sizes = [2, 192], strides = [1, 1]} : vector<48x192xf32> to vector<2x192xf32>
    %cst_28 = arith.constant dense<0.000000e+00> : vector<2x192xf32>
    %57 = tpu.matmul %55, %18, %cst_28 {dimension_numbers = #tpu.dot_dimension_numbers<[1], [0], [0], [1], [0, 0, 1, 1], [], []>} : vector<2x64xf32>, vector<64x192xf32>, vector<2x192xf32> -> vector<2x192xf32>
    %58 = vector.extract_strided_slice %56 {offsets = [0, 0], sizes = [2, 64], strides = [1, 1]} : vector<2x192xf32> to vector<2x64xf32>
    %59 = vector.extract_strided_slice %57 {offsets = [0, 0], sizes = [2, 64], strides = [1, 1]} : vector<2x192xf32> to vector<2x64xf32>
    %60 = arith.addf %58, %59 : vector<2x64xf32>
    %cst_29 = arith.constant 5.000000e-01 : f32
    %61 = vector.broadcast %cst_29 : f32 to vector<2x64xf32>
    %62 = arith.mulf %61, %60 : vector<2x64xf32>
    %63 = math.tanh %62 : vector<2x64xf32>
    %cst_30 = arith.constant 1.000000e+00 : f32
    %64 = vector.broadcast %cst_30 : f32 to vector<2x64xf32>
    %65 = arith.addf %63, %64 : vector<2x64xf32>
    %cst_31 = arith.constant 5.000000e-01 : f32
    %66 = vector.broadcast %cst_31 : f32 to vector<2x64xf32>
    %67 = arith.mulf %66, %65 : vector<2x64xf32>
    %68 = vector.extract_strided_slice %56 {offsets = [0, 64], sizes = [2, 64], strides = [1, 1]} : vector<2x192xf32> to vector<2x64xf32>
    %69 = vector.extract_strided_slice %57 {offsets = [0, 64], sizes = [2, 64], strides = [1, 1]} : vector<2x192xf32> to vector<2x64xf32>
    %70 = arith.addf %68, %69 : vector<2x64xf32>
    %cst_32 = arith.constant 5.000000e-01 : f32
    %71 = vector.broadcast %cst_32 : f32 to vector<2x64xf32>
    %72 = arith.mulf %71, %70 : vector<2x64xf32>
    %73 = math.tanh %72 : vector<2x64xf32>
    %cst_33 = arith.constant 1.000000e+00 : f32
    %74 = vector.broadcast %cst_33 : f32 to vector<2x64xf32>
    %75 = arith.addf %73, %74 : vector<2x64xf32>
    %cst_34 = arith.constant 5.000000e-01 : f32
    %76 = vector.broadcast %cst_34 : f32 to vector<2x64xf32>
    %77 = arith.mulf %76, %75 : vector<2x64xf32>
    %78 = vector.extract_strided_slice %56 {offsets = [0, 128], sizes = [2, 64], strides = [1, 1]} : vector<2x192xf32> to vector<2x64xf32>
    %79 = vector.extract_strided_slice %57 {offsets = [0, 128], sizes = [2, 64], strides = [1, 1]} : vector<2x192xf32> to vector<2x64xf32>
    %80 = arith.addf %79, %21 : vector<2x64xf32>
    %81 = arith.mulf %67, %80 : vector<2x64xf32>
    %82 = arith.addf %78, %81 : vector<2x64xf32>
    %83 = math.tanh %82 : vector<2x64xf32>
    %cst_35 = arith.constant 1.000000e+00 : f32
    %84 = vector.broadcast %cst_35 : f32 to vector<2x64xf32>
    %85 = arith.subf %84, %77 : vector<2x64xf32>
    %86 = arith.mulf %85, %83 : vector<2x64xf32>
    %87 = arith.mulf %77, %55 : vector<2x64xf32>
    %88 = arith.addf %86, %87 : vector<2x64xf32>
    %89 = vector.extract_strided_slice %17 {offsets = [4, 0], sizes = [2, 192], strides = [1, 1]} : vector<48x192xf32> to vector<2x192xf32>
    %cst_36 = arith.constant dense<0.000000e+00> : vector<2x192xf32>
    %90 = tpu.matmul %88, %18, %cst_36 {dimension_numbers = #tpu.dot_dimension_numbers<[1], [0], [0], [1], [0, 0, 1, 1], [], []>} : vector<2x64xf32>, vector<64x192xf32>, vector<2x192xf32> -> vector<2x192xf32>
    %91 = vector.extract_strided_slice %89 {offsets = [0, 0], sizes = [2, 64], strides = [1, 1]} : vector<2x192xf32> to vector<2x64xf32>
    %92 = vector.extract_strided_slice %90 {offsets = [0, 0], sizes = [2, 64], strides = [1, 1]} : vector<2x192xf32> to vector<2x64xf32>
    %93 = arith.addf %91, %92 : vector<2x64xf32>
    %cst_37 = arith.constant 5.000000e-01 : f32
    %94 = vector.broadcast %cst_37 : f32 to vector<2x64xf32>
    %95 = arith.mulf %94, %93 : vector<2x64xf32>
    %96 = math.tanh %95 : vector<2x64xf32>
    %cst_38 = arith.constant 1.000000e+00 : f32
    %97 = vector.broadcast %cst_38 : f32 to vector<2x64xf32>
    %98 = arith.addf %96, %97 : vector<2x64xf32>
    %cst_39 = arith.constant 5.000000e-01 : f32
    %99 = vector.broadcast %cst_39 : f32 to vector<2x64xf32>
    %100 = arith.mulf %99, %98 : vector<2x64xf32>
    %101 = vector.extract_strided_slice %89 {offsets = [0, 64], sizes = [2, 64], strides = [1, 1]} : vector<2x192xf32> to vector<2x64xf32>
    %102 = vector.extract_strided_slice %90 {offsets = [0, 64], sizes = [2, 64], strides = [1, 1]} : vector<2x192xf32> to vector<2x64xf32>
    %103 = arith.addf %101, %102 : vector<2x64xf32>
    %cst_40 = arith.constant 5.000000e-01 : f32
    %104 = vector.broadcast %cst_40 : f32 to vector<2x64xf32>
    %105 = arith.mulf %104, %103 : vector<2x64xf32>
    %106 = math.tanh %105 : vector<2x64xf32>
    %cst_41 = arith.constant 1.000000e+00 : f32
    %107 = vector.broadcast %cst_41 : f32 to vector<2x64xf32>
    %108 = arith.addf %106, %107 : vector<2x64xf32>
    %cst_42 = arith.constant 5.000000e-01 : f32
    %109 = vector.broadcast %cst_42 : f32 to vector<2x64xf32>
    %110 = arith.mulf %109, %108 : vector<2x64xf32>
    %111 = vector.extract_strided_slice %89 {offsets = [0, 128], sizes = [2, 64], strides = [1, 1]} : vector<2x192xf32> to vector<2x64xf32>
    %112 = vector.extract_strided_slice %90 {offsets = [0, 128], sizes = [2, 64], strides = [1, 1]} : vector<2x192xf32> to vector<2x64xf32>
    %113 = arith.addf %112, %21 : vector<2x64xf32>
    %114 = arith.mulf %100, %113 : vector<2x64xf32>
    %115 = arith.addf %111, %114 : vector<2x64xf32>
    %116 = math.tanh %115 : vector<2x64xf32>
    %cst_43 = arith.constant 1.000000e+00 : f32
    %117 = vector.broadcast %cst_43 : f32 to vector<2x64xf32>
    %118 = arith.subf %117, %110 : vector<2x64xf32>
    %119 = arith.mulf %118, %116 : vector<2x64xf32>
    %120 = arith.mulf %110, %88 : vector<2x64xf32>
    %121 = arith.addf %119, %120 : vector<2x64xf32>
    %122 = vector.extract_strided_slice %17 {offsets = [6, 0], sizes = [2, 192], strides = [1, 1]} : vector<48x192xf32> to vector<2x192xf32>
    %cst_44 = arith.constant dense<0.000000e+00> : vector<2x192xf32>
    %123 = tpu.matmul %121, %18, %cst_44 {dimension_numbers = #tpu.dot_dimension_numbers<[1], [0], [0], [1], [0, 0, 1, 1], [], []>} : vector<2x64xf32>, vector<64x192xf32>, vector<2x192xf32> -> vector<2x192xf32>
    %124 = vector.extract_strided_slice %122 {offsets = [0, 0], sizes = [2, 64], strides = [1, 1]} : vector<2x192xf32> to vector<2x64xf32>
    %125 = vector.extract_strided_slice %123 {offsets = [0, 0], sizes = [2, 64], strides = [1, 1]} : vector<2x192xf32> to vector<2x64xf32>
    %126 = arith.addf %124, %125 : vector<2x64xf32>
    %cst_45 = arith.constant 5.000000e-01 : f32
    %127 = vector.broadcast %cst_45 : f32 to vector<2x64xf32>
    %128 = arith.mulf %127, %126 : vector<2x64xf32>
    %129 = math.tanh %128 : vector<2x64xf32>
    %cst_46 = arith.constant 1.000000e+00 : f32
    %130 = vector.broadcast %cst_46 : f32 to vector<2x64xf32>
    %131 = arith.addf %129, %130 : vector<2x64xf32>
    %cst_47 = arith.constant 5.000000e-01 : f32
    %132 = vector.broadcast %cst_47 : f32 to vector<2x64xf32>
    %133 = arith.mulf %132, %131 : vector<2x64xf32>
    %134 = vector.extract_strided_slice %122 {offsets = [0, 64], sizes = [2, 64], strides = [1, 1]} : vector<2x192xf32> to vector<2x64xf32>
    %135 = vector.extract_strided_slice %123 {offsets = [0, 64], sizes = [2, 64], strides = [1, 1]} : vector<2x192xf32> to vector<2x64xf32>
    %136 = arith.addf %134, %135 : vector<2x64xf32>
    %cst_48 = arith.constant 5.000000e-01 : f32
    %137 = vector.broadcast %cst_48 : f32 to vector<2x64xf32>
    %138 = arith.mulf %137, %136 : vector<2x64xf32>
    %139 = math.tanh %138 : vector<2x64xf32>
    %cst_49 = arith.constant 1.000000e+00 : f32
    %140 = vector.broadcast %cst_49 : f32 to vector<2x64xf32>
    %141 = arith.addf %139, %140 : vector<2x64xf32>
    %cst_50 = arith.constant 5.000000e-01 : f32
    %142 = vector.broadcast %cst_50 : f32 to vector<2x64xf32>
    %143 = arith.mulf %142, %141 : vector<2x64xf32>
    %144 = vector.extract_strided_slice %122 {offsets = [0, 128], sizes = [2, 64], strides = [1, 1]} : vector<2x192xf32> to vector<2x64xf32>
    %145 = vector.extract_strided_slice %123 {offsets = [0, 128], sizes = [2, 64], strides = [1, 1]} : vector<2x192xf32> to vector<2x64xf32>
    %146 = arith.addf %145, %21 : vector<2x64xf32>
    %147 = arith.mulf %133, %146 : vector<2x64xf32>
    %148 = arith.addf %144, %147 : vector<2x64xf32>
    %149 = math.tanh %148 : vector<2x64xf32>
    %cst_51 = arith.constant 1.000000e+00 : f32
    %150 = vector.broadcast %cst_51 : f32 to vector<2x64xf32>
    %151 = arith.subf %150, %143 : vector<2x64xf32>
    %152 = arith.mulf %151, %149 : vector<2x64xf32>
    %153 = arith.mulf %143, %121 : vector<2x64xf32>
    %154 = arith.addf %152, %153 : vector<2x64xf32>
    %155 = vector.extract_strided_slice %17 {offsets = [8, 0], sizes = [2, 192], strides = [1, 1]} : vector<48x192xf32> to vector<2x192xf32>
    %cst_52 = arith.constant dense<0.000000e+00> : vector<2x192xf32>
    %156 = tpu.matmul %154, %18, %cst_52 {dimension_numbers = #tpu.dot_dimension_numbers<[1], [0], [0], [1], [0, 0, 1, 1], [], []>} : vector<2x64xf32>, vector<64x192xf32>, vector<2x192xf32> -> vector<2x192xf32>
    %157 = vector.extract_strided_slice %155 {offsets = [0, 0], sizes = [2, 64], strides = [1, 1]} : vector<2x192xf32> to vector<2x64xf32>
    %158 = vector.extract_strided_slice %156 {offsets = [0, 0], sizes = [2, 64], strides = [1, 1]} : vector<2x192xf32> to vector<2x64xf32>
    %159 = arith.addf %157, %158 : vector<2x64xf32>
    %cst_53 = arith.constant 5.000000e-01 : f32
    %160 = vector.broadcast %cst_53 : f32 to vector<2x64xf32>
    %161 = arith.mulf %160, %159 : vector<2x64xf32>
    %162 = math.tanh %161 : vector<2x64xf32>
    %cst_54 = arith.constant 1.000000e+00 : f32
    %163 = vector.broadcast %cst_54 : f32 to vector<2x64xf32>
    %164 = arith.addf %162, %163 : vector<2x64xf32>
    %cst_55 = arith.constant 5.000000e-01 : f32
    %165 = vector.broadcast %cst_55 : f32 to vector<2x64xf32>
    %166 = arith.mulf %165, %164 : vector<2x64xf32>
    %167 = vector.extract_strided_slice %155 {offsets = [0, 64], sizes = [2, 64], strides = [1, 1]} : vector<2x192xf32> to vector<2x64xf32>
    %168 = vector.extract_strided_slice %156 {offsets = [0, 64], sizes = [2, 64], strides = [1, 1]} : vector<2x192xf32> to vector<2x64xf32>
    %169 = arith.addf %167, %168 : vector<2x64xf32>
    %cst_56 = arith.constant 5.000000e-01 : f32
    %170 = vector.broadcast %cst_56 : f32 to vector<2x64xf32>
    %171 = arith.mulf %170, %169 : vector<2x64xf32>
    %172 = math.tanh %171 : vector<2x64xf32>
    %cst_57 = arith.constant 1.000000e+00 : f32
    %173 = vector.broadcast %cst_57 : f32 to vector<2x64xf32>
    %174 = arith.addf %172, %173 : vector<2x64xf32>
    %cst_58 = arith.constant 5.000000e-01 : f32
    %175 = vector.broadcast %cst_58 : f32 to vector<2x64xf32>
    %176 = arith.mulf %175, %174 : vector<2x64xf32>
    %177 = vector.extract_strided_slice %155 {offsets = [0, 128], sizes = [2, 64], strides = [1, 1]} : vector<2x192xf32> to vector<2x64xf32>
    %178 = vector.extract_strided_slice %156 {offsets = [0, 128], sizes = [2, 64], strides = [1, 1]} : vector<2x192xf32> to vector<2x64xf32>
    %179 = arith.addf %178, %21 : vector<2x64xf32>
    %180 = arith.mulf %166, %179 : vector<2x64xf32>
    %181 = arith.addf %177, %180 : vector<2x64xf32>
    %182 = math.tanh %181 : vector<2x64xf32>
    %cst_59 = arith.constant 1.000000e+00 : f32
    %183 = vector.broadcast %cst_59 : f32 to vector<2x64xf32>
    %184 = arith.subf %183, %176 : vector<2x64xf32>
    %185 = arith.mulf %184, %182 : vector<2x64xf32>
    %186 = arith.mulf %176, %154 : vector<2x64xf32>
    %187 = arith.addf %185, %186 : vector<2x64xf32>
    %188 = vector.extract_strided_slice %17 {offsets = [10, 0], sizes = [2, 192], strides = [1, 1]} : vector<48x192xf32> to vector<2x192xf32>
    %cst_60 = arith.constant dense<0.000000e+00> : vector<2x192xf32>
    %189 = tpu.matmul %187, %18, %cst_60 {dimension_numbers = #tpu.dot_dimension_numbers<[1], [0], [0], [1], [0, 0, 1, 1], [], []>} : vector<2x64xf32>, vector<64x192xf32>, vector<2x192xf32> -> vector<2x192xf32>
    %190 = vector.extract_strided_slice %188 {offsets = [0, 0], sizes = [2, 64], strides = [1, 1]} : vector<2x192xf32> to vector<2x64xf32>
    %191 = vector.extract_strided_slice %189 {offsets = [0, 0], sizes = [2, 64], strides = [1, 1]} : vector<2x192xf32> to vector<2x64xf32>
    %192 = arith.addf %190, %191 : vector<2x64xf32>
    %cst_61 = arith.constant 5.000000e-01 : f32
    %193 = vector.broadcast %cst_61 : f32 to vector<2x64xf32>
    %194 = arith.mulf %193, %192 : vector<2x64xf32>
    %195 = math.tanh %194 : vector<2x64xf32>
    %cst_62 = arith.constant 1.000000e+00 : f32
    %196 = vector.broadcast %cst_62 : f32 to vector<2x64xf32>
    %197 = arith.addf %195, %196 : vector<2x64xf32>
    %cst_63 = arith.constant 5.000000e-01 : f32
    %198 = vector.broadcast %cst_63 : f32 to vector<2x64xf32>
    %199 = arith.mulf %198, %197 : vector<2x64xf32>
    %200 = vector.extract_strided_slice %188 {offsets = [0, 64], sizes = [2, 64], strides = [1, 1]} : vector<2x192xf32> to vector<2x64xf32>
    %201 = vector.extract_strided_slice %189 {offsets = [0, 64], sizes = [2, 64], strides = [1, 1]} : vector<2x192xf32> to vector<2x64xf32>
    %202 = arith.addf %200, %201 : vector<2x64xf32>
    %cst_64 = arith.constant 5.000000e-01 : f32
    %203 = vector.broadcast %cst_64 : f32 to vector<2x64xf32>
    %204 = arith.mulf %203, %202 : vector<2x64xf32>
    %205 = math.tanh %204 : vector<2x64xf32>
    %cst_65 = arith.constant 1.000000e+00 : f32
    %206 = vector.broadcast %cst_65 : f32 to vector<2x64xf32>
    %207 = arith.addf %205, %206 : vector<2x64xf32>
    %cst_66 = arith.constant 5.000000e-01 : f32
    %208 = vector.broadcast %cst_66 : f32 to vector<2x64xf32>
    %209 = arith.mulf %208, %207 : vector<2x64xf32>
    %210 = vector.extract_strided_slice %188 {offsets = [0, 128], sizes = [2, 64], strides = [1, 1]} : vector<2x192xf32> to vector<2x64xf32>
    %211 = vector.extract_strided_slice %189 {offsets = [0, 128], sizes = [2, 64], strides = [1, 1]} : vector<2x192xf32> to vector<2x64xf32>
    %212 = arith.addf %211, %21 : vector<2x64xf32>
    %213 = arith.mulf %199, %212 : vector<2x64xf32>
    %214 = arith.addf %210, %213 : vector<2x64xf32>
    %215 = math.tanh %214 : vector<2x64xf32>
    %cst_67 = arith.constant 1.000000e+00 : f32
    %216 = vector.broadcast %cst_67 : f32 to vector<2x64xf32>
    %217 = arith.subf %216, %209 : vector<2x64xf32>
    %218 = arith.mulf %217, %215 : vector<2x64xf32>
    %219 = arith.mulf %209, %187 : vector<2x64xf32>
    %220 = arith.addf %218, %219 : vector<2x64xf32>
    %221 = vector.extract_strided_slice %17 {offsets = [12, 0], sizes = [2, 192], strides = [1, 1]} : vector<48x192xf32> to vector<2x192xf32>
    %cst_68 = arith.constant dense<0.000000e+00> : vector<2x192xf32>
    %222 = tpu.matmul %220, %18, %cst_68 {dimension_numbers = #tpu.dot_dimension_numbers<[1], [0], [0], [1], [0, 0, 1, 1], [], []>} : vector<2x64xf32>, vector<64x192xf32>, vector<2x192xf32> -> vector<2x192xf32>
    %223 = vector.extract_strided_slice %221 {offsets = [0, 0], sizes = [2, 64], strides = [1, 1]} : vector<2x192xf32> to vector<2x64xf32>
    %224 = vector.extract_strided_slice %222 {offsets = [0, 0], sizes = [2, 64], strides = [1, 1]} : vector<2x192xf32> to vector<2x64xf32>
    %225 = arith.addf %223, %224 : vector<2x64xf32>
    %cst_69 = arith.constant 5.000000e-01 : f32
    %226 = vector.broadcast %cst_69 : f32 to vector<2x64xf32>
    %227 = arith.mulf %226, %225 : vector<2x64xf32>
    %228 = math.tanh %227 : vector<2x64xf32>
    %cst_70 = arith.constant 1.000000e+00 : f32
    %229 = vector.broadcast %cst_70 : f32 to vector<2x64xf32>
    %230 = arith.addf %228, %229 : vector<2x64xf32>
    %cst_71 = arith.constant 5.000000e-01 : f32
    %231 = vector.broadcast %cst_71 : f32 to vector<2x64xf32>
    %232 = arith.mulf %231, %230 : vector<2x64xf32>
    %233 = vector.extract_strided_slice %221 {offsets = [0, 64], sizes = [2, 64], strides = [1, 1]} : vector<2x192xf32> to vector<2x64xf32>
    %234 = vector.extract_strided_slice %222 {offsets = [0, 64], sizes = [2, 64], strides = [1, 1]} : vector<2x192xf32> to vector<2x64xf32>
    %235 = arith.addf %233, %234 : vector<2x64xf32>
    %cst_72 = arith.constant 5.000000e-01 : f32
    %236 = vector.broadcast %cst_72 : f32 to vector<2x64xf32>
    %237 = arith.mulf %236, %235 : vector<2x64xf32>
    %238 = math.tanh %237 : vector<2x64xf32>
    %cst_73 = arith.constant 1.000000e+00 : f32
    %239 = vector.broadcast %cst_73 : f32 to vector<2x64xf32>
    %240 = arith.addf %238, %239 : vector<2x64xf32>
    %cst_74 = arith.constant 5.000000e-01 : f32
    %241 = vector.broadcast %cst_74 : f32 to vector<2x64xf32>
    %242 = arith.mulf %241, %240 : vector<2x64xf32>
    %243 = vector.extract_strided_slice %221 {offsets = [0, 128], sizes = [2, 64], strides = [1, 1]} : vector<2x192xf32> to vector<2x64xf32>
    %244 = vector.extract_strided_slice %222 {offsets = [0, 128], sizes = [2, 64], strides = [1, 1]} : vector<2x192xf32> to vector<2x64xf32>
    %245 = arith.addf %244, %21 : vector<2x64xf32>
    %246 = arith.mulf %232, %245 : vector<2x64xf32>
    %247 = arith.addf %243, %246 : vector<2x64xf32>
    %248 = math.tanh %247 : vector<2x64xf32>
    %cst_75 = arith.constant 1.000000e+00 : f32
    %249 = vector.broadcast %cst_75 : f32 to vector<2x64xf32>
    %250 = arith.subf %249, %242 : vector<2x64xf32>
    %251 = arith.mulf %250, %248 : vector<2x64xf32>
    %252 = arith.mulf %242, %220 : vector<2x64xf32>
    %253 = arith.addf %251, %252 : vector<2x64xf32>
    %254 = vector.extract_strided_slice %17 {offsets = [14, 0], sizes = [2, 192], strides = [1, 1]} : vector<48x192xf32> to vector<2x192xf32>
    %cst_76 = arith.constant dense<0.000000e+00> : vector<2x192xf32>
    %255 = tpu.matmul %253, %18, %cst_76 {dimension_numbers = #tpu.dot_dimension_numbers<[1], [0], [0], [1], [0, 0, 1, 1], [], []>} : vector<2x64xf32>, vector<64x192xf32>, vector<2x192xf32> -> vector<2x192xf32>
    %256 = vector.extract_strided_slice %254 {offsets = [0, 0], sizes = [2, 64], strides = [1, 1]} : vector<2x192xf32> to vector<2x64xf32>
    %257 = vector.extract_strided_slice %255 {offsets = [0, 0], sizes = [2, 64], strides = [1, 1]} : vector<2x192xf32> to vector<2x64xf32>
    %258 = arith.addf %256, %257 : vector<2x64xf32>
    %cst_77 = arith.constant 5.000000e-01 : f32
    %259 = vector.broadcast %cst_77 : f32 to vector<2x64xf32>
    %260 = arith.mulf %259, %258 : vector<2x64xf32>
    %261 = math.tanh %260 : vector<2x64xf32>
    %cst_78 = arith.constant 1.000000e+00 : f32
    %262 = vector.broadcast %cst_78 : f32 to vector<2x64xf32>
    %263 = arith.addf %261, %262 : vector<2x64xf32>
    %cst_79 = arith.constant 5.000000e-01 : f32
    %264 = vector.broadcast %cst_79 : f32 to vector<2x64xf32>
    %265 = arith.mulf %264, %263 : vector<2x64xf32>
    %266 = vector.extract_strided_slice %254 {offsets = [0, 64], sizes = [2, 64], strides = [1, 1]} : vector<2x192xf32> to vector<2x64xf32>
    %267 = vector.extract_strided_slice %255 {offsets = [0, 64], sizes = [2, 64], strides = [1, 1]} : vector<2x192xf32> to vector<2x64xf32>
    %268 = arith.addf %266, %267 : vector<2x64xf32>
    %cst_80 = arith.constant 5.000000e-01 : f32
    %269 = vector.broadcast %cst_80 : f32 to vector<2x64xf32>
    %270 = arith.mulf %269, %268 : vector<2x64xf32>
    %271 = math.tanh %270 : vector<2x64xf32>
    %cst_81 = arith.constant 1.000000e+00 : f32
    %272 = vector.broadcast %cst_81 : f32 to vector<2x64xf32>
    %273 = arith.addf %271, %272 : vector<2x64xf32>
    %cst_82 = arith.constant 5.000000e-01 : f32
    %274 = vector.broadcast %cst_82 : f32 to vector<2x64xf32>
    %275 = arith.mulf %274, %273 : vector<2x64xf32>
    %276 = vector.extract_strided_slice %254 {offsets = [0, 128], sizes = [2, 64], strides = [1, 1]} : vector<2x192xf32> to vector<2x64xf32>
    %277 = vector.extract_strided_slice %255 {offsets = [0, 128], sizes = [2, 64], strides = [1, 1]} : vector<2x192xf32> to vector<2x64xf32>
    %278 = arith.addf %277, %21 : vector<2x64xf32>
    %279 = arith.mulf %265, %278 : vector<2x64xf32>
    %280 = arith.addf %276, %279 : vector<2x64xf32>
    %281 = math.tanh %280 : vector<2x64xf32>
    %cst_83 = arith.constant 1.000000e+00 : f32
    %282 = vector.broadcast %cst_83 : f32 to vector<2x64xf32>
    %283 = arith.subf %282, %275 : vector<2x64xf32>
    %284 = arith.mulf %283, %281 : vector<2x64xf32>
    %285 = arith.mulf %275, %253 : vector<2x64xf32>
    %286 = arith.addf %284, %285 : vector<2x64xf32>
    %287 = vector.extract_strided_slice %17 {offsets = [16, 0], sizes = [2, 192], strides = [1, 1]} : vector<48x192xf32> to vector<2x192xf32>
    %cst_84 = arith.constant dense<0.000000e+00> : vector<2x192xf32>
    %288 = tpu.matmul %286, %18, %cst_84 {dimension_numbers = #tpu.dot_dimension_numbers<[1], [0], [0], [1], [0, 0, 1, 1], [], []>} : vector<2x64xf32>, vector<64x192xf32>, vector<2x192xf32> -> vector<2x192xf32>
    %289 = vector.extract_strided_slice %287 {offsets = [0, 0], sizes = [2, 64], strides = [1, 1]} : vector<2x192xf32> to vector<2x64xf32>
    %290 = vector.extract_strided_slice %288 {offsets = [0, 0], sizes = [2, 64], strides = [1, 1]} : vector<2x192xf32> to vector<2x64xf32>
    %291 = arith.addf %289, %290 : vector<2x64xf32>
    %cst_85 = arith.constant 5.000000e-01 : f32
    %292 = vector.broadcast %cst_85 : f32 to vector<2x64xf32>
    %293 = arith.mulf %292, %291 : vector<2x64xf32>
    %294 = math.tanh %293 : vector<2x64xf32>
    %cst_86 = arith.constant 1.000000e+00 : f32
    %295 = vector.broadcast %cst_86 : f32 to vector<2x64xf32>
    %296 = arith.addf %294, %295 : vector<2x64xf32>
    %cst_87 = arith.constant 5.000000e-01 : f32
    %297 = vector.broadcast %cst_87 : f32 to vector<2x64xf32>
    %298 = arith.mulf %297, %296 : vector<2x64xf32>
    %299 = vector.extract_strided_slice %287 {offsets = [0, 64], sizes = [2, 64], strides = [1, 1]} : vector<2x192xf32> to vector<2x64xf32>
    %300 = vector.extract_strided_slice %288 {offsets = [0, 64], sizes = [2, 64], strides = [1, 1]} : vector<2x192xf32> to vector<2x64xf32>
    %301 = arith.addf %299, %300 : vector<2x64xf32>
    %cst_88 = arith.constant 5.000000e-01 : f32
    %302 = vector.broadcast %cst_88 : f32 to vector<2x64xf32>
    %303 = arith.mulf %302, %301 : vector<2x64xf32>
    %304 = math.tanh %303 : vector<2x64xf32>
    %cst_89 = arith.constant 1.000000e+00 : f32
    %305 = vector.broadcast %cst_89 : f32 to vector<2x64xf32>
    %306 = arith.addf %304, %305 : vector<2x64xf32>
    %cst_90 = arith.constant 5.000000e-01 : f32
    %307 = vector.broadcast %cst_90 : f32 to vector<2x64xf32>
    %308 = arith.mulf %307, %306 : vector<2x64xf32>
    %309 = vector.extract_strided_slice %287 {offsets = [0, 128], sizes = [2, 64], strides = [1, 1]} : vector<2x192xf32> to vector<2x64xf32>
    %310 = vector.extract_strided_slice %288 {offsets = [0, 128], sizes = [2, 64], strides = [1, 1]} : vector<2x192xf32> to vector<2x64xf32>
    %311 = arith.addf %310, %21 : vector<2x64xf32>
    %312 = arith.mulf %298, %311 : vector<2x64xf32>
    %313 = arith.addf %309, %312 : vector<2x64xf32>
    %314 = math.tanh %313 : vector<2x64xf32>
    %cst_91 = arith.constant 1.000000e+00 : f32
    %315 = vector.broadcast %cst_91 : f32 to vector<2x64xf32>
    %316 = arith.subf %315, %308 : vector<2x64xf32>
    %317 = arith.mulf %316, %314 : vector<2x64xf32>
    %318 = arith.mulf %308, %286 : vector<2x64xf32>
    %319 = arith.addf %317, %318 : vector<2x64xf32>
    %320 = vector.extract_strided_slice %17 {offsets = [18, 0], sizes = [2, 192], strides = [1, 1]} : vector<48x192xf32> to vector<2x192xf32>
    %cst_92 = arith.constant dense<0.000000e+00> : vector<2x192xf32>
    %321 = tpu.matmul %319, %18, %cst_92 {dimension_numbers = #tpu.dot_dimension_numbers<[1], [0], [0], [1], [0, 0, 1, 1], [], []>} : vector<2x64xf32>, vector<64x192xf32>, vector<2x192xf32> -> vector<2x192xf32>
    %322 = vector.extract_strided_slice %320 {offsets = [0, 0], sizes = [2, 64], strides = [1, 1]} : vector<2x192xf32> to vector<2x64xf32>
    %323 = vector.extract_strided_slice %321 {offsets = [0, 0], sizes = [2, 64], strides = [1, 1]} : vector<2x192xf32> to vector<2x64xf32>
    %324 = arith.addf %322, %323 : vector<2x64xf32>
    %cst_93 = arith.constant 5.000000e-01 : f32
    %325 = vector.broadcast %cst_93 : f32 to vector<2x64xf32>
    %326 = arith.mulf %325, %324 : vector<2x64xf32>
    %327 = math.tanh %326 : vector<2x64xf32>
    %cst_94 = arith.constant 1.000000e+00 : f32
    %328 = vector.broadcast %cst_94 : f32 to vector<2x64xf32>
    %329 = arith.addf %327, %328 : vector<2x64xf32>
    %cst_95 = arith.constant 5.000000e-01 : f32
    %330 = vector.broadcast %cst_95 : f32 to vector<2x64xf32>
    %331 = arith.mulf %330, %329 : vector<2x64xf32>
    %332 = vector.extract_strided_slice %320 {offsets = [0, 64], sizes = [2, 64], strides = [1, 1]} : vector<2x192xf32> to vector<2x64xf32>
    %333 = vector.extract_strided_slice %321 {offsets = [0, 64], sizes = [2, 64], strides = [1, 1]} : vector<2x192xf32> to vector<2x64xf32>
    %334 = arith.addf %332, %333 : vector<2x64xf32>
    %cst_96 = arith.constant 5.000000e-01 : f32
    %335 = vector.broadcast %cst_96 : f32 to vector<2x64xf32>
    %336 = arith.mulf %335, %334 : vector<2x64xf32>
    %337 = math.tanh %336 : vector<2x64xf32>
    %cst_97 = arith.constant 1.000000e+00 : f32
    %338 = vector.broadcast %cst_97 : f32 to vector<2x64xf32>
    %339 = arith.addf %337, %338 : vector<2x64xf32>
    %cst_98 = arith.constant 5.000000e-01 : f32
    %340 = vector.broadcast %cst_98 : f32 to vector<2x64xf32>
    %341 = arith.mulf %340, %339 : vector<2x64xf32>
    %342 = vector.extract_strided_slice %320 {offsets = [0, 128], sizes = [2, 64], strides = [1, 1]} : vector<2x192xf32> to vector<2x64xf32>
    %343 = vector.extract_strided_slice %321 {offsets = [0, 128], sizes = [2, 64], strides = [1, 1]} : vector<2x192xf32> to vector<2x64xf32>
    %344 = arith.addf %343, %21 : vector<2x64xf32>
    %345 = arith.mulf %331, %344 : vector<2x64xf32>
    %346 = arith.addf %342, %345 : vector<2x64xf32>
    %347 = math.tanh %346 : vector<2x64xf32>
    %cst_99 = arith.constant 1.000000e+00 : f32
    %348 = vector.broadcast %cst_99 : f32 to vector<2x64xf32>
    %349 = arith.subf %348, %341 : vector<2x64xf32>
    %350 = arith.mulf %349, %347 : vector<2x64xf32>
    %351 = arith.mulf %341, %319 : vector<2x64xf32>
    %352 = arith.addf %350, %351 : vector<2x64xf32>
    %353 = vector.extract_strided_slice %17 {offsets = [20, 0], sizes = [2, 192], strides = [1, 1]} : vector<48x192xf32> to vector<2x192xf32>
    %cst_100 = arith.constant dense<0.000000e+00> : vector<2x192xf32>
    %354 = tpu.matmul %352, %18, %cst_100 {dimension_numbers = #tpu.dot_dimension_numbers<[1], [0], [0], [1], [0, 0, 1, 1], [], []>} : vector<2x64xf32>, vector<64x192xf32>, vector<2x192xf32> -> vector<2x192xf32>
    %355 = vector.extract_strided_slice %353 {offsets = [0, 0], sizes = [2, 64], strides = [1, 1]} : vector<2x192xf32> to vector<2x64xf32>
    %356 = vector.extract_strided_slice %354 {offsets = [0, 0], sizes = [2, 64], strides = [1, 1]} : vector<2x192xf32> to vector<2x64xf32>
    %357 = arith.addf %355, %356 : vector<2x64xf32>
    %cst_101 = arith.constant 5.000000e-01 : f32
    %358 = vector.broadcast %cst_101 : f32 to vector<2x64xf32>
    %359 = arith.mulf %358, %357 : vector<2x64xf32>
    %360 = math.tanh %359 : vector<2x64xf32>
    %cst_102 = arith.constant 1.000000e+00 : f32
    %361 = vector.broadcast %cst_102 : f32 to vector<2x64xf32>
    %362 = arith.addf %360, %361 : vector<2x64xf32>
    %cst_103 = arith.constant 5.000000e-01 : f32
    %363 = vector.broadcast %cst_103 : f32 to vector<2x64xf32>
    %364 = arith.mulf %363, %362 : vector<2x64xf32>
    %365 = vector.extract_strided_slice %353 {offsets = [0, 64], sizes = [2, 64], strides = [1, 1]} : vector<2x192xf32> to vector<2x64xf32>
    %366 = vector.extract_strided_slice %354 {offsets = [0, 64], sizes = [2, 64], strides = [1, 1]} : vector<2x192xf32> to vector<2x64xf32>
    %367 = arith.addf %365, %366 : vector<2x64xf32>
    %cst_104 = arith.constant 5.000000e-01 : f32
    %368 = vector.broadcast %cst_104 : f32 to vector<2x64xf32>
    %369 = arith.mulf %368, %367 : vector<2x64xf32>
    %370 = math.tanh %369 : vector<2x64xf32>
    %cst_105 = arith.constant 1.000000e+00 : f32
    %371 = vector.broadcast %cst_105 : f32 to vector<2x64xf32>
    %372 = arith.addf %370, %371 : vector<2x64xf32>
    %cst_106 = arith.constant 5.000000e-01 : f32
    %373 = vector.broadcast %cst_106 : f32 to vector<2x64xf32>
    %374 = arith.mulf %373, %372 : vector<2x64xf32>
    %375 = vector.extract_strided_slice %353 {offsets = [0, 128], sizes = [2, 64], strides = [1, 1]} : vector<2x192xf32> to vector<2x64xf32>
    %376 = vector.extract_strided_slice %354 {offsets = [0, 128], sizes = [2, 64], strides = [1, 1]} : vector<2x192xf32> to vector<2x64xf32>
    %377 = arith.addf %376, %21 : vector<2x64xf32>
    %378 = arith.mulf %364, %377 : vector<2x64xf32>
    %379 = arith.addf %375, %378 : vector<2x64xf32>
    %380 = math.tanh %379 : vector<2x64xf32>
    %cst_107 = arith.constant 1.000000e+00 : f32
    %381 = vector.broadcast %cst_107 : f32 to vector<2x64xf32>
    %382 = arith.subf %381, %374 : vector<2x64xf32>
    %383 = arith.mulf %382, %380 : vector<2x64xf32>
    %384 = arith.mulf %374, %352 : vector<2x64xf32>
    %385 = arith.addf %383, %384 : vector<2x64xf32>
    %386 = vector.extract_strided_slice %17 {offsets = [22, 0], sizes = [2, 192], strides = [1, 1]} : vector<48x192xf32> to vector<2x192xf32>
    %cst_108 = arith.constant dense<0.000000e+00> : vector<2x192xf32>
    %387 = tpu.matmul %385, %18, %cst_108 {dimension_numbers = #tpu.dot_dimension_numbers<[1], [0], [0], [1], [0, 0, 1, 1], [], []>} : vector<2x64xf32>, vector<64x192xf32>, vector<2x192xf32> -> vector<2x192xf32>
    %388 = vector.extract_strided_slice %386 {offsets = [0, 0], sizes = [2, 64], strides = [1, 1]} : vector<2x192xf32> to vector<2x64xf32>
    %389 = vector.extract_strided_slice %387 {offsets = [0, 0], sizes = [2, 64], strides = [1, 1]} : vector<2x192xf32> to vector<2x64xf32>
    %390 = arith.addf %388, %389 : vector<2x64xf32>
    %cst_109 = arith.constant 5.000000e-01 : f32
    %391 = vector.broadcast %cst_109 : f32 to vector<2x64xf32>
    %392 = arith.mulf %391, %390 : vector<2x64xf32>
    %393 = math.tanh %392 : vector<2x64xf32>
    %cst_110 = arith.constant 1.000000e+00 : f32
    %394 = vector.broadcast %cst_110 : f32 to vector<2x64xf32>
    %395 = arith.addf %393, %394 : vector<2x64xf32>
    %cst_111 = arith.constant 5.000000e-01 : f32
    %396 = vector.broadcast %cst_111 : f32 to vector<2x64xf32>
    %397 = arith.mulf %396, %395 : vector<2x64xf32>
    %398 = vector.extract_strided_slice %386 {offsets = [0, 64], sizes = [2, 64], strides = [1, 1]} : vector<2x192xf32> to vector<2x64xf32>
    %399 = vector.extract_strided_slice %387 {offsets = [0, 64], sizes = [2, 64], strides = [1, 1]} : vector<2x192xf32> to vector<2x64xf32>
    %400 = arith.addf %398, %399 : vector<2x64xf32>
    %cst_112 = arith.constant 5.000000e-01 : f32
    %401 = vector.broadcast %cst_112 : f32 to vector<2x64xf32>
    %402 = arith.mulf %401, %400 : vector<2x64xf32>
    %403 = math.tanh %402 : vector<2x64xf32>
    %cst_113 = arith.constant 1.000000e+00 : f32
    %404 = vector.broadcast %cst_113 : f32 to vector<2x64xf32>
    %405 = arith.addf %403, %404 : vector<2x64xf32>
    %cst_114 = arith.constant 5.000000e-01 : f32
    %406 = vector.broadcast %cst_114 : f32 to vector<2x64xf32>
    %407 = arith.mulf %406, %405 : vector<2x64xf32>
    %408 = vector.extract_strided_slice %386 {offsets = [0, 128], sizes = [2, 64], strides = [1, 1]} : vector<2x192xf32> to vector<2x64xf32>
    %409 = vector.extract_strided_slice %387 {offsets = [0, 128], sizes = [2, 64], strides = [1, 1]} : vector<2x192xf32> to vector<2x64xf32>
    %410 = arith.addf %409, %21 : vector<2x64xf32>
    %411 = arith.mulf %397, %410 : vector<2x64xf32>
    %412 = arith.addf %408, %411 : vector<2x64xf32>
    %413 = math.tanh %412 : vector<2x64xf32>
    %cst_115 = arith.constant 1.000000e+00 : f32
    %414 = vector.broadcast %cst_115 : f32 to vector<2x64xf32>
    %415 = arith.subf %414, %407 : vector<2x64xf32>
    %416 = arith.mulf %415, %413 : vector<2x64xf32>
    %417 = arith.mulf %407, %385 : vector<2x64xf32>
    %418 = arith.addf %416, %417 : vector<2x64xf32>
    %419 = vector.extract_strided_slice %17 {offsets = [24, 0], sizes = [2, 192], strides = [1, 1]} : vector<48x192xf32> to vector<2x192xf32>
    %cst_116 = arith.constant dense<0.000000e+00> : vector<2x192xf32>
    %420 = tpu.matmul %418, %18, %cst_116 {dimension_numbers = #tpu.dot_dimension_numbers<[1], [0], [0], [1], [0, 0, 1, 1], [], []>} : vector<2x64xf32>, vector<64x192xf32>, vector<2x192xf32> -> vector<2x192xf32>
    %421 = vector.extract_strided_slice %419 {offsets = [0, 0], sizes = [2, 64], strides = [1, 1]} : vector<2x192xf32> to vector<2x64xf32>
    %422 = vector.extract_strided_slice %420 {offsets = [0, 0], sizes = [2, 64], strides = [1, 1]} : vector<2x192xf32> to vector<2x64xf32>
    %423 = arith.addf %421, %422 : vector<2x64xf32>
    %cst_117 = arith.constant 5.000000e-01 : f32
    %424 = vector.broadcast %cst_117 : f32 to vector<2x64xf32>
    %425 = arith.mulf %424, %423 : vector<2x64xf32>
    %426 = math.tanh %425 : vector<2x64xf32>
    %cst_118 = arith.constant 1.000000e+00 : f32
    %427 = vector.broadcast %cst_118 : f32 to vector<2x64xf32>
    %428 = arith.addf %426, %427 : vector<2x64xf32>
    %cst_119 = arith.constant 5.000000e-01 : f32
    %429 = vector.broadcast %cst_119 : f32 to vector<2x64xf32>
    %430 = arith.mulf %429, %428 : vector<2x64xf32>
    %431 = vector.extract_strided_slice %419 {offsets = [0, 64], sizes = [2, 64], strides = [1, 1]} : vector<2x192xf32> to vector<2x64xf32>
    %432 = vector.extract_strided_slice %420 {offsets = [0, 64], sizes = [2, 64], strides = [1, 1]} : vector<2x192xf32> to vector<2x64xf32>
    %433 = arith.addf %431, %432 : vector<2x64xf32>
    %cst_120 = arith.constant 5.000000e-01 : f32
    %434 = vector.broadcast %cst_120 : f32 to vector<2x64xf32>
    %435 = arith.mulf %434, %433 : vector<2x64xf32>
    %436 = math.tanh %435 : vector<2x64xf32>
    %cst_121 = arith.constant 1.000000e+00 : f32
    %437 = vector.broadcast %cst_121 : f32 to vector<2x64xf32>
    %438 = arith.addf %436, %437 : vector<2x64xf32>
    %cst_122 = arith.constant 5.000000e-01 : f32
    %439 = vector.broadcast %cst_122 : f32 to vector<2x64xf32>
    %440 = arith.mulf %439, %438 : vector<2x64xf32>
    %441 = vector.extract_strided_slice %419 {offsets = [0, 128], sizes = [2, 64], strides = [1, 1]} : vector<2x192xf32> to vector<2x64xf32>
    %442 = vector.extract_strided_slice %420 {offsets = [0, 128], sizes = [2, 64], strides = [1, 1]} : vector<2x192xf32> to vector<2x64xf32>
    %443 = arith.addf %442, %21 : vector<2x64xf32>
    %444 = arith.mulf %430, %443 : vector<2x64xf32>
    %445 = arith.addf %441, %444 : vector<2x64xf32>
    %446 = math.tanh %445 : vector<2x64xf32>
    %cst_123 = arith.constant 1.000000e+00 : f32
    %447 = vector.broadcast %cst_123 : f32 to vector<2x64xf32>
    %448 = arith.subf %447, %440 : vector<2x64xf32>
    %449 = arith.mulf %448, %446 : vector<2x64xf32>
    %450 = arith.mulf %440, %418 : vector<2x64xf32>
    %451 = arith.addf %449, %450 : vector<2x64xf32>
    %452 = vector.extract_strided_slice %17 {offsets = [26, 0], sizes = [2, 192], strides = [1, 1]} : vector<48x192xf32> to vector<2x192xf32>
    %cst_124 = arith.constant dense<0.000000e+00> : vector<2x192xf32>
    %453 = tpu.matmul %451, %18, %cst_124 {dimension_numbers = #tpu.dot_dimension_numbers<[1], [0], [0], [1], [0, 0, 1, 1], [], []>} : vector<2x64xf32>, vector<64x192xf32>, vector<2x192xf32> -> vector<2x192xf32>
    %454 = vector.extract_strided_slice %452 {offsets = [0, 0], sizes = [2, 64], strides = [1, 1]} : vector<2x192xf32> to vector<2x64xf32>
    %455 = vector.extract_strided_slice %453 {offsets = [0, 0], sizes = [2, 64], strides = [1, 1]} : vector<2x192xf32> to vector<2x64xf32>
    %456 = arith.addf %454, %455 : vector<2x64xf32>
    %cst_125 = arith.constant 5.000000e-01 : f32
    %457 = vector.broadcast %cst_125 : f32 to vector<2x64xf32>
    %458 = arith.mulf %457, %456 : vector<2x64xf32>
    %459 = math.tanh %458 : vector<2x64xf32>
    %cst_126 = arith.constant 1.000000e+00 : f32
    %460 = vector.broadcast %cst_126 : f32 to vector<2x64xf32>
    %461 = arith.addf %459, %460 : vector<2x64xf32>
    %cst_127 = arith.constant 5.000000e-01 : f32
    %462 = vector.broadcast %cst_127 : f32 to vector<2x64xf32>
    %463 = arith.mulf %462, %461 : vector<2x64xf32>
    %464 = vector.extract_strided_slice %452 {offsets = [0, 64], sizes = [2, 64], strides = [1, 1]} : vector<2x192xf32> to vector<2x64xf32>
    %465 = vector.extract_strided_slice %453 {offsets = [0, 64], sizes = [2, 64], strides = [1, 1]} : vector<2x192xf32> to vector<2x64xf32>
    %466 = arith.addf %464, %465 : vector<2x64xf32>
    %cst_128 = arith.constant 5.000000e-01 : f32
    %467 = vector.broadcast %cst_128 : f32 to vector<2x64xf32>
    %468 = arith.mulf %467, %466 : vector<2x64xf32>
    %469 = math.tanh %468 : vector<2x64xf32>
    %cst_129 = arith.constant 1.000000e+00 : f32
    %470 = vector.broadcast %cst_129 : f32 to vector<2x64xf32>
    %471 = arith.addf %469, %470 : vector<2x64xf32>
    %cst_130 = arith.constant 5.000000e-01 : f32
    %472 = vector.broadcast %cst_130 : f32 to vector<2x64xf32>
    %473 = arith.mulf %472, %471 : vector<2x64xf32>
    %474 = vector.extract_strided_slice %452 {offsets = [0, 128], sizes = [2, 64], strides = [1, 1]} : vector<2x192xf32> to vector<2x64xf32>
    %475 = vector.extract_strided_slice %453 {offsets = [0, 128], sizes = [2, 64], strides = [1, 1]} : vector<2x192xf32> to vector<2x64xf32>
    %476 = arith.addf %475, %21 : vector<2x64xf32>
    %477 = arith.mulf %463, %476 : vector<2x64xf32>
    %478 = arith.addf %474, %477 : vector<2x64xf32>
    %479 = math.tanh %478 : vector<2x64xf32>
    %cst_131 = arith.constant 1.000000e+00 : f32
    %480 = vector.broadcast %cst_131 : f32 to vector<2x64xf32>
    %481 = arith.subf %480, %473 : vector<2x64xf32>
    %482 = arith.mulf %481, %479 : vector<2x64xf32>
    %483 = arith.mulf %473, %451 : vector<2x64xf32>
    %484 = arith.addf %482, %483 : vector<2x64xf32>
    %485 = vector.extract_strided_slice %17 {offsets = [28, 0], sizes = [2, 192], strides = [1, 1]} : vector<48x192xf32> to vector<2x192xf32>
    %cst_132 = arith.constant dense<0.000000e+00> : vector<2x192xf32>
    %486 = tpu.matmul %484, %18, %cst_132 {dimension_numbers = #tpu.dot_dimension_numbers<[1], [0], [0], [1], [0, 0, 1, 1], [], []>} : vector<2x64xf32>, vector<64x192xf32>, vector<2x192xf32> -> vector<2x192xf32>
    %487 = vector.extract_strided_slice %485 {offsets = [0, 0], sizes = [2, 64], strides = [1, 1]} : vector<2x192xf32> to vector<2x64xf32>
    %488 = vector.extract_strided_slice %486 {offsets = [0, 0], sizes = [2, 64], strides = [1, 1]} : vector<2x192xf32> to vector<2x64xf32>
    %489 = arith.addf %487, %488 : vector<2x64xf32>
    %cst_133 = arith.constant 5.000000e-01 : f32
    %490 = vector.broadcast %cst_133 : f32 to vector<2x64xf32>
    %491 = arith.mulf %490, %489 : vector<2x64xf32>
    %492 = math.tanh %491 : vector<2x64xf32>
    %cst_134 = arith.constant 1.000000e+00 : f32
    %493 = vector.broadcast %cst_134 : f32 to vector<2x64xf32>
    %494 = arith.addf %492, %493 : vector<2x64xf32>
    %cst_135 = arith.constant 5.000000e-01 : f32
    %495 = vector.broadcast %cst_135 : f32 to vector<2x64xf32>
    %496 = arith.mulf %495, %494 : vector<2x64xf32>
    %497 = vector.extract_strided_slice %485 {offsets = [0, 64], sizes = [2, 64], strides = [1, 1]} : vector<2x192xf32> to vector<2x64xf32>
    %498 = vector.extract_strided_slice %486 {offsets = [0, 64], sizes = [2, 64], strides = [1, 1]} : vector<2x192xf32> to vector<2x64xf32>
    %499 = arith.addf %497, %498 : vector<2x64xf32>
    %cst_136 = arith.constant 5.000000e-01 : f32
    %500 = vector.broadcast %cst_136 : f32 to vector<2x64xf32>
    %501 = arith.mulf %500, %499 : vector<2x64xf32>
    %502 = math.tanh %501 : vector<2x64xf32>
    %cst_137 = arith.constant 1.000000e+00 : f32
    %503 = vector.broadcast %cst_137 : f32 to vector<2x64xf32>
    %504 = arith.addf %502, %503 : vector<2x64xf32>
    %cst_138 = arith.constant 5.000000e-01 : f32
    %505 = vector.broadcast %cst_138 : f32 to vector<2x64xf32>
    %506 = arith.mulf %505, %504 : vector<2x64xf32>
    %507 = vector.extract_strided_slice %485 {offsets = [0, 128], sizes = [2, 64], strides = [1, 1]} : vector<2x192xf32> to vector<2x64xf32>
    %508 = vector.extract_strided_slice %486 {offsets = [0, 128], sizes = [2, 64], strides = [1, 1]} : vector<2x192xf32> to vector<2x64xf32>
    %509 = arith.addf %508, %21 : vector<2x64xf32>
    %510 = arith.mulf %496, %509 : vector<2x64xf32>
    %511 = arith.addf %507, %510 : vector<2x64xf32>
    %512 = math.tanh %511 : vector<2x64xf32>
    %cst_139 = arith.constant 1.000000e+00 : f32
    %513 = vector.broadcast %cst_139 : f32 to vector<2x64xf32>
    %514 = arith.subf %513, %506 : vector<2x64xf32>
    %515 = arith.mulf %514, %512 : vector<2x64xf32>
    %516 = arith.mulf %506, %484 : vector<2x64xf32>
    %517 = arith.addf %515, %516 : vector<2x64xf32>
    %518 = vector.extract_strided_slice %17 {offsets = [30, 0], sizes = [2, 192], strides = [1, 1]} : vector<48x192xf32> to vector<2x192xf32>
    %cst_140 = arith.constant dense<0.000000e+00> : vector<2x192xf32>
    %519 = tpu.matmul %517, %18, %cst_140 {dimension_numbers = #tpu.dot_dimension_numbers<[1], [0], [0], [1], [0, 0, 1, 1], [], []>} : vector<2x64xf32>, vector<64x192xf32>, vector<2x192xf32> -> vector<2x192xf32>
    %520 = vector.extract_strided_slice %518 {offsets = [0, 0], sizes = [2, 64], strides = [1, 1]} : vector<2x192xf32> to vector<2x64xf32>
    %521 = vector.extract_strided_slice %519 {offsets = [0, 0], sizes = [2, 64], strides = [1, 1]} : vector<2x192xf32> to vector<2x64xf32>
    %522 = arith.addf %520, %521 : vector<2x64xf32>
    %cst_141 = arith.constant 5.000000e-01 : f32
    %523 = vector.broadcast %cst_141 : f32 to vector<2x64xf32>
    %524 = arith.mulf %523, %522 : vector<2x64xf32>
    %525 = math.tanh %524 : vector<2x64xf32>
    %cst_142 = arith.constant 1.000000e+00 : f32
    %526 = vector.broadcast %cst_142 : f32 to vector<2x64xf32>
    %527 = arith.addf %525, %526 : vector<2x64xf32>
    %cst_143 = arith.constant 5.000000e-01 : f32
    %528 = vector.broadcast %cst_143 : f32 to vector<2x64xf32>
    %529 = arith.mulf %528, %527 : vector<2x64xf32>
    %530 = vector.extract_strided_slice %518 {offsets = [0, 64], sizes = [2, 64], strides = [1, 1]} : vector<2x192xf32> to vector<2x64xf32>
    %531 = vector.extract_strided_slice %519 {offsets = [0, 64], sizes = [2, 64], strides = [1, 1]} : vector<2x192xf32> to vector<2x64xf32>
    %532 = arith.addf %530, %531 : vector<2x64xf32>
    %cst_144 = arith.constant 5.000000e-01 : f32
    %533 = vector.broadcast %cst_144 : f32 to vector<2x64xf32>
    %534 = arith.mulf %533, %532 : vector<2x64xf32>
    %535 = math.tanh %534 : vector<2x64xf32>
    %cst_145 = arith.constant 1.000000e+00 : f32
    %536 = vector.broadcast %cst_145 : f32 to vector<2x64xf32>
    %537 = arith.addf %535, %536 : vector<2x64xf32>
    %cst_146 = arith.constant 5.000000e-01 : f32
    %538 = vector.broadcast %cst_146 : f32 to vector<2x64xf32>
    %539 = arith.mulf %538, %537 : vector<2x64xf32>
    %540 = vector.extract_strided_slice %518 {offsets = [0, 128], sizes = [2, 64], strides = [1, 1]} : vector<2x192xf32> to vector<2x64xf32>
    %541 = vector.extract_strided_slice %519 {offsets = [0, 128], sizes = [2, 64], strides = [1, 1]} : vector<2x192xf32> to vector<2x64xf32>
    %542 = arith.addf %541, %21 : vector<2x64xf32>
    %543 = arith.mulf %529, %542 : vector<2x64xf32>
    %544 = arith.addf %540, %543 : vector<2x64xf32>
    %545 = math.tanh %544 : vector<2x64xf32>
    %cst_147 = arith.constant 1.000000e+00 : f32
    %546 = vector.broadcast %cst_147 : f32 to vector<2x64xf32>
    %547 = arith.subf %546, %539 : vector<2x64xf32>
    %548 = arith.mulf %547, %545 : vector<2x64xf32>
    %549 = arith.mulf %539, %517 : vector<2x64xf32>
    %550 = arith.addf %548, %549 : vector<2x64xf32>
    %551 = vector.extract_strided_slice %17 {offsets = [32, 0], sizes = [2, 192], strides = [1, 1]} : vector<48x192xf32> to vector<2x192xf32>
    %cst_148 = arith.constant dense<0.000000e+00> : vector<2x192xf32>
    %552 = tpu.matmul %550, %18, %cst_148 {dimension_numbers = #tpu.dot_dimension_numbers<[1], [0], [0], [1], [0, 0, 1, 1], [], []>} : vector<2x64xf32>, vector<64x192xf32>, vector<2x192xf32> -> vector<2x192xf32>
    %553 = vector.extract_strided_slice %551 {offsets = [0, 0], sizes = [2, 64], strides = [1, 1]} : vector<2x192xf32> to vector<2x64xf32>
    %554 = vector.extract_strided_slice %552 {offsets = [0, 0], sizes = [2, 64], strides = [1, 1]} : vector<2x192xf32> to vector<2x64xf32>
    %555 = arith.addf %553, %554 : vector<2x64xf32>
    %cst_149 = arith.constant 5.000000e-01 : f32
    %556 = vector.broadcast %cst_149 : f32 to vector<2x64xf32>
    %557 = arith.mulf %556, %555 : vector<2x64xf32>
    %558 = math.tanh %557 : vector<2x64xf32>
    %cst_150 = arith.constant 1.000000e+00 : f32
    %559 = vector.broadcast %cst_150 : f32 to vector<2x64xf32>
    %560 = arith.addf %558, %559 : vector<2x64xf32>
    %cst_151 = arith.constant 5.000000e-01 : f32
    %561 = vector.broadcast %cst_151 : f32 to vector<2x64xf32>
    %562 = arith.mulf %561, %560 : vector<2x64xf32>
    %563 = vector.extract_strided_slice %551 {offsets = [0, 64], sizes = [2, 64], strides = [1, 1]} : vector<2x192xf32> to vector<2x64xf32>
    %564 = vector.extract_strided_slice %552 {offsets = [0, 64], sizes = [2, 64], strides = [1, 1]} : vector<2x192xf32> to vector<2x64xf32>
    %565 = arith.addf %563, %564 : vector<2x64xf32>
    %cst_152 = arith.constant 5.000000e-01 : f32
    %566 = vector.broadcast %cst_152 : f32 to vector<2x64xf32>
    %567 = arith.mulf %566, %565 : vector<2x64xf32>
    %568 = math.tanh %567 : vector<2x64xf32>
    %cst_153 = arith.constant 1.000000e+00 : f32
    %569 = vector.broadcast %cst_153 : f32 to vector<2x64xf32>
    %570 = arith.addf %568, %569 : vector<2x64xf32>
    %cst_154 = arith.constant 5.000000e-01 : f32
    %571 = vector.broadcast %cst_154 : f32 to vector<2x64xf32>
    %572 = arith.mulf %571, %570 : vector<2x64xf32>
    %573 = vector.extract_strided_slice %551 {offsets = [0, 128], sizes = [2, 64], strides = [1, 1]} : vector<2x192xf32> to vector<2x64xf32>
    %574 = vector.extract_strided_slice %552 {offsets = [0, 128], sizes = [2, 64], strides = [1, 1]} : vector<2x192xf32> to vector<2x64xf32>
    %575 = arith.addf %574, %21 : vector<2x64xf32>
    %576 = arith.mulf %562, %575 : vector<2x64xf32>
    %577 = arith.addf %573, %576 : vector<2x64xf32>
    %578 = math.tanh %577 : vector<2x64xf32>
    %cst_155 = arith.constant 1.000000e+00 : f32
    %579 = vector.broadcast %cst_155 : f32 to vector<2x64xf32>
    %580 = arith.subf %579, %572 : vector<2x64xf32>
    %581 = arith.mulf %580, %578 : vector<2x64xf32>
    %582 = arith.mulf %572, %550 : vector<2x64xf32>
    %583 = arith.addf %581, %582 : vector<2x64xf32>
    %584 = vector.extract_strided_slice %17 {offsets = [34, 0], sizes = [2, 192], strides = [1, 1]} : vector<48x192xf32> to vector<2x192xf32>
    %cst_156 = arith.constant dense<0.000000e+00> : vector<2x192xf32>
    %585 = tpu.matmul %583, %18, %cst_156 {dimension_numbers = #tpu.dot_dimension_numbers<[1], [0], [0], [1], [0, 0, 1, 1], [], []>} : vector<2x64xf32>, vector<64x192xf32>, vector<2x192xf32> -> vector<2x192xf32>
    %586 = vector.extract_strided_slice %584 {offsets = [0, 0], sizes = [2, 64], strides = [1, 1]} : vector<2x192xf32> to vector<2x64xf32>
    %587 = vector.extract_strided_slice %585 {offsets = [0, 0], sizes = [2, 64], strides = [1, 1]} : vector<2x192xf32> to vector<2x64xf32>
    %588 = arith.addf %586, %587 : vector<2x64xf32>
    %cst_157 = arith.constant 5.000000e-01 : f32
    %589 = vector.broadcast %cst_157 : f32 to vector<2x64xf32>
    %590 = arith.mulf %589, %588 : vector<2x64xf32>
    %591 = math.tanh %590 : vector<2x64xf32>
    %cst_158 = arith.constant 1.000000e+00 : f32
    %592 = vector.broadcast %cst_158 : f32 to vector<2x64xf32>
    %593 = arith.addf %591, %592 : vector<2x64xf32>
    %cst_159 = arith.constant 5.000000e-01 : f32
    %594 = vector.broadcast %cst_159 : f32 to vector<2x64xf32>
    %595 = arith.mulf %594, %593 : vector<2x64xf32>
    %596 = vector.extract_strided_slice %584 {offsets = [0, 64], sizes = [2, 64], strides = [1, 1]} : vector<2x192xf32> to vector<2x64xf32>
    %597 = vector.extract_strided_slice %585 {offsets = [0, 64], sizes = [2, 64], strides = [1, 1]} : vector<2x192xf32> to vector<2x64xf32>
    %598 = arith.addf %596, %597 : vector<2x64xf32>
    %cst_160 = arith.constant 5.000000e-01 : f32
    %599 = vector.broadcast %cst_160 : f32 to vector<2x64xf32>
    %600 = arith.mulf %599, %598 : vector<2x64xf32>
    %601 = math.tanh %600 : vector<2x64xf32>
    %cst_161 = arith.constant 1.000000e+00 : f32
    %602 = vector.broadcast %cst_161 : f32 to vector<2x64xf32>
    %603 = arith.addf %601, %602 : vector<2x64xf32>
    %cst_162 = arith.constant 5.000000e-01 : f32
    %604 = vector.broadcast %cst_162 : f32 to vector<2x64xf32>
    %605 = arith.mulf %604, %603 : vector<2x64xf32>
    %606 = vector.extract_strided_slice %584 {offsets = [0, 128], sizes = [2, 64], strides = [1, 1]} : vector<2x192xf32> to vector<2x64xf32>
    %607 = vector.extract_strided_slice %585 {offsets = [0, 128], sizes = [2, 64], strides = [1, 1]} : vector<2x192xf32> to vector<2x64xf32>
    %608 = arith.addf %607, %21 : vector<2x64xf32>
    %609 = arith.mulf %595, %608 : vector<2x64xf32>
    %610 = arith.addf %606, %609 : vector<2x64xf32>
    %611 = math.tanh %610 : vector<2x64xf32>
    %cst_163 = arith.constant 1.000000e+00 : f32
    %612 = vector.broadcast %cst_163 : f32 to vector<2x64xf32>
    %613 = arith.subf %612, %605 : vector<2x64xf32>
    %614 = arith.mulf %613, %611 : vector<2x64xf32>
    %615 = arith.mulf %605, %583 : vector<2x64xf32>
    %616 = arith.addf %614, %615 : vector<2x64xf32>
    %617 = vector.extract_strided_slice %17 {offsets = [36, 0], sizes = [2, 192], strides = [1, 1]} : vector<48x192xf32> to vector<2x192xf32>
    %cst_164 = arith.constant dense<0.000000e+00> : vector<2x192xf32>
    %618 = tpu.matmul %616, %18, %cst_164 {dimension_numbers = #tpu.dot_dimension_numbers<[1], [0], [0], [1], [0, 0, 1, 1], [], []>} : vector<2x64xf32>, vector<64x192xf32>, vector<2x192xf32> -> vector<2x192xf32>
    %619 = vector.extract_strided_slice %617 {offsets = [0, 0], sizes = [2, 64], strides = [1, 1]} : vector<2x192xf32> to vector<2x64xf32>
    %620 = vector.extract_strided_slice %618 {offsets = [0, 0], sizes = [2, 64], strides = [1, 1]} : vector<2x192xf32> to vector<2x64xf32>
    %621 = arith.addf %619, %620 : vector<2x64xf32>
    %cst_165 = arith.constant 5.000000e-01 : f32
    %622 = vector.broadcast %cst_165 : f32 to vector<2x64xf32>
    %623 = arith.mulf %622, %621 : vector<2x64xf32>
    %624 = math.tanh %623 : vector<2x64xf32>
    %cst_166 = arith.constant 1.000000e+00 : f32
    %625 = vector.broadcast %cst_166 : f32 to vector<2x64xf32>
    %626 = arith.addf %624, %625 : vector<2x64xf32>
    %cst_167 = arith.constant 5.000000e-01 : f32
    %627 = vector.broadcast %cst_167 : f32 to vector<2x64xf32>
    %628 = arith.mulf %627, %626 : vector<2x64xf32>
    %629 = vector.extract_strided_slice %617 {offsets = [0, 64], sizes = [2, 64], strides = [1, 1]} : vector<2x192xf32> to vector<2x64xf32>
    %630 = vector.extract_strided_slice %618 {offsets = [0, 64], sizes = [2, 64], strides = [1, 1]} : vector<2x192xf32> to vector<2x64xf32>
    %631 = arith.addf %629, %630 : vector<2x64xf32>
    %cst_168 = arith.constant 5.000000e-01 : f32
    %632 = vector.broadcast %cst_168 : f32 to vector<2x64xf32>
    %633 = arith.mulf %632, %631 : vector<2x64xf32>
    %634 = math.tanh %633 : vector<2x64xf32>
    %cst_169 = arith.constant 1.000000e+00 : f32
    %635 = vector.broadcast %cst_169 : f32 to vector<2x64xf32>
    %636 = arith.addf %634, %635 : vector<2x64xf32>
    %cst_170 = arith.constant 5.000000e-01 : f32
    %637 = vector.broadcast %cst_170 : f32 to vector<2x64xf32>
    %638 = arith.mulf %637, %636 : vector<2x64xf32>
    %639 = vector.extract_strided_slice %617 {offsets = [0, 128], sizes = [2, 64], strides = [1, 1]} : vector<2x192xf32> to vector<2x64xf32>
    %640 = vector.extract_strided_slice %618 {offsets = [0, 128], sizes = [2, 64], strides = [1, 1]} : vector<2x192xf32> to vector<2x64xf32>
    %641 = arith.addf %640, %21 : vector<2x64xf32>
    %642 = arith.mulf %628, %641 : vector<2x64xf32>
    %643 = arith.addf %639, %642 : vector<2x64xf32>
    %644 = math.tanh %643 : vector<2x64xf32>
    %cst_171 = arith.constant 1.000000e+00 : f32
    %645 = vector.broadcast %cst_171 : f32 to vector<2x64xf32>
    %646 = arith.subf %645, %638 : vector<2x64xf32>
    %647 = arith.mulf %646, %644 : vector<2x64xf32>
    %648 = arith.mulf %638, %616 : vector<2x64xf32>
    %649 = arith.addf %647, %648 : vector<2x64xf32>
    %650 = vector.extract_strided_slice %17 {offsets = [38, 0], sizes = [2, 192], strides = [1, 1]} : vector<48x192xf32> to vector<2x192xf32>
    %cst_172 = arith.constant dense<0.000000e+00> : vector<2x192xf32>
    %651 = tpu.matmul %649, %18, %cst_172 {dimension_numbers = #tpu.dot_dimension_numbers<[1], [0], [0], [1], [0, 0, 1, 1], [], []>} : vector<2x64xf32>, vector<64x192xf32>, vector<2x192xf32> -> vector<2x192xf32>
    %652 = vector.extract_strided_slice %650 {offsets = [0, 0], sizes = [2, 64], strides = [1, 1]} : vector<2x192xf32> to vector<2x64xf32>
    %653 = vector.extract_strided_slice %651 {offsets = [0, 0], sizes = [2, 64], strides = [1, 1]} : vector<2x192xf32> to vector<2x64xf32>
    %654 = arith.addf %652, %653 : vector<2x64xf32>
    %cst_173 = arith.constant 5.000000e-01 : f32
    %655 = vector.broadcast %cst_173 : f32 to vector<2x64xf32>
    %656 = arith.mulf %655, %654 : vector<2x64xf32>
    %657 = math.tanh %656 : vector<2x64xf32>
    %cst_174 = arith.constant 1.000000e+00 : f32
    %658 = vector.broadcast %cst_174 : f32 to vector<2x64xf32>
    %659 = arith.addf %657, %658 : vector<2x64xf32>
    %cst_175 = arith.constant 5.000000e-01 : f32
    %660 = vector.broadcast %cst_175 : f32 to vector<2x64xf32>
    %661 = arith.mulf %660, %659 : vector<2x64xf32>
    %662 = vector.extract_strided_slice %650 {offsets = [0, 64], sizes = [2, 64], strides = [1, 1]} : vector<2x192xf32> to vector<2x64xf32>
    %663 = vector.extract_strided_slice %651 {offsets = [0, 64], sizes = [2, 64], strides = [1, 1]} : vector<2x192xf32> to vector<2x64xf32>
    %664 = arith.addf %662, %663 : vector<2x64xf32>
    %cst_176 = arith.constant 5.000000e-01 : f32
    %665 = vector.broadcast %cst_176 : f32 to vector<2x64xf32>
    %666 = arith.mulf %665, %664 : vector<2x64xf32>
    %667 = math.tanh %666 : vector<2x64xf32>
    %cst_177 = arith.constant 1.000000e+00 : f32
    %668 = vector.broadcast %cst_177 : f32 to vector<2x64xf32>
    %669 = arith.addf %667, %668 : vector<2x64xf32>
    %cst_178 = arith.constant 5.000000e-01 : f32
    %670 = vector.broadcast %cst_178 : f32 to vector<2x64xf32>
    %671 = arith.mulf %670, %669 : vector<2x64xf32>
    %672 = vector.extract_strided_slice %650 {offsets = [0, 128], sizes = [2, 64], strides = [1, 1]} : vector<2x192xf32> to vector<2x64xf32>
    %673 = vector.extract_strided_slice %651 {offsets = [0, 128], sizes = [2, 64], strides = [1, 1]} : vector<2x192xf32> to vector<2x64xf32>
    %674 = arith.addf %673, %21 : vector<2x64xf32>
    %675 = arith.mulf %661, %674 : vector<2x64xf32>
    %676 = arith.addf %672, %675 : vector<2x64xf32>
    %677 = math.tanh %676 : vector<2x64xf32>
    %cst_179 = arith.constant 1.000000e+00 : f32
    %678 = vector.broadcast %cst_179 : f32 to vector<2x64xf32>
    %679 = arith.subf %678, %671 : vector<2x64xf32>
    %680 = arith.mulf %679, %677 : vector<2x64xf32>
    %681 = arith.mulf %671, %649 : vector<2x64xf32>
    %682 = arith.addf %680, %681 : vector<2x64xf32>
    %683 = vector.extract_strided_slice %17 {offsets = [40, 0], sizes = [2, 192], strides = [1, 1]} : vector<48x192xf32> to vector<2x192xf32>
    %cst_180 = arith.constant dense<0.000000e+00> : vector<2x192xf32>
    %684 = tpu.matmul %682, %18, %cst_180 {dimension_numbers = #tpu.dot_dimension_numbers<[1], [0], [0], [1], [0, 0, 1, 1], [], []>} : vector<2x64xf32>, vector<64x192xf32>, vector<2x192xf32> -> vector<2x192xf32>
    %685 = vector.extract_strided_slice %683 {offsets = [0, 0], sizes = [2, 64], strides = [1, 1]} : vector<2x192xf32> to vector<2x64xf32>
    %686 = vector.extract_strided_slice %684 {offsets = [0, 0], sizes = [2, 64], strides = [1, 1]} : vector<2x192xf32> to vector<2x64xf32>
    %687 = arith.addf %685, %686 : vector<2x64xf32>
    %cst_181 = arith.constant 5.000000e-01 : f32
    %688 = vector.broadcast %cst_181 : f32 to vector<2x64xf32>
    %689 = arith.mulf %688, %687 : vector<2x64xf32>
    %690 = math.tanh %689 : vector<2x64xf32>
    %cst_182 = arith.constant 1.000000e+00 : f32
    %691 = vector.broadcast %cst_182 : f32 to vector<2x64xf32>
    %692 = arith.addf %690, %691 : vector<2x64xf32>
    %cst_183 = arith.constant 5.000000e-01 : f32
    %693 = vector.broadcast %cst_183 : f32 to vector<2x64xf32>
    %694 = arith.mulf %693, %692 : vector<2x64xf32>
    %695 = vector.extract_strided_slice %683 {offsets = [0, 64], sizes = [2, 64], strides = [1, 1]} : vector<2x192xf32> to vector<2x64xf32>
    %696 = vector.extract_strided_slice %684 {offsets = [0, 64], sizes = [2, 64], strides = [1, 1]} : vector<2x192xf32> to vector<2x64xf32>
    %697 = arith.addf %695, %696 : vector<2x64xf32>
    %cst_184 = arith.constant 5.000000e-01 : f32
    %698 = vector.broadcast %cst_184 : f32 to vector<2x64xf32>
    %699 = arith.mulf %698, %697 : vector<2x64xf32>
    %700 = math.tanh %699 : vector<2x64xf32>
    %cst_185 = arith.constant 1.000000e+00 : f32
    %701 = vector.broadcast %cst_185 : f32 to vector<2x64xf32>
    %702 = arith.addf %700, %701 : vector<2x64xf32>
    %cst_186 = arith.constant 5.000000e-01 : f32
    %703 = vector.broadcast %cst_186 : f32 to vector<2x64xf32>
    %704 = arith.mulf %703, %702 : vector<2x64xf32>
    %705 = vector.extract_strided_slice %683 {offsets = [0, 128], sizes = [2, 64], strides = [1, 1]} : vector<2x192xf32> to vector<2x64xf32>
    %706 = vector.extract_strided_slice %684 {offsets = [0, 128], sizes = [2, 64], strides = [1, 1]} : vector<2x192xf32> to vector<2x64xf32>
    %707 = arith.addf %706, %21 : vector<2x64xf32>
    %708 = arith.mulf %694, %707 : vector<2x64xf32>
    %709 = arith.addf %705, %708 : vector<2x64xf32>
    %710 = math.tanh %709 : vector<2x64xf32>
    %cst_187 = arith.constant 1.000000e+00 : f32
    %711 = vector.broadcast %cst_187 : f32 to vector<2x64xf32>
    %712 = arith.subf %711, %704 : vector<2x64xf32>
    %713 = arith.mulf %712, %710 : vector<2x64xf32>
    %714 = arith.mulf %704, %682 : vector<2x64xf32>
    %715 = arith.addf %713, %714 : vector<2x64xf32>
    %716 = vector.extract_strided_slice %17 {offsets = [42, 0], sizes = [2, 192], strides = [1, 1]} : vector<48x192xf32> to vector<2x192xf32>
    %cst_188 = arith.constant dense<0.000000e+00> : vector<2x192xf32>
    %717 = tpu.matmul %715, %18, %cst_188 {dimension_numbers = #tpu.dot_dimension_numbers<[1], [0], [0], [1], [0, 0, 1, 1], [], []>} : vector<2x64xf32>, vector<64x192xf32>, vector<2x192xf32> -> vector<2x192xf32>
    %718 = vector.extract_strided_slice %716 {offsets = [0, 0], sizes = [2, 64], strides = [1, 1]} : vector<2x192xf32> to vector<2x64xf32>
    %719 = vector.extract_strided_slice %717 {offsets = [0, 0], sizes = [2, 64], strides = [1, 1]} : vector<2x192xf32> to vector<2x64xf32>
    %720 = arith.addf %718, %719 : vector<2x64xf32>
    %cst_189 = arith.constant 5.000000e-01 : f32
    %721 = vector.broadcast %cst_189 : f32 to vector<2x64xf32>
    %722 = arith.mulf %721, %720 : vector<2x64xf32>
    %723 = math.tanh %722 : vector<2x64xf32>
    %cst_190 = arith.constant 1.000000e+00 : f32
    %724 = vector.broadcast %cst_190 : f32 to vector<2x64xf32>
    %725 = arith.addf %723, %724 : vector<2x64xf32>
    %cst_191 = arith.constant 5.000000e-01 : f32
    %726 = vector.broadcast %cst_191 : f32 to vector<2x64xf32>
    %727 = arith.mulf %726, %725 : vector<2x64xf32>
    %728 = vector.extract_strided_slice %716 {offsets = [0, 64], sizes = [2, 64], strides = [1, 1]} : vector<2x192xf32> to vector<2x64xf32>
    %729 = vector.extract_strided_slice %717 {offsets = [0, 64], sizes = [2, 64], strides = [1, 1]} : vector<2x192xf32> to vector<2x64xf32>
    %730 = arith.addf %728, %729 : vector<2x64xf32>
    %cst_192 = arith.constant 5.000000e-01 : f32
    %731 = vector.broadcast %cst_192 : f32 to vector<2x64xf32>
    %732 = arith.mulf %731, %730 : vector<2x64xf32>
    %733 = math.tanh %732 : vector<2x64xf32>
    %cst_193 = arith.constant 1.000000e+00 : f32
    %734 = vector.broadcast %cst_193 : f32 to vector<2x64xf32>
    %735 = arith.addf %733, %734 : vector<2x64xf32>
    %cst_194 = arith.constant 5.000000e-01 : f32
    %736 = vector.broadcast %cst_194 : f32 to vector<2x64xf32>
    %737 = arith.mulf %736, %735 : vector<2x64xf32>
    %738 = vector.extract_strided_slice %716 {offsets = [0, 128], sizes = [2, 64], strides = [1, 1]} : vector<2x192xf32> to vector<2x64xf32>
    %739 = vector.extract_strided_slice %717 {offsets = [0, 128], sizes = [2, 64], strides = [1, 1]} : vector<2x192xf32> to vector<2x64xf32>
    %740 = arith.addf %739, %21 : vector<2x64xf32>
    %741 = arith.mulf %727, %740 : vector<2x64xf32>
    %742 = arith.addf %738, %741 : vector<2x64xf32>
    %743 = math.tanh %742 : vector<2x64xf32>
    %cst_195 = arith.constant 1.000000e+00 : f32
    %744 = vector.broadcast %cst_195 : f32 to vector<2x64xf32>
    %745 = arith.subf %744, %737 : vector<2x64xf32>
    %746 = arith.mulf %745, %743 : vector<2x64xf32>
    %747 = arith.mulf %737, %715 : vector<2x64xf32>
    %748 = arith.addf %746, %747 : vector<2x64xf32>
    %749 = vector.extract_strided_slice %17 {offsets = [44, 0], sizes = [2, 192], strides = [1, 1]} : vector<48x192xf32> to vector<2x192xf32>
    %cst_196 = arith.constant dense<0.000000e+00> : vector<2x192xf32>
    %750 = tpu.matmul %748, %18, %cst_196 {dimension_numbers = #tpu.dot_dimension_numbers<[1], [0], [0], [1], [0, 0, 1, 1], [], []>} : vector<2x64xf32>, vector<64x192xf32>, vector<2x192xf32> -> vector<2x192xf32>
    %751 = vector.extract_strided_slice %749 {offsets = [0, 0], sizes = [2, 64], strides = [1, 1]} : vector<2x192xf32> to vector<2x64xf32>
    %752 = vector.extract_strided_slice %750 {offsets = [0, 0], sizes = [2, 64], strides = [1, 1]} : vector<2x192xf32> to vector<2x64xf32>
    %753 = arith.addf %751, %752 : vector<2x64xf32>
    %cst_197 = arith.constant 5.000000e-01 : f32
    %754 = vector.broadcast %cst_197 : f32 to vector<2x64xf32>
    %755 = arith.mulf %754, %753 : vector<2x64xf32>
    %756 = math.tanh %755 : vector<2x64xf32>
    %cst_198 = arith.constant 1.000000e+00 : f32
    %757 = vector.broadcast %cst_198 : f32 to vector<2x64xf32>
    %758 = arith.addf %756, %757 : vector<2x64xf32>
    %cst_199 = arith.constant 5.000000e-01 : f32
    %759 = vector.broadcast %cst_199 : f32 to vector<2x64xf32>
    %760 = arith.mulf %759, %758 : vector<2x64xf32>
    %761 = vector.extract_strided_slice %749 {offsets = [0, 64], sizes = [2, 64], strides = [1, 1]} : vector<2x192xf32> to vector<2x64xf32>
    %762 = vector.extract_strided_slice %750 {offsets = [0, 64], sizes = [2, 64], strides = [1, 1]} : vector<2x192xf32> to vector<2x64xf32>
    %763 = arith.addf %761, %762 : vector<2x64xf32>
    %cst_200 = arith.constant 5.000000e-01 : f32
    %764 = vector.broadcast %cst_200 : f32 to vector<2x64xf32>
    %765 = arith.mulf %764, %763 : vector<2x64xf32>
    %766 = math.tanh %765 : vector<2x64xf32>
    %cst_201 = arith.constant 1.000000e+00 : f32
    %767 = vector.broadcast %cst_201 : f32 to vector<2x64xf32>
    %768 = arith.addf %766, %767 : vector<2x64xf32>
    %cst_202 = arith.constant 5.000000e-01 : f32
    %769 = vector.broadcast %cst_202 : f32 to vector<2x64xf32>
    %770 = arith.mulf %769, %768 : vector<2x64xf32>
    %771 = vector.extract_strided_slice %749 {offsets = [0, 128], sizes = [2, 64], strides = [1, 1]} : vector<2x192xf32> to vector<2x64xf32>
    %772 = vector.extract_strided_slice %750 {offsets = [0, 128], sizes = [2, 64], strides = [1, 1]} : vector<2x192xf32> to vector<2x64xf32>
    %773 = arith.addf %772, %21 : vector<2x64xf32>
    %774 = arith.mulf %760, %773 : vector<2x64xf32>
    %775 = arith.addf %771, %774 : vector<2x64xf32>
    %776 = math.tanh %775 : vector<2x64xf32>
    %cst_203 = arith.constant 1.000000e+00 : f32
    %777 = vector.broadcast %cst_203 : f32 to vector<2x64xf32>
    %778 = arith.subf %777, %770 : vector<2x64xf32>
    %779 = arith.mulf %778, %776 : vector<2x64xf32>
    %780 = arith.mulf %770, %748 : vector<2x64xf32>
    %781 = arith.addf %779, %780 : vector<2x64xf32>
    %782 = vector.extract_strided_slice %17 {offsets = [46, 0], sizes = [2, 192], strides = [1, 1]} : vector<48x192xf32> to vector<2x192xf32>
    %cst_204 = arith.constant dense<0.000000e+00> : vector<2x192xf32>
    %783 = tpu.matmul %781, %18, %cst_204 {dimension_numbers = #tpu.dot_dimension_numbers<[1], [0], [0], [1], [0, 0, 1, 1], [], []>} : vector<2x64xf32>, vector<64x192xf32>, vector<2x192xf32> -> vector<2x192xf32>
    %784 = vector.extract_strided_slice %782 {offsets = [0, 0], sizes = [2, 64], strides = [1, 1]} : vector<2x192xf32> to vector<2x64xf32>
    %785 = vector.extract_strided_slice %783 {offsets = [0, 0], sizes = [2, 64], strides = [1, 1]} : vector<2x192xf32> to vector<2x64xf32>
    %786 = arith.addf %784, %785 : vector<2x64xf32>
    %cst_205 = arith.constant 5.000000e-01 : f32
    %787 = vector.broadcast %cst_205 : f32 to vector<2x64xf32>
    %788 = arith.mulf %787, %786 : vector<2x64xf32>
    %789 = math.tanh %788 : vector<2x64xf32>
    %cst_206 = arith.constant 1.000000e+00 : f32
    %790 = vector.broadcast %cst_206 : f32 to vector<2x64xf32>
    %791 = arith.addf %789, %790 : vector<2x64xf32>
    %cst_207 = arith.constant 5.000000e-01 : f32
    %792 = vector.broadcast %cst_207 : f32 to vector<2x64xf32>
    %793 = arith.mulf %792, %791 : vector<2x64xf32>
    %794 = vector.extract_strided_slice %782 {offsets = [0, 64], sizes = [2, 64], strides = [1, 1]} : vector<2x192xf32> to vector<2x64xf32>
    %795 = vector.extract_strided_slice %783 {offsets = [0, 64], sizes = [2, 64], strides = [1, 1]} : vector<2x192xf32> to vector<2x64xf32>
    %796 = arith.addf %794, %795 : vector<2x64xf32>
    %cst_208 = arith.constant 5.000000e-01 : f32
    %797 = vector.broadcast %cst_208 : f32 to vector<2x64xf32>
    %798 = arith.mulf %797, %796 : vector<2x64xf32>
    %799 = math.tanh %798 : vector<2x64xf32>
    %cst_209 = arith.constant 1.000000e+00 : f32
    %800 = vector.broadcast %cst_209 : f32 to vector<2x64xf32>
    %801 = arith.addf %799, %800 : vector<2x64xf32>
    %cst_210 = arith.constant 5.000000e-01 : f32
    %802 = vector.broadcast %cst_210 : f32 to vector<2x64xf32>
    %803 = arith.mulf %802, %801 : vector<2x64xf32>
    %804 = vector.extract_strided_slice %782 {offsets = [0, 128], sizes = [2, 64], strides = [1, 1]} : vector<2x192xf32> to vector<2x64xf32>
    %805 = vector.extract_strided_slice %783 {offsets = [0, 128], sizes = [2, 64], strides = [1, 1]} : vector<2x192xf32> to vector<2x64xf32>
    %806 = arith.addf %805, %21 : vector<2x64xf32>
    %807 = arith.mulf %793, %806 : vector<2x64xf32>
    %808 = arith.addf %804, %807 : vector<2x64xf32>
    %809 = math.tanh %808 : vector<2x64xf32>
    %cst_211 = arith.constant 1.000000e+00 : f32
    %810 = vector.broadcast %cst_211 : f32 to vector<2x64xf32>
    %811 = arith.subf %810, %803 : vector<2x64xf32>
    %812 = arith.mulf %811, %809 : vector<2x64xf32>
    %813 = arith.mulf %803, %781 : vector<2x64xf32>
    %814 = arith.addf %812, %813 : vector<2x64xf32>
    %c0_212 = arith.constant 0 : index
    %c0_213 = arith.constant 0 : index
    %815 = vector.load %arg1[%c0_212, %c0_213] : memref<2x72xf32, #tpu.memory_space<vmem>>, vector<2x72xf32>
    %c0_214 = arith.constant 0 : index
    %c0_215 = arith.constant 0 : index
    %816 = vector.load %arg11[%c0_214, %c0_215] : memref<72x128xf32, #tpu.memory_space<vmem>>, vector<72x128xf32>
    %cst_216 = arith.constant dense<0.000000e+00> : vector<2x128xf32>
    %817 = tpu.matmul %815, %816, %cst_216 {dimension_numbers = #tpu.dot_dimension_numbers<[1], [0], [0], [1], [0, 0, 1, 1], [], []>} : vector<2x72xf32>, vector<72x128xf32>, vector<2x128xf32> -> vector<2x128xf32>
    %c0_217 = arith.constant 0 : index
    %c0_218 = arith.constant 0 : index
    %818 = vector.load %arg12[%c0_217, %c0_218] : memref<1x128xf32, #tpu.memory_space<vmem>>, vector<1x128xf32>
    %819 = vector.broadcast %818 : vector<1x128xf32> to vector<2x128xf32>
    %820 = arith.addf %817, %819 : vector<2x128xf32>
    %821 = math.tanh %820 : vector<2x128xf32>
    %c0_219 = arith.constant 0 : index
    %c0_220 = arith.constant 0 : index
    %822 = vector.load %arg13[%c0_219, %c0_220] : memref<128x128xf32, #tpu.memory_space<vmem>>, vector<128x128xf32>
    %cst_221 = arith.constant dense<0.000000e+00> : vector<2x128xf32>
    %823 = tpu.matmul %821, %822, %cst_221 {dimension_numbers = #tpu.dot_dimension_numbers<[1], [0], [0], [1], [0, 0, 1, 1], [], []>} : vector<2x128xf32>, vector<128x128xf32>, vector<2x128xf32> -> vector<2x128xf32>
    %c0_222 = arith.constant 0 : index
    %c0_223 = arith.constant 0 : index
    %824 = vector.load %arg14[%c0_222, %c0_223] : memref<1x128xf32, #tpu.memory_space<vmem>>, vector<1x128xf32>
    %825 = vector.broadcast %824 : vector<1x128xf32> to vector<2x128xf32>
    %826 = arith.addf %823, %825 : vector<2x128xf32>
    %827 = math.tanh %826 : vector<2x128xf32>
    %c0_224 = arith.constant 0 : index
    %c0_225 = arith.constant 0 : index
    %828 = vector.load %arg15[%c0_224, %c0_225] : memref<128x64xf32, #tpu.memory_space<vmem>>, vector<128x64xf32>
    %cst_226 = arith.constant dense<0.000000e+00> : vector<2x64xf32>
    %829 = tpu.matmul %827, %828, %cst_226 {dimension_numbers = #tpu.dot_dimension_numbers<[1], [0], [0], [1], [0, 0, 1, 1], [], []>} : vector<2x128xf32>, vector<128x64xf32>, vector<2x64xf32> -> vector<2x64xf32>
    %c0_227 = arith.constant 0 : index
    %c0_228 = arith.constant 0 : index
    %830 = vector.load %arg16[%c0_227, %c0_228] : memref<1x64xf32, #tpu.memory_space<vmem>>, vector<1x64xf32>
    %831 = vector.broadcast %830 : vector<1x64xf32> to vector<2x64xf32>
    %832 = arith.addf %829, %831 : vector<2x64xf32>
    %833 = math.tanh %832 : vector<2x64xf32>
    %834 = math.tanh %814 : vector<2x64xf32>
    %835 = math.tanh %833 : vector<2x64xf32>
    %836 = tpu.concatenate %834, %835 in 1 : vector<2x64xf32>, vector<2x64xf32> -> vector<2x128xf32>
    %c0_229 = arith.constant 0 : index
    %c0_230 = arith.constant 0 : index
    %837 = vector.load %arg17[%c0_229, %c0_230] : memref<128x256xf32, #tpu.memory_space<vmem>>, vector<128x256xf32>
    %cst_231 = arith.constant dense<0.000000e+00> : vector<2x256xf32>
    %838 = tpu.matmul %836, %837, %cst_231 {dimension_numbers = #tpu.dot_dimension_numbers<[1], [0], [0], [1], [0, 0, 1, 1], [], []>} : vector<2x128xf32>, vector<128x256xf32>, vector<2x256xf32> -> vector<2x256xf32>
    %c0_232 = arith.constant 0 : index
    %c0_233 = arith.constant 0 : index
    %839 = vector.load %arg19[%c0_232, %c0_233] : memref<1x256xf32, #tpu.memory_space<vmem>>, vector<1x256xf32>
    %840 = vector.broadcast %839 : vector<1x256xf32> to vector<2x256xf32>
    %841 = arith.addf %838, %840 : vector<2x256xf32>
    %c0_234 = arith.constant 0 : index
    %c0_235 = arith.constant 0 : index
    %842 = vector.load %arg2[%c0_234, %c0_235] : memref<2x6xf32, #tpu.memory_space<vmem>>, vector<2x6xf32>
    %843 = math.tanh %842 : vector<2x6xf32>
    %c0_236 = arith.constant 0 : index
    %c0_237 = arith.constant 0 : index
    %844 = vector.load %arg18[%c0_236, %c0_237] : memref<6x256xf32, #tpu.memory_space<vmem>>, vector<6x256xf32>
    %845 = vector.extract_strided_slice %843 {offsets = [0, 0], sizes = [2, 1], strides = [1, 1]} : vector<2x6xf32> to vector<2x1xf32>
    %846 = vector.extract_strided_slice %844 {offsets = [0, 0], sizes = [1, 256], strides = [1, 1]} : vector<6x256xf32> to vector<1x256xf32>
    %847 = vector.broadcast %845 : vector<2x1xf32> to vector<2x256xf32>
    %848 = vector.broadcast %846 : vector<1x256xf32> to vector<2x256xf32>
    %849 = arith.mulf %847, %848 : vector<2x256xf32>
    %850 = arith.addf %841, %849 : vector<2x256xf32>
    %851 = vector.extract_strided_slice %843 {offsets = [0, 1], sizes = [2, 1], strides = [1, 1]} : vector<2x6xf32> to vector<2x1xf32>
    %852 = vector.extract_strided_slice %844 {offsets = [1, 0], sizes = [1, 256], strides = [1, 1]} : vector<6x256xf32> to vector<1x256xf32>
    %853 = vector.broadcast %851 : vector<2x1xf32> to vector<2x256xf32>
    %854 = vector.broadcast %852 : vector<1x256xf32> to vector<2x256xf32>
    %855 = arith.mulf %853, %854 : vector<2x256xf32>
    %856 = arith.addf %850, %855 : vector<2x256xf32>
    %857 = vector.extract_strided_slice %843 {offsets = [0, 2], sizes = [2, 1], strides = [1, 1]} : vector<2x6xf32> to vector<2x1xf32>
    %858 = vector.extract_strided_slice %844 {offsets = [2, 0], sizes = [1, 256], strides = [1, 1]} : vector<6x256xf32> to vector<1x256xf32>
    %859 = vector.broadcast %857 : vector<2x1xf32> to vector<2x256xf32>
    %860 = vector.broadcast %858 : vector<1x256xf32> to vector<2x256xf32>
    %861 = arith.mulf %859, %860 : vector<2x256xf32>
    %862 = arith.addf %856, %861 : vector<2x256xf32>
    %863 = vector.extract_strided_slice %843 {offsets = [0, 3], sizes = [2, 1], strides = [1, 1]} : vector<2x6xf32> to vector<2x1xf32>
    %864 = vector.extract_strided_slice %844 {offsets = [3, 0], sizes = [1, 256], strides = [1, 1]} : vector<6x256xf32> to vector<1x256xf32>
    %865 = vector.broadcast %863 : vector<2x1xf32> to vector<2x256xf32>
    %866 = vector.broadcast %864 : vector<1x256xf32> to vector<2x256xf32>
    %867 = arith.mulf %865, %866 : vector<2x256xf32>
    %868 = arith.addf %862, %867 : vector<2x256xf32>
    %869 = vector.extract_strided_slice %843 {offsets = [0, 4], sizes = [2, 1], strides = [1, 1]} : vector<2x6xf32> to vector<2x1xf32>
    %870 = vector.extract_strided_slice %844 {offsets = [4, 0], sizes = [1, 256], strides = [1, 1]} : vector<6x256xf32> to vector<1x256xf32>
    %871 = vector.broadcast %869 : vector<2x1xf32> to vector<2x256xf32>
    %872 = vector.broadcast %870 : vector<1x256xf32> to vector<2x256xf32>
    %873 = arith.mulf %871, %872 : vector<2x256xf32>
    %874 = arith.addf %868, %873 : vector<2x256xf32>
    %875 = vector.extract_strided_slice %843 {offsets = [0, 5], sizes = [2, 1], strides = [1, 1]} : vector<2x6xf32> to vector<2x1xf32>
    %876 = vector.extract_strided_slice %844 {offsets = [5, 0], sizes = [1, 256], strides = [1, 1]} : vector<6x256xf32> to vector<1x256xf32>
    %877 = vector.broadcast %875 : vector<2x1xf32> to vector<2x256xf32>
    %878 = vector.broadcast %876 : vector<1x256xf32> to vector<2x256xf32>
    %879 = arith.mulf %877, %878 : vector<2x256xf32>
    %880 = arith.addf %874, %879 : vector<2x256xf32>
    %881 = math.tanh %880 : vector<2x256xf32>
    %c0_238 = arith.constant 0 : index
    %c0_239 = arith.constant 0 : index
    %882 = vector.load %arg20[%c0_238, %c0_239] : memref<256x128xf32, #tpu.memory_space<vmem>>, vector<256x128xf32>
    %cst_240 = arith.constant dense<0.000000e+00> : vector<2x128xf32>
    %883 = tpu.matmul %881, %882, %cst_240 {dimension_numbers = #tpu.dot_dimension_numbers<[1], [0], [0], [1], [0, 0, 1, 1], [], []>} : vector<2x256xf32>, vector<256x128xf32>, vector<2x128xf32> -> vector<2x128xf32>
    %c0_241 = arith.constant 0 : index
    %c0_242 = arith.constant 0 : index
    %884 = vector.load %arg21[%c0_241, %c0_242] : memref<1x128xf32, #tpu.memory_space<vmem>>, vector<1x128xf32>
    %885 = vector.broadcast %884 : vector<1x128xf32> to vector<2x128xf32>
    %886 = arith.addf %883, %885 : vector<2x128xf32>
    %887 = math.tanh %886 : vector<2x128xf32>
    %c0_243 = arith.constant 0 : index
    %c0_244 = arith.constant 0 : index
    %888 = vector.load %arg22[%c0_243, %c0_244] : memref<1x128xf32, #tpu.memory_space<vmem>>, vector<1x128xf32>
    %889 = vector.broadcast %888 : vector<1x128xf32> to vector<2x128xf32>
    %890 = arith.mulf %887, %889 : vector<2x128xf32>
    %cst_245 = arith.constant dense<0.000000e+00> : vector<2xf32>
    %891 = vector.multi_reduction <add>, %890, %cst_245 [1] : vector<2x128xf32> to vector<2xf32>
    %892 = vector.shape_cast %891 : vector<2xf32> to vector<2x1xf32>
    %c0_246 = arith.constant 0 : index
    %c0_247 = arith.constant 0 : index
    %893 = vector.load %arg23[%c0_246, %c0_247] : memref<1x1xf32, #tpu.memory_space<vmem>>, vector<1x1xf32>
    %894 = vector.broadcast %893 : vector<1x1xf32> to vector<2x1xf32>
    %895 = arith.addf %892, %894 : vector<2x1xf32>
    %c0_248 = arith.constant 0 : index
    %c0_249 = arith.constant 0 : index
    %896 = vector.load %arg24[%c0_248, %c0_249] : memref<2x1xf32, #tpu.memory_space<vmem>>, vector<2x1xf32>
    tpu.vector_store %arg24[%c0_248, %c0_249], %895 {strides = array<i32>} : memref<2x1xf32, #tpu.memory_space<vmem>>, vector<2x1xf32>,
    return
  }
}

</mosaic_0001>

<llo_original>
// kernel: tpu_custom_call.1
$region0: #{tpu_custom_call.1}
  #allocation0 [shape = 'u32[]', space=smem, size = 0x4, offset = 0x4, fixed_abs, tag = 'smem constant byte address 0x4 - core index']
  #allocation1 [shape = 'u32[144,128]{1,0:T(1,128)}', space=vmem, size = 0x12000, scoped, tag = 'internal scratch']
  #allocation2 [shape = 'f32[1,1]{1,0:T(1,128)S(1)}', space=vmem, size = 0x200, scoped, tag = 'scoped memory for tpu_custom_call.1']
  %s0 = inlined_call_operand.vmem [shape: f32[48,8], index: 0, kind: input, shape index: {}]
  %s1 = inlined_call_operand.vmem [shape: f32[2,72], index: 1, kind: input, shape index: {}]
  %s2 = inlined_call_operand.vmem [shape: f32[2,6], index: 2, kind: input, shape index: {}]
  %s3 = inlined_call_operand.hbm [shape: f32[8,128], index: 3, kind: input, shape index: {}]
  %s4 = inlined_call_operand.hbm [shape: f32[1,128], index: 4, kind: input, shape index: {}]
  %s5 = inlined_call_operand.hbm [shape: f32[128,128], index: 5, kind: input, shape index: {}]
  %s6 = inlined_call_operand.hbm [shape: f32[1,128], index: 6, kind: input, shape index: {}]
  %s7 = inlined_call_operand.vmem [shape: f32[128,192], index: 7, kind: input, shape index: {}]
  %s8 = inlined_call_operand.vmem [shape: f32[1,192], index: 8, kind: input, shape index: {}]
  %s9 = inlined_call_operand.hbm [shape: f32[64,192], index: 9, kind: input, shape index: {}]
  %s10 = inlined_call_operand.vmem [shape: f32[1,64], index: 10, kind: input, shape index: {}]
  %s11 = inlined_call_operand.hbm [shape: f32[72,128], index: 11, kind: input, shape index: {}]
  %s12 = inlined_call_operand.vmem [shape: f32[1,128], index: 12, kind: input, shape index: {}]
  %s13 = inlined_call_operand.hbm [shape: f32[128,128], index: 13, kind: input, shape index: {}]
  %s14 = inlined_call_operand.vmem [shape: f32[1,128], index: 14, kind: input, shape index: {}]
  %s15 = inlined_call_operand.vmem [shape: f32[128,64], index: 15, kind: input, shape index: {}]
  %s16 = inlined_call_operand.vmem [shape: f32[1,64], index: 16, kind: input, shape index: {}]
  %s17 = inlined_call_operand.vmem [shape: f32[128,256], index: 17, kind: input, shape index: {}]
  %s18 = inlined_call_operand.vmem [shape: f32[6,256], index: 18, kind: input, shape index: {}]
  %s19 = inlined_call_operand.vmem [shape: f32[1,256], index: 19, kind: input, shape index: {}]
  %s20 = inlined_call_operand.vmem [shape: f32[256,128], index: 20, kind: input, shape index: {}]
  %s21 = inlined_call_operand.vmem [shape: f32[1,128], index: 21, kind: input, shape index: {}]
  %s22 = inlined_call_operand.vmem [shape: f32[1,128], index: 22, kind: input, shape index: {}]
  %s23 = inlined_call_operand.<no memory space> [shape: f32[1,1], index: 23, kind: input, shape index: {}]
  %s24 = inlined_call_operand.vmem [shape: f32[2,1], index: 24, kind: output, shape index: {}]
  %s25 = sld [smem:[#allocation0]]
  $region134: #{tpu_custom_call.1} parent=0
    _
  %s27 = ssub.s32 1, %s25
  %s28 = scalar_select 0, %s27, %s25
  %v29 = vstv %s23
  %30 = vst [vmem:[#allocation2] sm:$0x1] %v29
  $region1: #{tpu_custom_call.1} parent=0
    #allocation3 [shape = 'u8[4096]{0}', space=vmem, size = 0x1000, scoped, tag = 'input window, operand 3, single buffered']
    #allocation4 [shape = 's32[1]{0}', space=sflag, size = 0x4, scoped, tag = 'scoped memory for tpu_custom_call.1']
    #allocation5 [shape = 'u8[512]{0}', space=vmem, size = 0x400, scoped, tag = 'input window, operand 4, single buffered']
    #allocation6 [shape = 's32[1]{0}', space=sflag, size = 0x4, scoped, tag = 'scoped memory for tpu_custom_call.1']
    #allocation7 [shape = 'u8[65536]{0}', space=vmem, size = 0x10000, scoped, tag = 'input window, operand 5, single buffered']
    #allocation8 [shape = 'u8[512]{0}', space=vmem, size = 0x400, scoped, tag = 'input window, operand 6, single buffered']
    #allocation9 [shape = 's32[1]{0}', space=sflag, size = 0x4, scoped, tag = 'scoped memory for tpu_custom_call.1']
    #allocation10 [shape = 'u8[65536]{0}', space=vmem, size = 0x10000, scoped, tag = 'input window, operand 9, single buffered']
    #allocation11 [shape = 'u8[36864]{0}', space=vmem, size = 0x9000, scoped, tag = 'input window, operand 11, single buffered']
    #allocation12 [shape = 's32[1]{0}', space=sflag, size = 0x4, scoped, tag = 'scoped memory for tpu_custom_call.1']
    #allocation13 [shape = 'u8[65536]{0}', space=vmem, size = 0x10000, scoped, tag = 'input window, operand 13, single buffered']
    %31 = vsyncpa [#allocation4], 0
    %32 = vsyncpa [#allocation6], 0
    %33 = vsyncpa [#allocation9], 0
    %34 = vsyncpa [#allocation12], 0
    // Predicated region
    $region2: #{tpu_custom_call.1} parent=1 // pred_check
      _
    $region3: #{tpu_custom_call.1} parent=1 // pred_check_branch
      %36 = sbr.rel (0) target = $region5
    $region4: #{tpu_custom_call.1} parent=1 // pred_region
      _
    $region5: #{tpu_custom_call.1} parent=1 // pred_fallthru
      _
    // Predicated region
    $region6: #{tpu_custom_call.1} parent=1 // pred_check
      _
    $region7: #{tpu_custom_call.1} parent=1 // pred_check_branch
      %38 = sbr.rel (0) target = $region9
    $region8: #{tpu_custom_call.1} parent=1 // pred_region
      _
    $region9: #{tpu_custom_call.1} parent=1 // pred_fallthru
      _
    // Predicated region
    $region10: #{tpu_custom_call.1} parent=1 // pred_check
      _
    $region11: #{tpu_custom_call.1} parent=1 // pred_check_branch
      %40 = sbr.rel (0) target = $region13
    $region12: #{tpu_custom_call.1} parent=1 // pred_region
      _
    $region13: #{tpu_custom_call.1} parent=1 // pred_fallthru
      _
    // Predicated region
    $region14: #{tpu_custom_call.1} parent=1 // pred_check
      _
    $region15: #{tpu_custom_call.1} parent=1 // pred_check_branch
      %42 = sbr.rel (0) target = $region17
    $region16: #{tpu_custom_call.1} parent=1 // pred_region
      %s44 = ssub.s32 128, 128
      %45 = vsyncadd [#allocation4], %s44
      %s47 = sshll.u32 [#allocation3], 4
      %s48 = int_to_ptr.vmem [resolvable:$true] %s47
      %50 = dma.hbm_to_vmem [thread:$0]  %s3, 128, %s48, [#allocation4]
    $region17: #{tpu_custom_call.1} parent=1 // pred_fallthru
      _
    // Predicated region
    $region18: #{tpu_custom_call.1} parent=1 // pred_check
      _
    $region19: #{tpu_custom_call.1} parent=1 // pred_check_branch
      %52 = sbr.rel (0) target = $region21
    $region20: #{tpu_custom_call.1} parent=1 // pred_region
      %s54 = ssub.s32 16, 16
      %55 = vsyncadd [#allocation6], %s54
      %s57 = sshll.u32 [#allocation5], 4
      %s58 = int_to_ptr.vmem [resolvable:$true] %s57
      %60 = dma.hbm_to_vmem [thread:$0]  %s4, 16, %s58, [#allocation6]
    $region21: #{tpu_custom_call.1} parent=1 // pred_fallthru
      _
    // Predicated region
    $region22: #{tpu_custom_call.1} parent=1 // pred_check
      _
    $region23: #{tpu_custom_call.1} parent=1 // pred_check_branch
      %62 = sbr.rel (0) target = $region25
    $region24: #{tpu_custom_call.1} parent=1 // pred_region
      %s64 = ssub.s32 2048, 2048
      %65 = vsyncadd [#allocation6], %s64
      %s66 = sshll.u32 [#allocation7], 4
      %s67 = int_to_ptr.vmem [resolvable:$true] %s66
      %72 = dma.hbm_to_vmem [thread:$0]  %s5, 2048, %s67, [#allocation6], 128, 128, 8
    $region25: #{tpu_custom_call.1} parent=1 // pred_fallthru
      _
    // Predicated region
    $region26: #{tpu_custom_call.1} parent=1 // pred_check
      _
    $region27: #{tpu_custom_call.1} parent=1 // pred_check_branch
      %74 = sbr.rel (0) target = $region29
    $region28: #{tpu_custom_call.1} parent=1 // pred_region
      %s76 = ssub.s32 16, 16
      %77 = vsyncadd [#allocation9], %s76
      %s79 = sshll.u32 [#allocation8], 4
      %s80 = int_to_ptr.vmem [resolvable:$true] %s79
      %82 = dma.hbm_to_vmem [thread:$0]  %s6, 16, %s80, [#allocation9]
    $region29: #{tpu_custom_call.1} parent=1 // pred_fallthru
      _
    // Predicated region
    $region30: #{tpu_custom_call.1} parent=1 // pred_check
      _
    $region31: #{tpu_custom_call.1} parent=1 // pred_check_branch
      %84 = sbr.rel (0) target = $region33
    $region32: #{tpu_custom_call.1} parent=1 // pred_region
      _
    $region33: #{tpu_custom_call.1} parent=1 // pred_fallthru
      _
    // Predicated region
    $region34: #{tpu_custom_call.1} parent=1 // pred_check
      _
    $region35: #{tpu_custom_call.1} parent=1 // pred_check_branch
      %86 = sbr.rel (0) target = $region37
    $region36: #{tpu_custom_call.1} parent=1 // pred_region
      _
    $region37: #{tpu_custom_call.1} parent=1 // pred_fallthru
      _
    // Predicated region
    $region38: #{tpu_custom_call.1} parent=1 // pred_check
      _
    $region39: #{tpu_custom_call.1} parent=1 // pred_check_branch
      %88 = sbr.rel (0) target = $region41
    $region40: #{tpu_custom_call.1} parent=1 // pred_region
      %s90 = ssub.s32 2048, 2048
      %91 = vsyncadd [#allocation9], %s90
      %s92 = sshll.u32 [#allocation10], 4
      %s93 = int_to_ptr.vmem [resolvable:$true] %s92
      %98 = dma.hbm_to_vmem [thread:$0]  %s9, 2048, %s93, [#allocation9], 256, 256, 16
    $region41: #{tpu_custom_call.1} parent=1 // pred_fallthru
      _
    // Predicated region
    $region42: #{tpu_custom_call.1} parent=1 // pred_check
      _
    $region43: #{tpu_custom_call.1} parent=1 // pred_check_branch
      %100 = sbr.rel (0) target = $region45
    $region44: #{tpu_custom_call.1} parent=1 // pred_region
      _
    $region45: #{tpu_custom_call.1} parent=1 // pred_fallthru
      _
    // Predicated region
    $region46: #{tpu_custom_call.1} parent=1 // pred_check
      _
    $region47: #{tpu_custom_call.1} parent=1 // pred_check_branch
      %102 = sbr.rel (0) target = $region49
    $region48: #{tpu_custom_call.1} parent=1 // pred_region
      %s104 = ssub.s32 1152, 1152
      %105 = vsyncadd [#allocation12], %s104
      %s106 = sshll.u32 [#allocation11], 4
      %s107 = int_to_ptr.vmem [resolvable:$true] %s106
      %112 = dma.hbm_to_vmem [thread:$0]  %s11, 1152, %s107, [#allocation12], 128, 128, 8
    $region49: #{tpu_custom_call.1} parent=1 // pred_fallthru
      _
    // Predicated region
    $region50: #{tpu_custom_call.1} parent=1 // pred_check
      _
    $region51: #{tpu_custom_call.1} parent=1 // pred_check_branch
      %114 = sbr.rel (0) target = $region53
    $region52: #{tpu_custom_call.1} parent=1 // pred_region
      _
    $region53: #{tpu_custom_call.1} parent=1 // pred_fallthru
      _
    // Predicated region
    $region54: #{tpu_custom_call.1} parent=1 // pred_check
      _
    $region55: #{tpu_custom_call.1} parent=1 // pred_check_branch
      %116 = sbr.rel (0) target = $region57
    $region56: #{tpu_custom_call.1} parent=1 // pred_region
      %s118 = ssub.s32 2048, 2048
      %119 = vsyncadd [#allocation12], %s118
      %s120 = sshll.u32 [#allocation13], 4
      %s121 = int_to_ptr.vmem [resolvable:$true] %s120
      %126 = dma.hbm_to_vmem [thread:$0]  %s13, 2048, %s121, [#allocation12], 128, 128, 8
    $region57: #{tpu_custom_call.1} parent=1 // pred_fallthru
      _
    // Predicated region
    $region58: #{tpu_custom_call.1} parent=1 // pred_check
      _
    $region59: #{tpu_custom_call.1} parent=1 // pred_check_branch
      %128 = sbr.rel (0) target = $region61
    $region60: #{tpu_custom_call.1} parent=1 // pred_region
      _
    $region61: #{tpu_custom_call.1} parent=1 // pred_fallthru
      _
    // Predicated region
    $region62: #{tpu_custom_call.1} parent=1 // pred_check
      _
    $region63: #{tpu_custom_call.1} parent=1 // pred_check_branch
      %130 = sbr.rel (0) target = $region65
    $region64: #{tpu_custom_call.1} parent=1 // pred_region
      _
    $region65: #{tpu_custom_call.1} parent=1 // pred_fallthru
      _
    // Predicated region
    $region66: #{tpu_custom_call.1} parent=1 // pred_check
      _
    $region67: #{tpu_custom_call.1} parent=1 // pred_check_branch
      %132 = sbr.rel (0) target = $region69
    $region68: #{tpu_custom_call.1} parent=1 // pred_region
      _
    $region69: #{tpu_custom_call.1} parent=1 // pred_fallthru
      _
    // Predicated region
    $region70: #{tpu_custom_call.1} parent=1 // pred_check
      _
    $region71: #{tpu_custom_call.1} parent=1 // pred_check_branch
      %134 = sbr.rel (0) target = $region73
    $region72: #{tpu_custom_call.1} parent=1 // pred_region
      _
    $region73: #{tpu_custom_call.1} parent=1 // pred_fallthru
      _
    // Predicated region
    $region74: #{tpu_custom_call.1} parent=1 // pred_check
      _
    $region75: #{tpu_custom_call.1} parent=1 // pred_check_branch
      %136 = sbr.rel (0) target = $region77
    $region76: #{tpu_custom_call.1} parent=1 // pred_region
      _
    $region77: #{tpu_custom_call.1} parent=1 // pred_fallthru
      _
    // Predicated region
    $region78: #{tpu_custom_call.1} parent=1 // pred_check
      _
    $region79: #{tpu_custom_call.1} parent=1 // pred_check_branch
      %138 = sbr.rel (0) target = $region81
    $region80: #{tpu_custom_call.1} parent=1 // pred_region
      _
    $region81: #{tpu_custom_call.1} parent=1 // pred_fallthru
      _
    // Predicated region
    $region82: #{tpu_custom_call.1} parent=1 // pred_check
      _
    $region83: #{tpu_custom_call.1} parent=1 // pred_check_branch
      %140 = sbr.rel (0) target = $region85
    $region84: #{tpu_custom_call.1} parent=1 // pred_region
      _
    $region85: #{tpu_custom_call.1} parent=1 // pred_fallthru
      _
    // Predicated region
    $region86: #{tpu_custom_call.1} parent=1 // pred_check
      _
    $region87: #{tpu_custom_call.1} parent=1 // pred_check_branch
      %142 = sbr.rel (0) target = $region89
    $region88: #{tpu_custom_call.1} parent=1 // pred_region
      _
    $region89: #{tpu_custom_call.1} parent=1 // pred_fallthru
      _
    // Predicated region
    $region90: #{tpu_custom_call.1} parent=1 // pred_check
      _
    $region91: #{tpu_custom_call.1} parent=1 // pred_check_branch
      %144 = sbr.rel (0) target = $region93
    $region92: #{tpu_custom_call.1} parent=1 // pred_region
      _
    $region93: #{tpu_custom_call.1} parent=1 // pred_fallthru
      _
    // Predicated region
    $region94: #{tpu_custom_call.1} parent=1 // pred_check
      _
    $region95: #{tpu_custom_call.1} parent=1 // pred_check_branch
      %146 = sbr.rel (0) target = $region97
    $region96: #{tpu_custom_call.1} parent=1 // pred_region
      _
    $region97: #{tpu_custom_call.1} parent=1 // pred_fallthru
      _
    // Predicated region
    $region98: #{tpu_custom_call.1} parent=1 // pred_check
      _
    $region99: #{tpu_custom_call.1} parent=1 // pred_check_branch
      %148 = sbr.rel (0) target = $region101
    $region100: #{tpu_custom_call.1} parent=1 // pred_region
      %149 = dma.done [#allocation4], 128
    $region101: #{tpu_custom_call.1} parent=1 // pred_fallthru
      _
    // Predicated region
    $region102: #{tpu_custom_call.1} parent=1 // pred_check
      _
    $region103: #{tpu_custom_call.1} parent=1 // pred_check_branch
      %151 = sbr.rel (0) target = $region105
    $region104: #{tpu_custom_call.1} parent=1 // pred_region
      %152 = dma.done [#allocation6], 16
    $region105: #{tpu_custom_call.1} parent=1 // pred_fallthru
      _
    // Predicated region
    $region106: #{tpu_custom_call.1} parent=1 // pred_check
      _
    $region107: #{tpu_custom_call.1} parent=1 // pred_check_branch
      %154 = sbr.rel (0) target = $region109
    $region108: #{tpu_custom_call.1} parent=1 // pred_region
      %155 = dma.done [#allocation6], 2048
    $region109: #{tpu_custom_call.1} parent=1 // pred_fallthru
      _
    // Predicated region
    $region110: #{tpu_custom_call.1} parent=1 // pred_check
      _
    $region111: #{tpu_custom_call.1} parent=1 // pred_check_branch
      %157 = sbr.rel (0) target = $region113
    $region112: #{tpu_custom_call.1} parent=1 // pred_region
      %158 = dma.done [#allocation9], 16
    $region113: #{tpu_custom_call.1} parent=1 // pred_fallthru
      _
    // Predicated region
    $region114: #{tpu_custom_call.1} parent=1 // pred_check
      _
    $region115: #{tpu_custom_call.1} parent=1 // pred_check_branch
      %160 = sbr.rel (0) target = $region117
    $region116: #{tpu_custom_call.1} parent=1 // pred_region
      %161 = dma.done [#allocation9], 2048
    $region117: #{tpu_custom_call.1} parent=1 // pred_fallthru
      _
    // Predicated region
    $region118: #{tpu_custom_call.1} parent=1 // pred_check
      _
    $region119: #{tpu_custom_call.1} parent=1 // pred_check_branch
      %163 = sbr.rel (0) target = $region121
    $region120: #{tpu_custom_call.1} parent=1 // pred_region
      %164 = dma.done [#allocation12], 1152
    $region121: #{tpu_custom_call.1} parent=1 // pred_fallthru
      _
    // Predicated region
    $region122: #{tpu_custom_call.1} parent=1 // pred_check
      _
    $region123: #{tpu_custom_call.1} parent=1 // pred_check_branch
      %166 = sbr.rel (0) target = $region125
    $region124: #{tpu_custom_call.1} parent=1 // pred_region
      %167 = dma.done [#allocation12], 2048
    $region125: #{tpu_custom_call.1} parent=1 // pred_fallthru
      _
    %v168 = vld [vmem:[%s0] sm:$0xff]
    %v169 = vld [vmem:[%s0 + $0x8] sm:$0xff]
    %v170 = vld [vmem:[%s0 + $0x10] sm:$0xff]
    %v171 = vld [vmem:[%s0 + $0x18] sm:$0xff]
    %v172 = vld [vmem:[%s0 + $0x20] sm:$0xff]
    %v173 = vld [vmem:[%s0 + $0x28] sm:$0xff]
    %v174 = vld [vmem:[#allocation3] sm:$0xff]
    %v175 = vld [vmem:[#allocation5] sm:$0x1]
    %v177 = vlaneseq
    %v178 = vshrl.u32 %v177, 7
    %v179 = vsub.s32 0, %v178
    %v180 = vrot.slane %v175, %v179
    %vm182 = vcmask 64512
    %v184 = vsel %vm182, %v168, 0
    %v187 = vsel %vm182, %v169, 0
    %v190 = vsel %vm182, %v170, 0
    %v193 = vsel %vm182, %v171, 0
    %v196 = vsel %vm182, %v172, 0
    %v199 = vsel %vm182, %v173, 0
    %201 = vmatprep.subr.mxu0 0.0
    %202 = vmatpush1.msra.mxu0 %v174
    %203 = vmatprep.subr.mxu0 0.0
    %204 = vmatpush1.msra.mxu0 0.0
    %205 = vmatprep.subr.mxu0 0.0
    %206 = vmatpush1.msra.mxu0 0.0
    %207 = vmatprep.subr.mxu0 0.0
    %208 = vmatpush1.msra.mxu0 0.0
    %209 = vmatprep.subr.mxu0 0.0
    %210 = vmatpush1.msra.mxu0 0.0
    %211 = vmatprep.subr.mxu0 0.0
    %212 = vmatpush1.msra.mxu0 0.0
    %213 = vmatprep.subr.mxu0 0.0
    %214 = vmatpush1.msra.mxu0 0.0
    %215 = vmatprep.subr.mxu0 0.0
    %216 = vmatpush1.msra.mxu0 0.0
    %217 = vmatprep.subr.mxu0 0.0
    %218 = vmatpush1.msra.mxu0 0.0
    %219 = vmatprep.subr.mxu0 0.0
    %220 = vmatpush1.msra.mxu0 0.0
    %221 = vmatprep.subr.mxu0 0.0
    %222 = vmatpush1.msra.mxu0 0.0
    %223 = vmatprep.subr.mxu0 0.0
    %224 = vmatpush1.msra.mxu0 0.0
    %225 = vmatprep.subr.mxu0 0.0
    %226 = vmatpush1.msra.mxu0 0.0
    %227 = vmatprep.subr.mxu0 0.0
    %228 = vmatpush1.msra.mxu0 0.0
    %229 = vmatprep.subr.mxu0 0.0
    %230 = vmatpush1.msra.mxu0 0.0
    %231 = vmatprep.subr.mxu0 0.0
    %232 = vmatpush1.msra.mxu0 0.0
    %233 = vmatprep.subr.mxu0 0.0
    %234 = vmatpush1.msra.mxu0 0.0
    %235 = vmatprep.subr.mxu0 0.0
    %236 = vmatpush1.msra.mxu0 0.0
    %237 = vmatprep.subr.mxu0 0.0
    %238 = vmatpush1.msra.mxu0 0.0
    %239 = vmatprep.subr.mxu0 0.0
    %240 = vmatpush1.msra.mxu0 0.0
    %241 = vmatprep.subr.mxu0 0.0
    %242 = vmatpush1.msra.mxu0 0.0
    %243 = vmatprep.subr.mxu0 0.0
    %244 = vmatpush1.msra.mxu0 0.0
    %245 = vmatprep.subr.mxu0 0.0
    %246 = vmatpush1.msra.mxu0 0.0
    %247 = vmatprep.subr.mxu0 0.0
    %248 = vmatpush1.msra.mxu0 0.0
    %249 = vmatprep.subr.mxu0 0.0
    %250 = vmatpush1.msra.mxu0 0.0
    %251 = vmatprep.subr.mxu0 0.0
    %252 = vmatpush1.msra.mxu0 0.0
    %253 = vmatprep.subr.mxu0 0.0
    %254 = vmatpush1.msra.mxu0 0.0
    %255 = vmatprep.subr.mxu0 0.0
    %256 = vmatpush1.msra.mxu0 0.0
    %257 = vmatprep.subr.mxu0 0.0
    %258 = vmatpush1.msra.mxu0 0.0
    %259 = vmatprep.subr.mxu0 0.0
    %260 = vmatpush1.msra.mxu0 0.0
    %261 = vmatprep.subr.mxu0 0.0
    %262 = vmatpush1.msra.mxu0 0.0
    %263 = vmatprep.subr.mxu0 0.0
    %264 = vmatpush1.msra.mxu0 0.0
    %265 = vmatprep.mubr.f32.mxu0 0.0
    %266 = vmatmul.mubr.f32.gmra.mrb[0].mxu0 %v184
    %v267 = vpop.f32.mrb[0].mxu0
    %v268 = vadd.f32 %v180, %v267
    %v269 = vpop.f32.mrb[0].mxu0
    %270 = vmatprep.mubr.f32.mxu0 0.0
    %271 = vmatmul.mubr.f32.gmra.mrb[0].mxu0 %v187
    %v272 = vpop.f32.mrb[0].mxu0
    %v273 = vadd.f32 %v180, %v272
    %v274 = vpop.f32.mrb[0].mxu0
    %275 = vmatprep.mubr.f32.mxu0 0.0
    %276 = vmatmul.mubr.f32.gmra.mrb[0].mxu0 %v190
    %v277 = vpop.f32.mrb[0].mxu0
    %v278 = vadd.f32 %v180, %v277
    %v279 = vpop.f32.mrb[0].mxu0
    %280 = vmatprep.mubr.f32.mxu0 0.0
    %281 = vmatmul.mubr.f32.gmra.mrb[0].mxu0 %v193
    %v282 = vpop.f32.mrb[0].mxu0
    %v283 = vadd.f32 %v180, %v282
    %v284 = vpop.f32.mrb[0].mxu0
    %285 = vmatprep.mubr.f32.mxu0 0.0
    %286 = vmatmul.mubr.f32.gmra.mrb[0].mxu0 %v196
    %v287 = vpop.f32.mrb[0].mxu0
    %v288 = vadd.f32 %v180, %v287
    %v289 = vpop.f32.mrb[0].mxu0
    %290 = vmatprep.mubr.f32.mxu0 0.0
    %291 = vmatmul.mubr.f32.gmra.mrb[0].mxu0 %v199
    %v292 = vpop.f32.mrb[0].mxu0
    %v293 = vadd.f32 %v180, %v292
    %v294 = vpop.f32.mrb[0].mxu0
    %295 = vdwg.mxu0
    %v296 = vtanh.pop %v268
    %v297 = vtanh.pop %v273
    %v298 = vtanh.pop %v278
    %v299 = vtanh.pop %v283
    %v300 = vtanh.pop %v288
    %v301 = vtanh.pop %v293
    %v302 = vld [vmem:[#allocation7] sm:$0xff]
    %v303 = vld [vmem:[#allocation7 + $0x8] sm:$0xff]
    %v304 = vld [vmem:[#allocation7 + $0x10] sm:$0xff]
    %v305 = vld [vmem:[#allocation7 + $0x18] sm:$0xff]
    %v306 = vld [vmem:[#allocation7 + $0x20] sm:$0xff]
    %v307 = vld [vmem:[#allocation7 + $0x28] sm:$0xff]
    %v308 = vld [vmem:[#allocation7 + $0x30] sm:$0xff]
    %v309 = vld [vmem:[#allocation7 + $0x38] sm:$0xff]
    %v310 = vld [vmem:[#allocation7 + $0x40] sm:$0xff]
    %v311 = vld [vmem:[#allocation7 + $0x48] sm:$0xff]
    %v312 = vld [vmem:[#allocation7 + $0x50] sm:$0xff]
    %v313 = vld [vmem:[#allocation7 + $0x58] sm:$0xff]
    %v314 = vld [vmem:[#allocation7 + $0x60] sm:$0xff]
    %v315 = vld [vmem:[#allocation7 + $0x68] sm:$0xff]
    %v316 = vld [vmem:[#allocation7 + $0x70] sm:$0xff]
    %v317 = vld [vmem:[#allocation7 + $0x78] sm:$0xff]
    %v318 = vld [vmem:[#allocation8] sm:$0x1]
    %v320 = vlaneseq
    %v321 = vshrl.u32 %v320, 7
    %v322 = vsub.s32 0, %v321
    %v323 = vrot.slane %v318, %v322
    %325 = vmatprep.subr.mxu0 0.0
    %326 = vmatpush1.msra.mxu0 %v302
    %327 = vmatprep.subr.mxu0 0.0
    %328 = vmatpush1.msra.mxu0 %v303
    %329 = vmatprep.subr.mxu0 0.0
    %330 = vmatpush1.msra.mxu0 %v304
    %331 = vmatprep.subr.mxu0 0.0
    %332 = vmatpush1.msra.mxu0 %v305
    %333 = vmatprep.subr.mxu0 0.0
    %334 = vmatpush1.msra.mxu0 %v306
    %335 = vmatprep.subr.mxu0 0.0
    %336 = vmatpush1.msra.mxu0 %v307
    %337 = vmatprep.subr.mxu0 0.0
    %338 = vmatpush1.msra.mxu0 %v308
    %339 = vmatprep.subr.mxu0 0.0
    %340 = vmatpush1.msra.mxu0 %v309
    %341 = vmatprep.subr.mxu0 0.0
    %342 = vmatpush1.msra.mxu0 %v310
    %343 = vmatprep.subr.mxu0 0.0
    %344 = vmatpush1.msra.mxu0 %v311
    %345 = vmatprep.subr.mxu0 0.0
    %346 = vmatpush1.msra.mxu0 %v312
    %347 = vmatprep.subr.mxu0 0.0
    %348 = vmatpush1.msra.mxu0 %v313
    %349 = vmatprep.subr.mxu0 0.0
    %350 = vmatpush1.msra.mxu0 %v314
    %351 = vmatprep.subr.mxu0 0.0
    %352 = vmatpush1.msra.mxu0 %v315
    %353 = vmatprep.subr.mxu0 0.0
    %354 = vmatpush1.msra.mxu0 %v316
    %355 = vmatprep.subr.mxu0 0.0
    %356 = vmatpush1.msra.mxu0 %v317
    %357 = vmatprep.subr.mxu0 0.0
    %358 = vmatpush1.msra.mxu0 0.0
    %359 = vmatprep.subr.mxu0 0.0
    %360 = vmatpush1.msra.mxu0 0.0
    %361 = vmatprep.subr.mxu0 0.0
    %362 = vmatpush1.msra.mxu0 0.0
    %363 = vmatprep.subr.mxu0 0.0
    %364 = vmatpush1.msra.mxu0 0.0
    %365 = vmatprep.subr.mxu0 0.0
    %366 = vmatpush1.msra.mxu0 0.0
    %367 = vmatprep.subr.mxu0 0.0
    %368 = vmatpush1.msra.mxu0 0.0
    %369 = vmatprep.subr.mxu0 0.0
    %370 = vmatpush1.msra.mxu0 0.0
    %371 = vmatprep.subr.mxu0 0.0
    %372 = vmatpush1.msra.mxu0 0.0
    %373 = vmatprep.subr.mxu0 0.0
    %374 = vmatpush1.msra.mxu0 0.0
    %375 = vmatprep.subr.mxu0 0.0
    %376 = vmatpush1.msra.mxu0 0.0
    %377 = vmatprep.subr.mxu0 0.0
    %378 = vmatpush1.msra.mxu0 0.0
    %379 = vmatprep.subr.mxu0 0.0
    %380 = vmatpush1.msra.mxu0 0.0
    %381 = vmatprep.subr.mxu0 0.0
    %382 = vmatpush1.msra.mxu0 0.0
    %383 = vmatprep.subr.mxu0 0.0
    %384 = vmatpush1.msra.mxu0 0.0
    %385 = vmatprep.subr.mxu0 0.0
    %386 = vmatpush1.msra.mxu0 0.0
    %387 = vmatprep.subr.mxu0 0.0
    %388 = vmatpush1.msra.mxu0 0.0
    %389 = vmatprep.mubr.f32.mxu0 0.0
    %390 = vmatmul.mubr.f32.gmra.mrb[0].mxu0 %v296
    %v391 = vpop.f32.mrb[0].mxu0
    %v392 = vadd.f32 %v323, %v391
    %v393 = vpop.f32.mrb[0].mxu0
    %394 = vmatprep.mubr.f32.mxu0 0.0
    %395 = vmatmul.mubr.f32.gmra.mrb[0].mxu0 %v297
    %v396 = vpop.f32.mrb[0].mxu0
    %v397 = vadd.f32 %v323, %v396
    %v398 = vpop.f32.mrb[0].mxu0
    %399 = vmatprep.mubr.f32.mxu0 0.0
    %400 = vmatmul.mubr.f32.gmra.mrb[0].mxu0 %v298
    %v401 = vpop.f32.mrb[0].mxu0
    %v402 = vadd.f32 %v323, %v401
    %v403 = vpop.f32.mrb[0].mxu0
    %404 = vmatprep.mubr.f32.mxu0 0.0
    %405 = vmatmul.mubr.f32.gmra.mrb[0].mxu0 %v299
    %v406 = vpop.f32.mrb[0].mxu0
    %v407 = vadd.f32 %v323, %v406
    %v408 = vpop.f32.mrb[0].mxu0
    %409 = vmatprep.mubr.f32.mxu0 0.0
    %410 = vmatmul.mubr.f32.gmra.mrb[0].mxu0 %v300
    %v411 = vpop.f32.mrb[0].mxu0
    %v412 = vadd.f32 %v323, %v411
    %v413 = vpop.f32.mrb[0].mxu0
    %414 = vmatprep.mubr.f32.mxu0 0.0
    %415 = vmatmul.mubr.f32.gmra.mrb[0].mxu0 %v301
    %v416 = vpop.f32.mrb[0].mxu0
    %v417 = vadd.f32 %v323, %v416
    %v418 = vpop.f32.mrb[0].mxu0
    %419 = vdwg.mxu0
    %v420 = vtanh.pop %v392
    %v421 = vtanh.pop %v397
    %v422 = vtanh.pop %v402
    %v423 = vtanh.pop %v407
    %v424 = vtanh.pop %v412
    %v425 = vtanh.pop %v417
    %v426 = vld [vmem:[%s7] sm:$0xff]
    %v427 = vld [vmem:[%s7 + $0x8] sm:$0xff]
    %v428 = vld [vmem:[%s7 + $0x10] sm:$0xff]
    %v429 = vld [vmem:[%s7 + $0x18] sm:$0xff]
    %v430 = vld [vmem:[%s7 + $0x20] sm:$0xff]
    %v431 = vld [vmem:[%s7 + $0x28] sm:$0xff]
    %v432 = vld [vmem:[%s7 + $0x30] sm:$0xff]
    %v433 = vld [vmem:[%s7 + $0x38] sm:$0xff]
    %v434 = vld [vmem:[%s7 + $0x40] sm:$0xff]
    %v435 = vld [vmem:[%s7 + $0x48] sm:$0xff]
    %v436 = vld [vmem:[%s7 + $0x50] sm:$0xff]
    %v437 = vld [vmem:[%s7 + $0x58] sm:$0xff]
    %v438 = vld [vmem:[%s7 + $0x60] sm:$0xff]
    %v439 = vld [vmem:[%s7 + $0x68] sm:$0xff]
    %v440 = vld [vmem:[%s7 + $0x70] sm:$0xff]
    %v441 = vld [vmem:[%s7 + $0x78] sm:$0xff]
    %v442 = vld [vmem:[%s7 + $0x80] sm:$0xff]
    %v443 = vld [vmem:[%s7 + $0x88] sm:$0xff]
    %v444 = vld [vmem:[%s7 + $0x90] sm:$0xff]
    %v445 = vld [vmem:[%s7 + $0x98] sm:$0xff]
    %v446 = vld [vmem:[%s7 + $0xa0] sm:$0xff]
    %v447 = vld [vmem:[%s7 + $0xa8] sm:$0xff]
    %v448 = vld [vmem:[%s7 + $0xb0] sm:$0xff]
    %v449 = vld [vmem:[%s7 + $0xb8] sm:$0xff]
    %v450 = vld [vmem:[%s7 + $0xc0] sm:$0xff]
    %v451 = vld [vmem:[%s7 + $0xc8] sm:$0xff]
    %v452 = vld [vmem:[%s7 + $0xd0] sm:$0xff]
    %v453 = vld [vmem:[%s7 + $0xd8] sm:$0xff]
    %v454 = vld [vmem:[%s7 + $0xe0] sm:$0xff]
    %v455 = vld [vmem:[%s7 + $0xe8] sm:$0xff]
    %v456 = vld [vmem:[%s7 + $0xf0] sm:$0xff]
    %v457 = vld [vmem:[%s7 + $0xf8] sm:$0xff]
    %v458 = vld [vmem:[%s8] sm:$0x3]
    %v460 = vlaneseq
    %v461 = vshrl.u32 %v460, 7
    %v462 = vsub.s32 0, %v461
    %v463 = vrot.slane %v458, %v462
    %v464 = vlaneseq
    %v465 = vshrl.u32 %v464, 7
    %v466 = vsub.s32 1, %v465
    %v467 = vrot.slane %v458, %v466
    %470 = vmatprep.subr.mxu0 %v427
    %471 = vmatpush1.msra.mxu0 %v426
    %472 = vmatprep.subr.mxu0 %v429
    %473 = vmatpush1.msra.mxu0 %v428
    %474 = vmatprep.subr.mxu0 %v431
    %475 = vmatpush1.msra.mxu0 %v430
    %476 = vmatprep.subr.mxu0 %v433
    %477 = vmatpush1.msra.mxu0 %v432
    %478 = vmatprep.subr.mxu0 %v435
    %479 = vmatpush1.msra.mxu0 %v434
    %480 = vmatprep.subr.mxu0 %v437
    %481 = vmatpush1.msra.mxu0 %v436
    %482 = vmatprep.subr.mxu0 %v439
    %483 = vmatpush1.msra.mxu0 %v438
    %484 = vmatprep.subr.mxu0 %v441
    %485 = vmatpush1.msra.mxu0 %v440
    %486 = vmatprep.subr.mxu0 %v443
    %487 = vmatpush1.msra.mxu0 %v442
    %488 = vmatprep.subr.mxu0 %v445
    %489 = vmatpush1.msra.mxu0 %v444
    %490 = vmatprep.subr.mxu0 %v447
    %491 = vmatpush1.msra.mxu0 %v446
    %492 = vmatprep.subr.mxu0 %v449
    %493 = vmatpush1.msra.mxu0 %v448
    %494 = vmatprep.subr.mxu0 %v451
    %495 = vmatpush1.msra.mxu0 %v450
    %496 = vmatprep.subr.mxu0 %v453
    %497 = vmatpush1.msra.mxu0 %v452
    %498 = vmatprep.subr.mxu0 %v455
    %499 = vmatpush1.msra.mxu0 %v454
    %500 = vmatprep.subr.mxu0 %v457
    %501 = vmatpush1.msra.mxu0 %v456
    %502 = vmatprep.subr.mxu0 0.0
    %503 = vmatpush1.msra.mxu0 0.0
    %504 = vmatprep.subr.mxu0 0.0
    %505 = vmatpush1.msra.mxu0 0.0
    %506 = vmatprep.subr.mxu0 0.0
    %507 = vmatpush1.msra.mxu0 0.0
    %508 = vmatprep.subr.mxu0 0.0
    %509 = vmatpush1.msra.mxu0 0.0
    %510 = vmatprep.subr.mxu0 0.0
    %511 = vmatpush1.msra.mxu0 0.0
    %512 = vmatprep.subr.mxu0 0.0
    %513 = vmatpush1.msra.mxu0 0.0
    %514 = vmatprep.subr.mxu0 0.0
    %515 = vmatpush1.msra.mxu0 0.0
    %516 = vmatprep.subr.mxu0 0.0
    %517 = vmatpush1.msra.mxu0 0.0
    %518 = vmatprep.subr.mxu0 0.0
    %519 = vmatpush1.msra.mxu0 0.0
    %520 = vmatprep.subr.mxu0 0.0
    %521 = vmatpush1.msra.mxu0 0.0
    %522 = vmatprep.subr.mxu0 0.0
    %523 = vmatpush1.msra.mxu0 0.0
    %524 = vmatprep.subr.mxu0 0.0
    %525 = vmatpush1.msra.mxu0 0.0
    %526 = vmatprep.subr.mxu0 0.0
    %527 = vmatpush1.msra.mxu0 0.0
    %528 = vmatprep.subr.mxu0 0.0
    %529 = vmatpush1.msra.mxu0 0.0
    %530 = vmatprep.subr.mxu0 0.0
    %531 = vmatpush1.msra.mxu0 0.0
    %532 = vmatprep.subr.mxu0 0.0
    %533 = vmatpush1.msra.mxu0 0.0
    %534 = vmatprep.mubr.f32.mxu0 0.0
    %535 = vmatmul.mubr.f32.gmra.mrb[0].mxu0 %v420
    %v536 = vpop.f32.mrb[0].mxu0
    %v537 = vadd.f32 %v463, %v536
    %v538 = vpop.f32.mrb[0].mxu0
    %v539 = vadd.f32 %v467, %v538
    %540 = vmatprep.mubr.f32.mxu0 0.0
    %541 = vmatmul.mubr.f32.gmra.mrb[0].mxu0 %v421
    %v542 = vpop.f32.mrb[0].mxu0
    %v543 = vadd.f32 %v463, %v542
    %v544 = vpop.f32.mrb[0].mxu0
    %v545 = vadd.f32 %v467, %v544
    %546 = vmatprep.mubr.f32.mxu0 0.0
    %547 = vmatmul.mubr.f32.gmra.mrb[0].mxu0 %v422
    %v548 = vpop.f32.mrb[0].mxu0
    %v549 = vadd.f32 %v463, %v548
    %v550 = vpop.f32.mrb[0].mxu0
    %v551 = vadd.f32 %v467, %v550
    %552 = vmatprep.mubr.f32.mxu0 0.0
    %553 = vmatmul.mubr.f32.gmra.mrb[0].mxu0 %v423
    %v554 = vpop.f32.mrb[0].mxu0
    %v555 = vadd.f32 %v463, %v554
    %v556 = vpop.f32.mrb[0].mxu0
    %v557 = vadd.f32 %v467, %v556
    %558 = vmatprep.mubr.f32.mxu0 0.0
    %559 = vmatmul.mubr.f32.gmra.mrb[0].mxu0 %v424
    %v560 = vpop.f32.mrb[0].mxu0
    %v561 = vadd.f32 %v463, %v560
    %v562 = vpop.f32.mrb[0].mxu0
    %v563 = vadd.f32 %v467, %v562
    %564 = vmatprep.mubr.f32.mxu0 0.0
    %565 = vmatmul.mubr.f32.gmra.mrb[0].mxu0 %v425
    %v566 = vpop.f32.mrb[0].mxu0
    %v567 = vadd.f32 %v463, %v566
    %v568 = vpop.f32.mrb[0].mxu0
    %v569 = vadd.f32 %v467, %v568
    %570 = vdwg.mxu0
    %v571 = vld [vmem:[#allocation10] sm:$0xff]
    %v572 = vld [vmem:[#allocation10 + $0x8] sm:$0xff]
    %v573 = vld [vmem:[#allocation10 + $0x10] sm:$0xff]
    %v574 = vld [vmem:[#allocation10 + $0x18] sm:$0xff]
    %v575 = vld [vmem:[#allocation10 + $0x20] sm:$0xff]
    %v576 = vld [vmem:[#allocation10 + $0x28] sm:$0xff]
    %v577 = vld [vmem:[#allocation10 + $0x30] sm:$0xff]
    %v578 = vld [vmem:[#allocation10 + $0x38] sm:$0xff]
    %v579 = vld [vmem:[#allocation10 + $0x40] sm:$0xff]
    %v580 = vld [vmem:[#allocation10 + $0x48] sm:$0xff]
    %v581 = vld [vmem:[#allocation10 + $0x50] sm:$0xff]
    %v582 = vld [vmem:[#allocation10 + $0x58] sm:$0xff]
    %v583 = vld [vmem:[#allocation10 + $0x60] sm:$0xff]
    %v584 = vld [vmem:[#allocation10 + $0x68] sm:$0xff]
    %v585 = vld [vmem:[#allocation10 + $0x70] sm:$0xff]
    %v586 = vld [vmem:[#allocation10 + $0x78] sm:$0xff]
    %v587 = vld [vmem:[%s10] sm:$0x1]
    %v589 = vlaneseq
    %v590 = vshrl.u32 %v589, 7
    %v591 = vsub.s32 0, %v590
    %v592 = vrot.slane %v587, %v591
    %vm594 = vcmask 523264
    %v596 = vsel %vm594, 0.0, 0
    %598 = vmatprep.subr.mxu0 %v572
    %599 = vmatpush1.msra.mxu0 %v571
    %600 = vmatprep.subr.mxu0 %v574
    %601 = vmatpush1.msra.mxu0 %v573
    %602 = vmatprep.subr.mxu0 %v576
    %603 = vmatpush1.msra.mxu0 %v575
    %604 = vmatprep.subr.mxu0 %v578
    %605 = vmatpush1.msra.mxu0 %v577
    %606 = vmatprep.subr.mxu0 %v580
    %607 = vmatpush1.msra.mxu0 %v579
    %608 = vmatprep.subr.mxu0 %v582
    %609 = vmatpush1.msra.mxu0 %v581
    %610 = vmatprep.subr.mxu0 %v584
    %611 = vmatpush1.msra.mxu0 %v583
    %612 = vmatprep.subr.mxu0 %v586
    %613 = vmatpush1.msra.mxu0 %v585
    %614 = vmatprep.subr.mxu0 0.0
    %615 = vmatpush1.msra.mxu0 0.0
    %616 = vmatprep.subr.mxu0 0.0
    %617 = vmatpush1.msra.mxu0 0.0
    %618 = vmatprep.subr.mxu0 0.0
    %619 = vmatpush1.msra.mxu0 0.0
    %620 = vmatprep.subr.mxu0 0.0
    %621 = vmatpush1.msra.mxu0 0.0
    %622 = vmatprep.subr.mxu0 0.0
    %623 = vmatpush1.msra.mxu0 0.0
    %624 = vmatprep.subr.mxu0 0.0
    %625 = vmatpush1.msra.mxu0 0.0
    %626 = vmatprep.subr.mxu0 0.0
    %627 = vmatpush1.msra.mxu0 0.0
    %628 = vmatprep.subr.mxu0 0.0
    %629 = vmatpush1.msra.mxu0 0.0
    %630 = vmatprep.subr.mxu0 0.0
    %631 = vmatpush1.msra.mxu0 0.0
    %632 = vmatprep.subr.mxu0 0.0
    %633 = vmatpush1.msra.mxu0 0.0
    %634 = vmatprep.subr.mxu0 0.0
    %635 = vmatpush1.msra.mxu0 0.0
    %636 = vmatprep.subr.mxu0 0.0
    %637 = vmatpush1.msra.mxu0 0.0
    %638 = vmatprep.subr.mxu0 0.0
    %639 = vmatpush1.msra.mxu0 0.0
    %640 = vmatprep.subr.mxu0 0.0
    %641 = vmatpush1.msra.mxu0 0.0
    %642 = vmatprep.subr.mxu0 0.0
    %643 = vmatpush1.msra.mxu0 0.0
    %644 = vmatprep.subr.mxu0 0.0
    %645 = vmatpush1.msra.mxu0 0.0
    %646 = vmatprep.subr.mxu0 0.0
    %647 = vmatpush1.msra.mxu0 0.0
    %648 = vmatprep.subr.mxu0 0.0
    %649 = vmatpush1.msra.mxu0 0.0
    %650 = vmatprep.subr.mxu0 0.0
    %651 = vmatpush1.msra.mxu0 0.0
    %652 = vmatprep.subr.mxu0 0.0
    %653 = vmatpush1.msra.mxu0 0.0
    %654 = vmatprep.subr.mxu0 0.0
    %655 = vmatpush1.msra.mxu0 0.0
    %656 = vmatprep.subr.mxu0 0.0
    %657 = vmatpush1.msra.mxu0 0.0
    %658 = vmatprep.subr.mxu0 0.0
    %659 = vmatpush1.msra.mxu0 0.0
    %660 = vmatprep.subr.mxu0 0.0
    %661 = vmatpush1.msra.mxu0 0.0
    %662 = vmatprep.mubr.f32.mxu0 0.0
    %663 = vmatmul.mubr.f32.gmra.mrb[0].mxu0 %v596
    %v664 = vpop.f32.mrb[0].mxu0
    %v665 = vadd.f32 0.0, %v664
    %v666 = vpop.f32.mrb[0].mxu0
    %v667 = vadd.f32 0.0, %v666
    %668 = vdwg.mxu0
    %v669 = vadd.f32 %v537, %v665
    %v670 = vmul.f32 %v669, 0.5
    %v671 = vtanh.pop %v670
    %v672 = vadd.f32 %v671, 1.0
    %v673 = vmul.f32 %v672, 0.5
    %v674 = vadd.f32 %v667, %v592
    %v675 = vmul.f32 %v673, %v674
    %v676 = vadd.f32 %v539, %v675
    %v677 = vtanh.pop %v676
    %v678 = vsub.f32 1.0, %v673
    %680 = vrot.lane.b32.xlu0 %v677, 64
    %v681 = vpop.permute.xlu0 %680
    %v683 = vmul.f32 %v678, %v681
    %v684 = vmul.f32 %v673, 0.0
    %v685 = vadd.f32 %v683, %v684
    %687 = vrot.lane.b32.xlu0 %v685, 64
    %v688 = vpop.permute.xlu0 %687
    %v689 = vsel %vm594, %v688, 0
    %691 = vmatprep.subr.mxu0 %v572
    %692 = vmatpush1.msra.mxu0 %v571
    %693 = vmatprep.subr.mxu0 %v574
    %694 = vmatpush1.msra.mxu0 %v573
    %695 = vmatprep.subr.mxu0 %v576
    %696 = vmatpush1.msra.mxu0 %v575
    %697 = vmatprep.subr.mxu0 %v578
    %698 = vmatpush1.msra.mxu0 %v577
    %699 = vmatprep.subr.mxu0 %v580
    %700 = vmatpush1.msra.mxu0 %v579
    %701 = vmatprep.subr.mxu0 %v582
    %702 = vmatpush1.msra.mxu0 %v581
    %703 = vmatprep.subr.mxu0 %v584
    %704 = vmatpush1.msra.mxu0 %v583
    %705 = vmatprep.subr.mxu0 %v586
    %706 = vmatpush1.msra.mxu0 %v585
    %707 = vmatprep.subr.mxu0 0.0
    %708 = vmatpush1.msra.mxu0 0.0
    %709 = vmatprep.subr.mxu0 0.0
    %710 = vmatpush1.msra.mxu0 0.0
    %711 = vmatprep.subr.mxu0 0.0
    %712 = vmatpush1.msra.mxu0 0.0
    %713 = vmatprep.subr.mxu0 0.0
    %714 = vmatpush1.msra.mxu0 0.0
    %715 = vmatprep.subr.mxu0 0.0
    %716 = vmatpush1.msra.mxu0 0.0
    %717 = vmatprep.subr.mxu0 0.0
    %718 = vmatpush1.msra.mxu0 0.0
    %719 = vmatprep.subr.mxu0 0.0
    %720 = vmatpush1.msra.mxu0 0.0
    %721 = vmatprep.subr.mxu0 0.0
    %722 = vmatpush1.msra.mxu0 0.0
    %723 = vmatprep.subr.mxu0 0.0
    %724 = vmatpush1.msra.mxu0 0.0
    %725 = vmatprep.subr.mxu0 0.0
    %726 = vmatpush1.msra.mxu0 0.0
    %727 = vmatprep.subr.mxu0 0.0
    %728 = vmatpush1.msra.mxu0 0.0
    %729 = vmatprep.subr.mxu0 0.0
    %730 = vmatpush1.msra.mxu0 0.0
    %731 = vmatprep.subr.mxu0 0.0
    %732 = vmatpush1.msra.mxu0 0.0
    %733 = vmatprep.subr.mxu0 0.0
    %734 = vmatpush1.msra.mxu0 0.0
    %735 = vmatprep.subr.mxu0 0.0
    %736 = vmatpush1.msra.mxu0 0.0
    %737 = vmatprep.subr.mxu0 0.0
    %738 = vmatpush1.msra.mxu0 0.0
    %739 = vmatprep.subr.mxu0 0.0
    %740 = vmatpush1.msra.mxu0 0.0
    %741 = vmatprep.subr.mxu0 0.0
    %742 = vmatpush1.msra.mxu0 0.0
    %743 = vmatprep.subr.mxu0 0.0
    %744 = vmatpush1.msra.mxu0 0.0
    %745 = vmatprep.subr.mxu0 0.0
    %746 = vmatpush1.msra.mxu0 0.0
    %747 = vmatprep.subr.mxu0 0.0
    %748 = vmatpush1.msra.mxu0 0.0
    %749 = vmatprep.subr.mxu0 0.0
    %750 = vmatpush1.msra.mxu0 0.0
    %751 = vmatprep.subr.mxu0 0.0
    %752 = vmatpush1.msra.mxu0 0.0
    %753 = vmatprep.subr.mxu0 0.0
    %754 = vmatpush1.msra.mxu0 0.0
    %755 = vmatprep.mubr.f32.mxu0 0.0
    %756 = vmatmul.mubr.f32.gmra.mrb[0].mxu0 %v689
    %v757 = vpop.f32.mrb[0].mxu0
    %v758 = vadd.f32 0.0, %v757
    %v759 = vpop.f32.mrb[0].mxu0
    %v760 = vadd.f32 0.0, %v759
    %761 = vdwg.mxu0
    %v763 = vrot.slane %v758, 6
    %v765 = vadd.f32 %v537, %v763
    %v766 = vmul.f32 %v765, 0.5
    %v767 = vtanh.pop %v766
    %v768 = vadd.f32 %v767, 1.0
    %v769 = vmul.f32 %v768, 0.5
    %v770 = vadd.f32 %v760, %v592
    %v772 = vrot.slane %v770, 6
    %v774 = vmul.f32 %v769, %v772
    %v775 = vadd.f32 %v539, %v774
    %v776 = vtanh.pop %v775
    %v777 = vsub.f32 1.0, %v769
    %779 = vrot.lane.b32.xlu0 %v776, 64
    %v780 = vpop.permute.xlu0 %779
    %v782 = vmul.f32 %v777, %v780
    %v783 = vrot.slane %v685, 6
    %v785 = vmul.f32 %v769, %v783
    %v786 = vadd.f32 %v782, %v785
    %v788 = vrot.slane %v786, 2
    %789 = vrot.lane.b32.xlu0 %v788, 64
    %v790 = vpop.permute.xlu0 %789
    %v791 = vsel %vm594, %v790, 0
    %793 = vmatprep.subr.mxu0 %v572
    %794 = vmatpush1.msra.mxu0 %v571
    %795 = vmatprep.subr.mxu0 %v574
    %796 = vmatpush1.msra.mxu0 %v573
    %797 = vmatprep.subr.mxu0 %v576
    %798 = vmatpush1.msra.mxu0 %v575
    %799 = vmatprep.subr.mxu0 %v578
    %800 = vmatpush1.msra.mxu0 %v577
    %801 = vmatprep.subr.mxu0 %v580
    %802 = vmatpush1.msra.mxu0 %v579
    %803 = vmatprep.subr.mxu0 %v582
    %804 = vmatpush1.msra.mxu0 %v581
    %805 = vmatprep.subr.mxu0 %v584
    %806 = vmatpush1.msra.mxu0 %v583
    %807 = vmatprep.subr.mxu0 %v586
    %808 = vmatpush1.msra.mxu0 %v585
    %809 = vmatprep.subr.mxu0 0.0
    %810 = vmatpush1.msra.mxu0 0.0
    %811 = vmatprep.subr.mxu0 0.0
    %812 = vmatpush1.msra.mxu0 0.0
    %813 = vmatprep.subr.mxu0 0.0
    %814 = vmatpush1.msra.mxu0 0.0
    %815 = vmatprep.subr.mxu0 0.0
    %816 = vmatpush1.msra.mxu0 0.0
    %817 = vmatprep.subr.mxu0 0.0
    %818 = vmatpush1.msra.mxu0 0.0
    %819 = vmatprep.subr.mxu0 0.0
    %820 = vmatpush1.msra.mxu0 0.0
    %821 = vmatprep.subr.mxu0 0.0
    %822 = vmatpush1.msra.mxu0 0.0
    %823 = vmatprep.subr.mxu0 0.0
    %824 = vmatpush1.msra.mxu0 0.0
    %825 = vmatprep.subr.mxu0 0.0
    %826 = vmatpush1.msra.mxu0 0.0
    %827 = vmatprep.subr.mxu0 0.0
    %828 = vmatpush1.msra.mxu0 0.0
    %829 = vmatprep.subr.mxu0 0.0
    %830 = vmatpush1.msra.mxu0 0.0
    %831 = vmatprep.subr.mxu0 0.0
    %832 = vmatpush1.msra.mxu0 0.0
    %833 = vmatprep.subr.mxu0 0.0
    %834 = vmatpush1.msra.mxu0 0.0
    %835 = vmatprep.subr.mxu0 0.0
    %836 = vmatpush1.msra.mxu0 0.0
    %837 = vmatprep.subr.mxu0 0.0
    %838 = vmatpush1.msra.mxu0 0.0
    %839 = vmatprep.subr.mxu0 0.0
    %840 = vmatpush1.msra.mxu0 0.0
    %841 = vmatprep.subr.mxu0 0.0
    %842 = vmatpush1.msra.mxu0 0.0
    %843 = vmatprep.subr.mxu0 0.0
    %844 = vmatpush1.msra.mxu0 0.0
    %845 = vmatprep.subr.mxu0 0.0
    %846 = vmatpush1.msra.mxu0 0.0
    %847 = vmatprep.subr.mxu0 0.0
    %848 = vmatpush1.msra.mxu0 0.0
    %849 = vmatprep.subr.mxu0 0.0
    %850 = vmatpush1.msra.mxu0 0.0
    %851 = vmatprep.subr.mxu0 0.0
    %852 = vmatpush1.msra.mxu0 0.0
    %853 = vmatprep.subr.mxu0 0.0
    %854 = vmatpush1.msra.mxu0 0.0
    %855 = vmatprep.subr.mxu0 0.0
    %856 = vmatpush1.msra.mxu0 0.0
    %857 = vmatprep.mubr.f32.mxu0 0.0
    %858 = vmatmul.mubr.f32.gmra.mrb[0].mxu0 %v791
    %v859 = vpop.f32.mrb[0].mxu0
    %v860 = vadd.f32 0.0, %v859
    %v861 = vpop.f32.mrb[0].mxu0
    %v862 = vadd.f32 0.0, %v861
    %863 = vdwg.mxu0
    %v865 = vrot.slane %v860, 4
    %v867 = vadd.f32 %v537, %v865
    %v868 = vmul.f32 %v867, 0.5
    %v869 = vtanh.pop %v868
    %v870 = vadd.f32 %v869, 1.0
    %v871 = vmul.f32 %v870, 0.5
    %v872 = vadd.f32 %v862, %v592
    %v874 = vrot.slane %v872, 4
    %v876 = vmul.f32 %v871, %v874
    %v877 = vadd.f32 %v539, %v876
    %v878 = vtanh.pop %v877
    %v879 = vsub.f32 1.0, %v871
    %881 = vrot.lane.b32.xlu0 %v878, 64
    %v882 = vpop.permute.xlu0 %881
    %v884 = vmul.f32 %v879, %v882
    %v885 = vrot.slane %v786, 6
    %v887 = vmul.f32 %v871, %v885
    %v888 = vadd.f32 %v884, %v887
    %v890 = vrot.slane %v888, 4
    %891 = vrot.lane.b32.xlu0 %v890, 64
    %v892 = vpop.permute.xlu0 %891
    %v893 = vsel %vm594, %v892, 0
    %895 = vmatprep.subr.mxu0 %v572
    %896 = vmatpush1.msra.mxu0 %v571
    %897 = vmatprep.subr.mxu0 %v574
    %898 = vmatpush1.msra.mxu0 %v573
    %899 = vmatprep.subr.mxu0 %v576
    %900 = vmatpush1.msra.mxu0 %v575
    %901 = vmatprep.subr.mxu0 %v578
    %902 = vmatpush1.msra.mxu0 %v577
    %903 = vmatprep.subr.mxu0 %v580
    %904 = vmatpush1.msra.mxu0 %v579
    %905 = vmatprep.subr.mxu0 %v582
    %906 = vmatpush1.msra.mxu0 %v581
    %907 = vmatprep.subr.mxu0 %v584
    %908 = vmatpush1.msra.mxu0 %v583
    %909 = vmatprep.subr.mxu0 %v586
    %910 = vmatpush1.msra.mxu0 %v585
    %911 = vmatprep.subr.mxu0 0.0
    %912 = vmatpush1.msra.mxu0 0.0
    %913 = vmatprep.subr.mxu0 0.0
    %914 = vmatpush1.msra.mxu0 0.0
    %915 = vmatprep.subr.mxu0 0.0
    %916 = vmatpush1.msra.mxu0 0.0
    %917 = vmatprep.subr.mxu0 0.0
    %918 = vmatpush1.msra.mxu0 0.0
    %919 = vmatprep.subr.mxu0 0.0
    %920 = vmatpush1.msra.mxu0 0.0
    %921 = vmatprep.subr.mxu0 0.0
    %922 = vmatpush1.msra.mxu0 0.0
    %923 = vmatprep.subr.mxu0 0.0
    %924 = vmatpush1.msra.mxu0 0.0
    %925 = vmatprep.subr.mxu0 0.0
    %926 = vmatpush1.msra.mxu0 0.0
    %927 = vmatprep.subr.mxu0 0.0
    %928 = vmatpush1.msra.mxu0 0.0
    %929 = vmatprep.subr.mxu0 0.0
    %930 = vmatpush1.msra.mxu0 0.0
    %931 = vmatprep.subr.mxu0 0.0
    %932 = vmatpush1.msra.mxu0 0.0
    %933 = vmatprep.subr.mxu0 0.0
    %934 = vmatpush1.msra.mxu0 0.0
    %935 = vmatprep.subr.mxu0 0.0
    %936 = vmatpush1.msra.mxu0 0.0
    %937 = vmatprep.subr.mxu0 0.0
    %938 = vmatpush1.msra.mxu0 0.0
    %939 = vmatprep.subr.mxu0 0.0
    %940 = vmatpush1.msra.mxu0 0.0
    %941 = vmatprep.subr.mxu0 0.0
    %942 = vmatpush1.msra.mxu0 0.0
    %943 = vmatprep.subr.mxu0 0.0
    %944 = vmatpush1.msra.mxu0 0.0
    %945 = vmatprep.subr.mxu0 0.0
    %946 = vmatpush1.msra.mxu0 0.0
    %947 = vmatprep.subr.mxu0 0.0
    %948 = vmatpush1.msra.mxu0 0.0
    %949 = vmatprep.subr.mxu0 0.0
    %950 = vmatpush1.msra.mxu0 0.0
    %951 = vmatprep.subr.mxu0 0.0
    %952 = vmatpush1.msra.mxu0 0.0
    %953 = vmatprep.subr.mxu0 0.0
    %954 = vmatpush1.msra.mxu0 0.0
    %955 = vmatprep.subr.mxu0 0.0
    %956 = vmatpush1.msra.mxu0 0.0
    %957 = vmatprep.subr.mxu0 0.0
    %958 = vmatpush1.msra.mxu0 0.0
    %959 = vmatprep.mubr.f32.mxu0 0.0
    %960 = vmatmul.mubr.f32.gmra.mrb[0].mxu0 %v893
    %v961 = vpop.f32.mrb[0].mxu0
    %v962 = vadd.f32 0.0, %v961
    %v963 = vpop.f32.mrb[0].mxu0
    %v964 = vadd.f32 0.0, %v963
    %965 = vdwg.mxu0
    %v967 = vrot.slane %v962, 2
    %v969 = vadd.f32 %v537, %v967
    %v970 = vmul.f32 %v969, 0.5
    %v971 = vtanh.pop %v970
    %v972 = vadd.f32 %v971, 1.0
    %v973 = vmul.f32 %v972, 0.5
    %v974 = vadd.f32 %v964, %v592
    %v976 = vrot.slane %v974, 2
    %v978 = vmul.f32 %v973, %v976
    %v979 = vadd.f32 %v539, %v978
    %v980 = vtanh.pop %v979
    %v981 = vsub.f32 1.0, %v973
    %983 = vrot.lane.b32.xlu0 %v980, 64
    %v984 = vpop.permute.xlu0 %983
    %v986 = vmul.f32 %v981, %v984
    %v987 = vrot.slane %v888, 6
    %v989 = vmul.f32 %v973, %v987
    %v990 = vadd.f32 %v986, %v989
    %v992 = vrot.slane %v990, 6
    %993 = vrot.lane.b32.xlu0 %v992, 64
    %v994 = vpop.permute.xlu0 %993
    %v995 = vsel %vm594, %v994, 0
    %997 = vmatprep.subr.mxu0 %v572
    %998 = vmatpush1.msra.mxu0 %v571
    %999 = vmatprep.subr.mxu0 %v574
    %1000 = vmatpush1.msra.mxu0 %v573
    %1001 = vmatprep.subr.mxu0 %v576
    %1002 = vmatpush1.msra.mxu0 %v575
    %1003 = vmatprep.subr.mxu0 %v578
    %1004 = vmatpush1.msra.mxu0 %v577
    %1005 = vmatprep.subr.mxu0 %v580
    %1006 = vmatpush1.msra.mxu0 %v579
    %1007 = vmatprep.subr.mxu0 %v582
    %1008 = vmatpush1.msra.mxu0 %v581
    %1009 = vmatprep.subr.mxu0 %v584
    %1010 = vmatpush1.msra.mxu0 %v583
    %1011 = vmatprep.subr.mxu0 %v586
    %1012 = vmatpush1.msra.mxu0 %v585
    %1013 = vmatprep.subr.mxu0 0.0
    %1014 = vmatpush1.msra.mxu0 0.0
    %1015 = vmatprep.subr.mxu0 0.0
    %1016 = vmatpush1.msra.mxu0 0.0
    %1017 = vmatprep.subr.mxu0 0.0
    %1018 = vmatpush1.msra.mxu0 0.0
    %1019 = vmatprep.subr.mxu0 0.0
    %1020 = vmatpush1.msra.mxu0 0.0
    %1021 = vmatprep.subr.mxu0 0.0
    %1022 = vmatpush1.msra.mxu0 0.0
    %1023 = vmatprep.subr.mxu0 0.0
    %1024 = vmatpush1.msra.mxu0 0.0
    %1025 = vmatprep.subr.mxu0 0.0
    %1026 = vmatpush1.msra.mxu0 0.0
    %1027 = vmatprep.subr.mxu0 0.0
    %1028 = vmatpush1.msra.mxu0 0.0
    %1029 = vmatprep.subr.mxu0 0.0
    %1030 = vmatpush1.msra.mxu0 0.0
    %1031 = vmatprep.subr.mxu0 0.0
    %1032 = vmatpush1.msra.mxu0 0.0
    %1033 = vmatprep.subr.mxu0 0.0
    %1034 = vmatpush1.msra.mxu0 0.0
    %1035 = vmatprep.subr.mxu0 0.0
    %1036 = vmatpush1.msra.mxu0 0.0
    %1037 = vmatprep.subr.mxu0 0.0
    %1038 = vmatpush1.msra.mxu0 0.0
    %1039 = vmatprep.subr.mxu0 0.0
    %1040 = vmatpush1.msra.mxu0 0.0
    %1041 = vmatprep.subr.mxu0 0.0
    %1042 = vmatpush1.msra.mxu0 0.0
    %1043 = vmatprep.subr.mxu0 0.0
    %1044 = vmatpush1.msra.mxu0 0.0
    %1045 = vmatprep.subr.mxu0 0.0
    %1046 = vmatpush1.msra.mxu0 0.0
    %1047 = vmatprep.subr.mxu0 0.0
    %1048 = vmatpush1.msra.mxu0 0.0
    %1049 = vmatprep.subr.mxu0 0.0
    %1050 = vmatpush1.msra.mxu0 0.0
    %1051 = vmatprep.subr.mxu0 0.0
    %1052 = vmatpush1.msra.mxu0 0.0
    %1053 = vmatprep.subr.mxu0 0.0
    %1054 = vmatpush1.msra.mxu0 0.0
    %1055 = vmatprep.subr.mxu0 0.0
    %1056 = vmatpush1.msra.mxu0 0.0
    %1057 = vmatprep.subr.mxu0 0.0
    %1058 = vmatpush1.msra.mxu0 0.0
    %1059 = vmatprep.subr.mxu0 0.0
    %1060 = vmatpush1.msra.mxu0 0.0
    %1061 = vmatprep.mubr.f32.mxu0 0.0
    %1062 = vmatmul.mubr.f32.gmra.mrb[0].mxu0 %v995
    %v1063 = vpop.f32.mrb[0].mxu0
    %v1064 = vadd.f32 0.0, %v1063
    %v1065 = vpop.f32.mrb[0].mxu0
    %v1066 = vadd.f32 0.0, %v1065
    %1067 = vdwg.mxu0
    %v1068 = vadd.f32 %v543, %v1064
    %v1069 = vmul.f32 %v1068, 0.5
    %v1070 = vtanh.pop %v1069
    %v1071 = vadd.f32 %v1070, 1.0
    %v1072 = vmul.f32 %v1071, 0.5
    %v1073 = vadd.f32 %v1066, %v592
    %v1074 = vmul.f32 %v1072, %v1073
    %v1075 = vadd.f32 %v545, %v1074
    %v1076 = vtanh.pop %v1075
    %v1077 = vsub.f32 1.0, %v1072
    %1079 = vrot.lane.b32.xlu0 %v1076, 64
    %v1080 = vpop.permute.xlu0 %1079
    %v1082 = vmul.f32 %v1077, %v1080
    %v1084 = vmul.f32 %v1072, %v992
    %v1085 = vadd.f32 %v1082, %v1084
    %1087 = vrot.lane.b32.xlu0 %v1085, 64
    %v1088 = vpop.permute.xlu0 %1087
    %v1089 = vsel %vm594, %v1088, 0
    %1091 = vmatprep.subr.mxu0 %v572
    %1092 = vmatpush1.msra.mxu0 %v571
    %1093 = vmatprep.subr.mxu0 %v574
    %1094 = vmatpush1.msra.mxu0 %v573
    %1095 = vmatprep.subr.mxu0 %v576
    %1096 = vmatpush1.msra.mxu0 %v575
    %1097 = vmatprep.subr.mxu0 %v578
    %1098 = vmatpush1.msra.mxu0 %v577
    %1099 = vmatprep.subr.mxu0 %v580
    %1100 = vmatpush1.msra.mxu0 %v579
    %1101 = vmatprep.subr.mxu0 %v582
    %1102 = vmatpush1.msra.mxu0 %v581
    %1103 = vmatprep.subr.mxu0 %v584
    %1104 = vmatpush1.msra.mxu0 %v583
    %1105 = vmatprep.subr.mxu0 %v586
    %1106 = vmatpush1.msra.mxu0 %v585
    %1107 = vmatprep.subr.mxu0 0.0
    %1108 = vmatpush1.msra.mxu0 0.0
    %1109 = vmatprep.subr.mxu0 0.0
    %1110 = vmatpush1.msra.mxu0 0.0
    %1111 = vmatprep.subr.mxu0 0.0
    %1112 = vmatpush1.msra.mxu0 0.0
    %1113 = vmatprep.subr.mxu0 0.0
    %1114 = vmatpush1.msra.mxu0 0.0
    %1115 = vmatprep.subr.mxu0 0.0
    %1116 = vmatpush1.msra.mxu0 0.0
    %1117 = vmatprep.subr.mxu0 0.0
    %1118 = vmatpush1.msra.mxu0 0.0
    %1119 = vmatprep.subr.mxu0 0.0
    %1120 = vmatpush1.msra.mxu0 0.0
    %1121 = vmatprep.subr.mxu0 0.0
    %1122 = vmatpush1.msra.mxu0 0.0
    %1123 = vmatprep.subr.mxu0 0.0
    %1124 = vmatpush1.msra.mxu0 0.0
    %1125 = vmatprep.subr.mxu0 0.0
    %1126 = vmatpush1.msra.mxu0 0.0
    %1127 = vmatprep.subr.mxu0 0.0
    %1128 = vmatpush1.msra.mxu0 0.0
    %1129 = vmatprep.subr.mxu0 0.0
    %1130 = vmatpush1.msra.mxu0 0.0
    %1131 = vmatprep.subr.mxu0 0.0
    %1132 = vmatpush1.msra.mxu0 0.0
    %1133 = vmatprep.subr.mxu0 0.0
    %1134 = vmatpush1.msra.mxu0 0.0
    %1135 = vmatprep.subr.mxu0 0.0
    %1136 = vmatpush1.msra.mxu0 0.0
    %1137 = vmatprep.subr.mxu0 0.0
    %1138 = vmatpush1.msra.mxu0 0.0
    %1139 = vmatprep.subr.mxu0 0.0
    %1140 = vmatpush1.msra.mxu0 0.0
    %1141 = vmatprep.subr.mxu0 0.0
    %1142 = vmatpush1.msra.mxu0 0.0
    %1143 = vmatprep.subr.mxu0 0.0
    %1144 = vmatpush1.msra.mxu0 0.0
    %1145 = vmatprep.subr.mxu0 0.0
    %1146 = vmatpush1.msra.mxu0 0.0
    %1147 = vmatprep.subr.mxu0 0.0
    %1148 = vmatpush1.msra.mxu0 0.0
    %1149 = vmatprep.subr.mxu0 0.0
    %1150 = vmatpush1.msra.mxu0 0.0
    %1151 = vmatprep.subr.mxu0 0.0
    %1152 = vmatpush1.msra.mxu0 0.0
    %1153 = vmatprep.subr.mxu0 0.0
    %1154 = vmatpush1.msra.mxu0 0.0
    %1155 = vmatprep.mubr.f32.mxu0 0.0
    %1156 = vmatmul.mubr.f32.gmra.mrb[0].mxu0 %v1089
    %v1157 = vpop.f32.mrb[0].mxu0
    %v1158 = vadd.f32 0.0, %v1157
    %v1159 = vpop.f32.mrb[0].mxu0
    %v1160 = vadd.f32 0.0, %v1159
    %1161 = vdwg.mxu0
    %v1163 = vrot.slane %v1158, 6
    %v1165 = vadd.f32 %v543, %v1163
    %v1166 = vmul.f32 %v1165, 0.5
    %v1167 = vtanh.pop %v1166
    %v1168 = vadd.f32 %v1167, 1.0
    %v1169 = vmul.f32 %v1168, 0.5
    %v1170 = vadd.f32 %v1160, %v592
    %v1172 = vrot.slane %v1170, 6
    %v1174 = vmul.f32 %v1169, %v1172
    %v1175 = vadd.f32 %v545, %v1174
    %v1176 = vtanh.pop %v1175
    %v1177 = vsub.f32 1.0, %v1169
    %1179 = vrot.lane.b32.xlu0 %v1176, 64
    %v1180 = vpop.permute.xlu0 %1179
    %v1182 = vmul.f32 %v1177, %v1180
    %v1183 = vrot.slane %v1085, 6
    %v1185 = vmul.f32 %v1169, %v1183
    %v1186 = vadd.f32 %v1182, %v1185
    %v1188 = vrot.slane %v1186, 2
    %1189 = vrot.lane.b32.xlu0 %v1188, 64
    %v1190 = vpop.permute.xlu0 %1189
    %v1191 = vsel %vm594, %v1190, 0
    %1193 = vmatprep.subr.mxu0 %v572
    %1194 = vmatpush1.msra.mxu0 %v571
    %1195 = vmatprep.subr.mxu0 %v574
    %1196 = vmatpush1.msra.mxu0 %v573
    %1197 = vmatprep.subr.mxu0 %v576
    %1198 = vmatpush1.msra.mxu0 %v575
    %1199 = vmatprep.subr.mxu0 %v578
    %1200 = vmatpush1.msra.mxu0 %v577
    %1201 = vmatprep.subr.mxu0 %v580
    %1202 = vmatpush1.msra.mxu0 %v579
    %1203 = vmatprep.subr.mxu0 %v582
    %1204 = vmatpush1.msra.mxu0 %v581
    %1205 = vmatprep.subr.mxu0 %v584
    %1206 = vmatpush1.msra.mxu0 %v583
    %1207 = vmatprep.subr.mxu0 %v586
    %1208 = vmatpush1.msra.mxu0 %v585
    %1209 = vmatprep.subr.mxu0 0.0
    %1210 = vmatpush1.msra.mxu0 0.0
    %1211 = vmatprep.subr.mxu0 0.0
    %1212 = vmatpush1.msra.mxu0 0.0
    %1213 = vmatprep.subr.mxu0 0.0
    %1214 = vmatpush1.msra.mxu0 0.0
    %1215 = vmatprep.subr.mxu0 0.0
    %1216 = vmatpush1.msra.mxu0 0.0
    %1217 = vmatprep.subr.mxu0 0.0
    %1218 = vmatpush1.msra.mxu0 0.0
    %1219 = vmatprep.subr.mxu0 0.0
    %1220 = vmatpush1.msra.mxu0 0.0
    %1221 = vmatprep.subr.mxu0 0.0
    %1222 = vmatpush1.msra.mxu0 0.0
    %1223 = vmatprep.subr.mxu0 0.0
    %1224 = vmatpush1.msra.mxu0 0.0
    %1225 = vmatprep.subr.mxu0 0.0
    %1226 = vmatpush1.msra.mxu0 0.0
    %1227 = vmatprep.subr.mxu0 0.0
    %1228 = vmatpush1.msra.mxu0 0.0
    %1229 = vmatprep.subr.mxu0 0.0
    %1230 = vmatpush1.msra.mxu0 0.0
    %1231 = vmatprep.subr.mxu0 0.0
    %1232 = vmatpush1.msra.mxu0 0.0
    %1233 = vmatprep.subr.mxu0 0.0
    %1234 = vmatpush1.msra.mxu0 0.0
    %1235 = vmatprep.subr.mxu0 0.0
    %1236 = vmatpush1.msra.mxu0 0.0
    %1237 = vmatprep.subr.mxu0 0.0
    %1238 = vmatpush1.msra.mxu0 0.0
    %1239 = vmatprep.subr.mxu0 0.0
    %1240 = vmatpush1.msra.mxu0 0.0
    %1241 = vmatprep.subr.mxu0 0.0
    %1242 = vmatpush1.msra.mxu0 0.0
    %1243 = vmatprep.subr.mxu0 0.0
    %1244 = vmatpush1.msra.mxu0 0.0
    %1245 = vmatprep.subr.mxu0 0.0
    %1246 = vmatpush1.msra.mxu0 0.0
    %1247 = vmatprep.subr.mxu0 0.0
    %1248 = vmatpush1.msra.mxu0 0.0
    %1249 = vmatprep.subr.mxu0 0.0
    %1250 = vmatpush1.msra.mxu0 0.0
    %1251 = vmatprep.subr.mxu0 0.0
    %1252 = vmatpush1.msra.mxu0 0.0
    %1253 = vmatprep.subr.mxu0 0.0
    %1254 = vmatpush1.msra.mxu0 0.0
    %1255 = vmatprep.subr.mxu0 0.0
    %1256 = vmatpush1.msra.mxu0 0.0
    %1257 = vmatprep.mubr.f32.mxu0 0.0
    %1258 = vmatmul.mubr.f32.gmra.mrb[0].mxu0 %v1191
    %v1259 = vpop.f32.mrb[0].mxu0
    %v1260 = vadd.f32 0.0, %v1259
    %v1261 = vpop.f32.mrb[0].mxu0
    %v1262 = vadd.f32 0.0, %v1261
    %1263 = vdwg.mxu0
    %v1265 = vrot.slane %v1260, 4
    %v1267 = vadd.f32 %v543, %v1265
    %v1268 = vmul.f32 %v1267, 0.5
    %v1269 = vtanh.pop %v1268
    %v1270 = vadd.f32 %v1269, 1.0
    %v1271 = vmul.f32 %v1270, 0.5
    %v1272 = vadd.f32 %v1262, %v592
    %v1274 = vrot.slane %v1272, 4
    %v1276 = vmul.f32 %v1271, %v1274
    %v1277 = vadd.f32 %v545, %v1276
    %v1278 = vtanh.pop %v1277
    %v1279 = vsub.f32 1.0, %v1271
    %1281 = vrot.lane.b32.xlu0 %v1278, 64
    %v1282 = vpop.permute.xlu0 %1281
    %v1284 = vmul.f32 %v1279, %v1282
    %v1285 = vrot.slane %v1186, 6
    %v1287 = vmul.f32 %v1271, %v1285
    %v1288 = vadd.f32 %v1284, %v1287
    %v1290 = vrot.slane %v1288, 4
    %1291 = vrot.lane.b32.xlu0 %v1290, 64
    %v1292 = vpop.permute.xlu0 %1291
    %v1293 = vsel %vm594, %v1292, 0
    %1295 = vmatprep.subr.mxu0 %v572
    %1296 = vmatpush1.msra.mxu0 %v571
    %1297 = vmatprep.subr.mxu0 %v574
    %1298 = vmatpush1.msra.mxu0 %v573
    %1299 = vmatprep.subr.mxu0 %v576
    %1300 = vmatpush1.msra.mxu0 %v575
    %1301 = vmatprep.subr.mxu0 %v578
    %1302 = vmatpush1.msra.mxu0 %v577
    %1303 = vmatprep.subr.mxu0 %v580
    %1304 = vmatpush1.msra.mxu0 %v579
    %1305 = vmatprep.subr.mxu0 %v582
    %1306 = vmatpush1.msra.mxu0 %v581
    %1307 = vmatprep.subr.mxu0 %v584
    %1308 = vmatpush1.msra.mxu0 %v583
    %1309 = vmatprep.subr.mxu0 %v586
    %1310 = vmatpush1.msra.mxu0 %v585
    %1311 = vmatprep.subr.mxu0 0.0
    %1312 = vmatpush1.msra.mxu0 0.0
    %1313 = vmatprep.subr.mxu0 0.0
    %1314 = vmatpush1.msra.mxu0 0.0
    %1315 = vmatprep.subr.mxu0 0.0
    %1316 = vmatpush1.msra.mxu0 0.0
    %1317 = vmatprep.subr.mxu0 0.0
    %1318 = vmatpush1.msra.mxu0 0.0
    %1319 = vmatprep.subr.mxu0 0.0
    %1320 = vmatpush1.msra.mxu0 0.0
    %1321 = vmatprep.subr.mxu0 0.0
    %1322 = vmatpush1.msra.mxu0 0.0
    %1323 = vmatprep.subr.mxu0 0.0
    %1324 = vmatpush1.msra.mxu0 0.0
    %1325 = vmatprep.subr.mxu0 0.0
    %1326 = vmatpush1.msra.mxu0 0.0
    %1327 = vmatprep.subr.mxu0 0.0
    %1328 = vmatpush1.msra.mxu0 0.0
    %1329 = vmatprep.subr.mxu0 0.0
    %1330 = vmatpush1.msra.mxu0 0.0
    %1331 = vmatprep.subr.mxu0 0.0
    %1332 = vmatpush1.msra.mxu0 0.0
    %1333 = vmatprep.subr.mxu0 0.0
    %1334 = vmatpush1.msra.mxu0 0.0
    %1335 = vmatprep.subr.mxu0 0.0
    %1336 = vmatpush1.msra.mxu0 0.0
    %1337 = vmatprep.subr.mxu0 0.0
    %1338 = vmatpush1.msra.mxu0 0.0
    %1339 = vmatprep.subr.mxu0 0.0
    %1340 = vmatpush1.msra.mxu0 0.0
    %1341 = vmatprep.subr.mxu0 0.0
    %1342 = vmatpush1.msra.mxu0 0.0
    %1343 = vmatprep.subr.mxu0 0.0
    %1344 = vmatpush1.msra.mxu0 0.0
    %1345 = vmatprep.subr.mxu0 0.0
    %1346 = vmatpush1.msra.mxu0 0.0
    %1347 = vmatprep.subr.mxu0 0.0
    %1348 = vmatpush1.msra.mxu0 0.0
    %1349 = vmatprep.subr.mxu0 0.0
    %1350 = vmatpush1.msra.mxu0 0.0
    %1351 = vmatprep.subr.mxu0 0.0
    %1352 = vmatpush1.msra.mxu0 0.0
    %1353 = vmatprep.subr.mxu0 0.0
    %1354 = vmatpush1.msra.mxu0 0.0
    %1355 = vmatprep.subr.mxu0 0.0
    %1356 = vmatpush1.msra.mxu0 0.0
    %1357 = vmatprep.subr.mxu0 0.0
    %1358 = vmatpush1.msra.mxu0 0.0
    %1359 = vmatprep.mubr.f32.mxu0 0.0
    %1360 = vmatmul.mubr.f32.gmra.mrb[0].mxu0 %v1293
    %v1361 = vpop.f32.mrb[0].mxu0
    %v1362 = vadd.f32 0.0, %v1361
    %v1363 = vpop.f32.mrb[0].mxu0
    %v1364 = vadd.f32 0.0, %v1363
    %1365 = vdwg.mxu0
    %v1367 = vrot.slane %v1362, 2
    %v1369 = vadd.f32 %v543, %v1367
    %v1370 = vmul.f32 %v1369, 0.5
    %v1371 = vtanh.pop %v1370
    %v1372 = vadd.f32 %v1371, 1.0
    %v1373 = vmul.f32 %v1372, 0.5
    %v1374 = vadd.f32 %v1364, %v592
    %v1376 = vrot.slane %v1374, 2
    %v1378 = vmul.f32 %v1373, %v1376
    %v1379 = vadd.f32 %v545, %v1378
    %v1380 = vtanh.pop %v1379
    %v1381 = vsub.f32 1.0, %v1373
    %1383 = vrot.lane.b32.xlu0 %v1380, 64
    %v1384 = vpop.permute.xlu0 %1383
    %v1386 = vmul.f32 %v1381, %v1384
    %v1387 = vrot.slane %v1288, 6
    %v1389 = vmul.f32 %v1373, %v1387
    %v1390 = vadd.f32 %v1386, %v1389
    %v1392 = vrot.slane %v1390, 6
    %1393 = vrot.lane.b32.xlu0 %v1392, 64
    %v1394 = vpop.permute.xlu0 %1393
    %v1395 = vsel %vm594, %v1394, 0
    %1397 = vmatprep.subr.mxu0 %v572
    %1398 = vmatpush1.msra.mxu0 %v571
    %1399 = vmatprep.subr.mxu0 %v574
    %1400 = vmatpush1.msra.mxu0 %v573
    %1401 = vmatprep.subr.mxu0 %v576
    %1402 = vmatpush1.msra.mxu0 %v575
    %1403 = vmatprep.subr.mxu0 %v578
    %1404 = vmatpush1.msra.mxu0 %v577
    %1405 = vmatprep.subr.mxu0 %v580
    %1406 = vmatpush1.msra.mxu0 %v579
    %1407 = vmatprep.subr.mxu0 %v582
    %1408 = vmatpush1.msra.mxu0 %v581
    %1409 = vmatprep.subr.mxu0 %v584
    %1410 = vmatpush1.msra.mxu0 %v583
    %1411 = vmatprep.subr.mxu0 %v586
    %1412 = vmatpush1.msra.mxu0 %v585
    %1413 = vmatprep.subr.mxu0 0.0
    %1414 = vmatpush1.msra.mxu0 0.0
    %1415 = vmatprep.subr.mxu0 0.0
    %1416 = vmatpush1.msra.mxu0 0.0
    %1417 = vmatprep.subr.mxu0 0.0
    %1418 = vmatpush1.msra.mxu0 0.0
    %1419 = vmatprep.subr.mxu0 0.0
    %1420 = vmatpush1.msra.mxu0 0.0
    %1421 = vmatprep.subr.mxu0 0.0
    %1422 = vmatpush1.msra.mxu0 0.0
    %1423 = vmatprep.subr.mxu0 0.0
    %1424 = vmatpush1.msra.mxu0 0.0
    %1425 = vmatprep.subr.mxu0 0.0
    %1426 = vmatpush1.msra.mxu0 0.0
    %1427 = vmatprep.subr.mxu0 0.0
    %1428 = vmatpush1.msra.mxu0 0.0
    %1429 = vmatprep.subr.mxu0 0.0
    %1430 = vmatpush1.msra.mxu0 0.0
    %1431 = vmatprep.subr.mxu0 0.0
    %1432 = vmatpush1.msra.mxu0 0.0
    %1433 = vmatprep.subr.mxu0 0.0
    %1434 = vmatpush1.msra.mxu0 0.0
    %1435 = vmatprep.subr.mxu0 0.0
    %1436 = vmatpush1.msra.mxu0 0.0
    %1437 = vmatprep.subr.mxu0 0.0
    %1438 = vmatpush1.msra.mxu0 0.0
    %1439 = vmatprep.subr.mxu0 0.0
    %1440 = vmatpush1.msra.mxu0 0.0
    %1441 = vmatprep.subr.mxu0 0.0
    %1442 = vmatpush1.msra.mxu0 0.0
    %1443 = vmatprep.subr.mxu0 0.0
    %1444 = vmatpush1.msra.mxu0 0.0
    %1445 = vmatprep.subr.mxu0 0.0
    %1446 = vmatpush1.msra.mxu0 0.0
    %1447 = vmatprep.subr.mxu0 0.0
    %1448 = vmatpush1.msra.mxu0 0.0
    %1449 = vmatprep.subr.mxu0 0.0
    %1450 = vmatpush1.msra.mxu0 0.0
    %1451 = vmatprep.subr.mxu0 0.0
    %1452 = vmatpush1.msra.mxu0 0.0
    %1453 = vmatprep.subr.mxu0 0.0
    %1454 = vmatpush1.msra.mxu0 0.0
    %1455 = vmatprep.subr.mxu0 0.0
    %1456 = vmatpush1.msra.mxu0 0.0
    %1457 = vmatprep.subr.mxu0 0.0
    %1458 = vmatpush1.msra.mxu0 0.0
    %1459 = vmatprep.subr.mxu0 0.0
    %1460 = vmatpush1.msra.mxu0 0.0
    %1461 = vmatprep.mubr.f32.mxu0 0.0
    %1462 = vmatmul.mubr.f32.gmra.mrb[0].mxu0 %v1395
    %v1463 = vpop.f32.mrb[0].mxu0
    %v1464 = vadd.f32 0.0, %v1463
    %v1465 = vpop.f32.mrb[0].mxu0
    %v1466 = vadd.f32 0.0, %v1465
    %1467 = vdwg.mxu0
    %v1468 = vadd.f32 %v549, %v1464
    %v1469 = vmul.f32 %v1468, 0.5
    %v1470 = vtanh.pop %v1469
    %v1471 = vadd.f32 %v1470, 1.0
    %v1472 = vmul.f32 %v1471, 0.5
    %v1473 = vadd.f32 %v1466, %v592
    %v1474 = vmul.f32 %v1472, %v1473
    %v1475 = vadd.f32 %v551, %v1474
    %v1476 = vtanh.pop %v1475
    %v1477 = vsub.f32 1.0, %v1472
    %1479 = vrot.lane.b32.xlu0 %v1476, 64
    %v1480 = vpop.permute.xlu0 %1479
    %v1482 = vmul.f32 %v1477, %v1480
    %v1484 = vmul.f32 %v1472, %v1392
    %v1485 = vadd.f32 %v1482, %v1484
    %1487 = vrot.lane.b32.xlu0 %v1485, 64
    %v1488 = vpop.permute.xlu0 %1487
    %v1489 = vsel %vm594, %v1488, 0
    %1491 = vmatprep.subr.mxu0 %v572
    %1492 = vmatpush1.msra.mxu0 %v571
    %1493 = vmatprep.subr.mxu0 %v574
    %1494 = vmatpush1.msra.mxu0 %v573
    %1495 = vmatprep.subr.mxu0 %v576
    %1496 = vmatpush1.msra.mxu0 %v575
    %1497 = vmatprep.subr.mxu0 %v578
    %1498 = vmatpush1.msra.mxu0 %v577
    %1499 = vmatprep.subr.mxu0 %v580
    %1500 = vmatpush1.msra.mxu0 %v579
    %1501 = vmatprep.subr.mxu0 %v582
    %1502 = vmatpush1.msra.mxu0 %v581
    %1503 = vmatprep.subr.mxu0 %v584
    %1504 = vmatpush1.msra.mxu0 %v583
    %1505 = vmatprep.subr.mxu0 %v586
    %1506 = vmatpush1.msra.mxu0 %v585
    %1507 = vmatprep.subr.mxu0 0.0
    %1508 = vmatpush1.msra.mxu0 0.0
    %1509 = vmatprep.subr.mxu0 0.0
    %1510 = vmatpush1.msra.mxu0 0.0
    %1511 = vmatprep.subr.mxu0 0.0
    %1512 = vmatpush1.msra.mxu0 0.0
    %1513 = vmatprep.subr.mxu0 0.0
    %1514 = vmatpush1.msra.mxu0 0.0
    %1515 = vmatprep.subr.mxu0 0.0
    %1516 = vmatpush1.msra.mxu0 0.0
    %1517 = vmatprep.subr.mxu0 0.0
    %1518 = vmatpush1.msra.mxu0 0.0
    %1519 = vmatprep.subr.mxu0 0.0
    %1520 = vmatpush1.msra.mxu0 0.0
    %1521 = vmatprep.subr.mxu0 0.0
    %1522 = vmatpush1.msra.mxu0 0.0
    %1523 = vmatprep.subr.mxu0 0.0
    %1524 = vmatpush1.msra.mxu0 0.0
    %1525 = vmatprep.subr.mxu0 0.0
    %1526 = vmatpush1.msra.mxu0 0.0
    %1527 = vmatprep.subr.mxu0 0.0
    %1528 = vmatpush1.msra.mxu0 0.0
    %1529 = vmatprep.subr.mxu0 0.0
    %1530 = vmatpush1.msra.mxu0 0.0
    %1531 = vmatprep.subr.mxu0 0.0
    %1532 = vmatpush1.msra.mxu0 0.0
    %1533 = vmatprep.subr.mxu0 0.0
    %1534 = vmatpush1.msra.mxu0 0.0
    %1535 = vmatprep.subr.mxu0 0.0
    %1536 = vmatpush1.msra.mxu0 0.0
    %1537 = vmatprep.subr.mxu0 0.0
    %1538 = vmatpush1.msra.mxu0 0.0
    %1539 = vmatprep.subr.mxu0 0.0
    %1540 = vmatpush1.msra.mxu0 0.0
    %1541 = vmatprep.subr.mxu0 0.0
    %1542 = vmatpush1.msra.mxu0 0.0
    %1543 = vmatprep.subr.mxu0 0.0
    %1544 = vmatpush1.msra.mxu0 0.0
    %1545 = vmatprep.subr.mxu0 0.0
    %1546 = vmatpush1.msra.mxu0 0.0
    %1547 = vmatprep.subr.mxu0 0.0
    %1548 = vmatpush1.msra.mxu0 0.0
    %1549 = vmatprep.subr.mxu0 0.0
    %1550 = vmatpush1.msra.mxu0 0.0
    %1551 = vmatprep.subr.mxu0 0.0
    %1552 = vmatpush1.msra.mxu0 0.0
    %1553 = vmatprep.subr.mxu0 0.0
    %1554 = vmatpush1.msra.mxu0 0.0
    %1555 = vmatprep.mubr.f32.mxu0 0.0
    %1556 = vmatmul.mubr.f32.gmra.mrb[0].mxu0 %v1489
    %v1557 = vpop.f32.mrb[0].mxu0
    %v1558 = vadd.f32 0.0, %v1557
    %v1559 = vpop.f32.mrb[0].mxu0
    %v1560 = vadd.f32 0.0, %v1559
    %1561 = vdwg.mxu0
    %v1563 = vrot.slane %v1558, 6
    %v1565 = vadd.f32 %v549, %v1563
    %v1566 = vmul.f32 %v1565, 0.5
    %v1567 = vtanh.pop %v1566
    %v1568 = vadd.f32 %v1567, 1.0
    %v1569 = vmul.f32 %v1568, 0.5
    %v1570 = vadd.f32 %v1560, %v592
    %v1572 = vrot.slane %v1570, 6
    %v1574 = vmul.f32 %v1569, %v1572
    %v1575 = vadd.f32 %v551, %v1574
    %v1576 = vtanh.pop %v1575
    %v1577 = vsub.f32 1.0, %v1569
    %1579 = vrot.lane.b32.xlu0 %v1576, 64
    %v1580 = vpop.permute.xlu0 %1579
    %v1582 = vmul.f32 %v1577, %v1580
    %v1583 = vrot.slane %v1485, 6
    %v1585 = vmul.f32 %v1569, %v1583
    %v1586 = vadd.f32 %v1582, %v1585
    %v1588 = vrot.slane %v1586, 2
    %1589 = vrot.lane.b32.xlu0 %v1588, 64
    %v1590 = vpop.permute.xlu0 %1589
    %v1591 = vsel %vm594, %v1590, 0
    %1593 = vmatprep.subr.mxu0 %v572
    %1594 = vmatpush1.msra.mxu0 %v571
    %1595 = vmatprep.subr.mxu0 %v574
    %1596 = vmatpush1.msra.mxu0 %v573
    %1597 = vmatprep.subr.mxu0 %v576
    %1598 = vmatpush1.msra.mxu0 %v575
    %1599 = vmatprep.subr.mxu0 %v578
    %1600 = vmatpush1.msra.mxu0 %v577
    %1601 = vmatprep.subr.mxu0 %v580
    %1602 = vmatpush1.msra.mxu0 %v579
    %1603 = vmatprep.subr.mxu0 %v582
    %1604 = vmatpush1.msra.mxu0 %v581
    %1605 = vmatprep.subr.mxu0 %v584
    %1606 = vmatpush1.msra.mxu0 %v583
    %1607 = vmatprep.subr.mxu0 %v586
    %1608 = vmatpush1.msra.mxu0 %v585
    %1609 = vmatprep.subr.mxu0 0.0
    %1610 = vmatpush1.msra.mxu0 0.0
    %1611 = vmatprep.subr.mxu0 0.0
    %1612 = vmatpush1.msra.mxu0 0.0
    %1613 = vmatprep.subr.mxu0 0.0
    %1614 = vmatpush1.msra.mxu0 0.0
    %1615 = vmatprep.subr.mxu0 0.0
    %1616 = vmatpush1.msra.mxu0 0.0
    %1617 = vmatprep.subr.mxu0 0.0
    %1618 = vmatpush1.msra.mxu0 0.0
    %1619 = vmatprep.subr.mxu0 0.0
    %1620 = vmatpush1.msra.mxu0 0.0
    %1621 = vmatprep.subr.mxu0 0.0
    %1622 = vmatpush1.msra.mxu0 0.0
    %1623 = vmatprep.subr.mxu0 0.0
    %1624 = vmatpush1.msra.mxu0 0.0
    %1625 = vmatprep.subr.mxu0 0.0
    %1626 = vmatpush1.msra.mxu0 0.0
    %1627 = vmatprep.subr.mxu0 0.0
    %1628 = vmatpush1.msra.mxu0 0.0
    %1629 = vmatprep.subr.mxu0 0.0
    %1630 = vmatpush1.msra.mxu0 0.0
    %1631 = vmatprep.subr.mxu0 0.0
    %1632 = vmatpush1.msra.mxu0 0.0
    %1633 = vmatprep.subr.mxu0 0.0
    %1634 = vmatpush1.msra.mxu0 0.0
    %1635 = vmatprep.subr.mxu0 0.0
    %1636 = vmatpush1.msra.mxu0 0.0
    %1637 = vmatprep.subr.mxu0 0.0
    %1638 = vmatpush1.msra.mxu0 0.0
    %1639 = vmatprep.subr.mxu0 0.0
    %1640 = vmatpush1.msra.mxu0 0.0
    %1641 = vmatprep.subr.mxu0 0.0
    %1642 = vmatpush1.msra.mxu0 0.0
    %1643 = vmatprep.subr.mxu0 0.0
    %1644 = vmatpush1.msra.mxu0 0.0
    %1645 = vmatprep.subr.mxu0 0.0
    %1646 = vmatpush1.msra.mxu0 0.0
    %1647 = vmatprep.subr.mxu0 0.0
    %1648 = vmatpush1.msra.mxu0 0.0
    %1649 = vmatprep.subr.mxu0 0.0
    %1650 = vmatpush1.msra.mxu0 0.0
    %1651 = vmatprep.subr.mxu0 0.0
    %1652 = vmatpush1.msra.mxu0 0.0
    %1653 = vmatprep.subr.mxu0 0.0
    %1654 = vmatpush1.msra.mxu0 0.0
    %1655 = vmatprep.subr.mxu0 0.0
    %1656 = vmatpush1.msra.mxu0 0.0
    %1657 = vmatprep.mubr.f32.mxu0 0.0
    %1658 = vmatmul.mubr.f32.gmra.mrb[0].mxu0 %v1591
    %v1659 = vpop.f32.mrb[0].mxu0
    %v1660 = vadd.f32 0.0, %v1659
    %v1661 = vpop.f32.mrb[0].mxu0
    %v1662 = vadd.f32 0.0, %v1661
    %1663 = vdwg.mxu0
    %v1665 = vrot.slane %v1660, 4
    %v1667 = vadd.f32 %v549, %v1665
    %v1668 = vmul.f32 %v1667, 0.5
    %v1669 = vtanh.pop %v1668
    %v1670 = vadd.f32 %v1669, 1.0
    %v1671 = vmul.f32 %v1670, 0.5
    %v1672 = vadd.f32 %v1662, %v592
    %v1674 = vrot.slane %v1672, 4
    %v1676 = vmul.f32 %v1671, %v1674
    %v1677 = vadd.f32 %v551, %v1676
    %v1678 = vtanh.pop %v1677
    %v1679 = vsub.f32 1.0, %v1671
    %1681 = vrot.lane.b32.xlu0 %v1678, 64
    %v1682 = vpop.permute.xlu0 %1681
    %v1684 = vmul.f32 %v1679, %v1682
    %v1685 = vrot.slane %v1586, 6
    %v1687 = vmul.f32 %v1671, %v1685
    %v1688 = vadd.f32 %v1684, %v1687
    %v1690 = vrot.slane %v1688, 4
    %1691 = vrot.lane.b32.xlu0 %v1690, 64
    %v1692 = vpop.permute.xlu0 %1691
    %v1693 = vsel %vm594, %v1692, 0
    %1695 = vmatprep.subr.mxu0 %v572
    %1696 = vmatpush1.msra.mxu0 %v571
    %1697 = vmatprep.subr.mxu0 %v574
    %1698 = vmatpush1.msra.mxu0 %v573
    %1699 = vmatprep.subr.mxu0 %v576
    %1700 = vmatpush1.msra.mxu0 %v575
    %1701 = vmatprep.subr.mxu0 %v578
    %1702 = vmatpush1.msra.mxu0 %v577
    %1703 = vmatprep.subr.mxu0 %v580
    %1704 = vmatpush1.msra.mxu0 %v579
    %1705 = vmatprep.subr.mxu0 %v582
    %1706 = vmatpush1.msra.mxu0 %v581
    %1707 = vmatprep.subr.mxu0 %v584
    %1708 = vmatpush1.msra.mxu0 %v583
    %1709 = vmatprep.subr.mxu0 %v586
    %1710 = vmatpush1.msra.mxu0 %v585
    %1711 = vmatprep.subr.mxu0 0.0
    %1712 = vmatpush1.msra.mxu0 0.0
    %1713 = vmatprep.subr.mxu0 0.0
    %1714 = vmatpush1.msra.mxu0 0.0
    %1715 = vmatprep.subr.mxu0 0.0
    %1716 = vmatpush1.msra.mxu0 0.0
    %1717 = vmatprep.subr.mxu0 0.0
    %1718 = vmatpush1.msra.mxu0 0.0
    %1719 = vmatprep.subr.mxu0 0.0
    %1720 = vmatpush1.msra.mxu0 0.0
    %1721 = vmatprep.subr.mxu0 0.0
    %1722 = vmatpush1.msra.mxu0 0.0
    %1723 = vmatprep.subr.mxu0 0.0
    %1724 = vmatpush1.msra.mxu0 0.0
    %1725 = vmatprep.subr.mxu0 0.0
    %1726 = vmatpush1.msra.mxu0 0.0
    %1727 = vmatprep.subr.mxu0 0.0
    %1728 = vmatpush1.msra.mxu0 0.0
    %1729 = vmatprep.subr.mxu0 0.0
    %1730 = vmatpush1.msra.mxu0 0.0
    %1731 = vmatprep.subr.mxu0 0.0
    %1732 = vmatpush1.msra.mxu0 0.0
    %1733 = vmatprep.subr.mxu0 0.0
    %1734 = vmatpush1.msra.mxu0 0.0
    %1735 = vmatprep.subr.mxu0 0.0
    %1736 = vmatpush1.msra.mxu0 0.0
    %1737 = vmatprep.subr.mxu0 0.0
    %1738 = vmatpush1.msra.mxu0 0.0
    %1739 = vmatprep.subr.mxu0 0.0
    %1740 = vmatpush1.msra.mxu0 0.0
    %1741 = vmatprep.subr.mxu0 0.0
    %1742 = vmatpush1.msra.mxu0 0.0
    %1743 = vmatprep.subr.mxu0 0.0
    %1744 = vmatpush1.msra.mxu0 0.0
    %1745 = vmatprep.subr.mxu0 0.0
    %1746 = vmatpush1.msra.mxu0 0.0
    %1747 = vmatprep.subr.mxu0 0.0
    %1748 = vmatpush1.msra.mxu0 0.0
    %1749 = vmatprep.subr.mxu0 0.0
    %1750 = vmatpush1.msra.mxu0 0.0
    %1751 = vmatprep.subr.mxu0 0.0
    %1752 = vmatpush1.msra.mxu0 0.0
    %1753 = vmatprep.subr.mxu0 0.0
    %1754 = vmatpush1.msra.mxu0 0.0
    %1755 = vmatprep.subr.mxu0 0.0
    %1756 = vmatpush1.msra.mxu0 0.0
    %1757 = vmatprep.subr.mxu0 0.0
    %1758 = vmatpush1.msra.mxu0 0.0
    %1759 = vmatprep.mubr.f32.mxu0 0.0
    %1760 = vmatmul.mubr.f32.gmra.mrb[0].mxu0 %v1693
    %v1761 = vpop.f32.mrb[0].mxu0
    %v1762 = vadd.f32 0.0, %v1761
    %v1763 = vpop.f32.mrb[0].mxu0
    %v1764 = vadd.f32 0.0, %v1763
    %1765 = vdwg.mxu0
    %v1767 = vrot.slane %v1762, 2
    %v1769 = vadd.f32 %v549, %v1767
    %v1770 = vmul.f32 %v1769, 0.5
    %v1771 = vtanh.pop %v1770
    %v1772 = vadd.f32 %v1771, 1.0
    %v1773 = vmul.f32 %v1772, 0.5
    %v1774 = vadd.f32 %v1764, %v592
    %v1776 = vrot.slane %v1774, 2
    %v1778 = vmul.f32 %v1773, %v1776
    %v1779 = vadd.f32 %v551, %v1778
    %v1780 = vtanh.pop %v1779
    %v1781 = vsub.f32 1.0, %v1773
    %1783 = vrot.lane.b32.xlu0 %v1780, 64
    %v1784 = vpop.permute.xlu0 %1783
    %v1786 = vmul.f32 %v1781, %v1784
    %v1787 = vrot.slane %v1688, 6
    %v1789 = vmul.f32 %v1773, %v1787
    %v1790 = vadd.f32 %v1786, %v1789
    %v1792 = vrot.slane %v1790, 6
    %1793 = vrot.lane.b32.xlu0 %v1792, 64
    %v1794 = vpop.permute.xlu0 %1793
    %v1795 = vsel %vm594, %v1794, 0
    %1797 = vmatprep.subr.mxu0 %v572
    %1798 = vmatpush1.msra.mxu0 %v571
    %1799 = vmatprep.subr.mxu0 %v574
    %1800 = vmatpush1.msra.mxu0 %v573
    %1801 = vmatprep.subr.mxu0 %v576
    %1802 = vmatpush1.msra.mxu0 %v575
    %1803 = vmatprep.subr.mxu0 %v578
    %1804 = vmatpush1.msra.mxu0 %v577
    %1805 = vmatprep.subr.mxu0 %v580
    %1806 = vmatpush1.msra.mxu0 %v579
    %1807 = vmatprep.subr.mxu0 %v582
    %1808 = vmatpush1.msra.mxu0 %v581
    %1809 = vmatprep.subr.mxu0 %v584
    %1810 = vmatpush1.msra.mxu0 %v583
    %1811 = vmatprep.subr.mxu0 %v586
    %1812 = vmatpush1.msra.mxu0 %v585
    %1813 = vmatprep.subr.mxu0 0.0
    %1814 = vmatpush1.msra.mxu0 0.0
    %1815 = vmatprep.subr.mxu0 0.0
    %1816 = vmatpush1.msra.mxu0 0.0
    %1817 = vmatprep.subr.mxu0 0.0
    %1818 = vmatpush1.msra.mxu0 0.0
    %1819 = vmatprep.subr.mxu0 0.0
    %1820 = vmatpush1.msra.mxu0 0.0
    %1821 = vmatprep.subr.mxu0 0.0
    %1822 = vmatpush1.msra.mxu0 0.0
    %1823 = vmatprep.subr.mxu0 0.0
    %1824 = vmatpush1.msra.mxu0 0.0
    %1825 = vmatprep.subr.mxu0 0.0
    %1826 = vmatpush1.msra.mxu0 0.0
    %1827 = vmatprep.subr.mxu0 0.0
    %1828 = vmatpush1.msra.mxu0 0.0
    %1829 = vmatprep.subr.mxu0 0.0
    %1830 = vmatpush1.msra.mxu0 0.0
    %1831 = vmatprep.subr.mxu0 0.0
    %1832 = vmatpush1.msra.mxu0 0.0
    %1833 = vmatprep.subr.mxu0 0.0
    %1834 = vmatpush1.msra.mxu0 0.0
    %1835 = vmatprep.subr.mxu0 0.0
    %1836 = vmatpush1.msra.mxu0 0.0
    %1837 = vmatprep.subr.mxu0 0.0
    %1838 = vmatpush1.msra.mxu0 0.0
    %1839 = vmatprep.subr.mxu0 0.0
    %1840 = vmatpush1.msra.mxu0 0.0
    %1841 = vmatprep.subr.mxu0 0.0
    %1842 = vmatpush1.msra.mxu0 0.0
    %1843 = vmatprep.subr.mxu0 0.0
    %1844 = vmatpush1.msra.mxu0 0.0
    %1845 = vmatprep.subr.mxu0 0.0
    %1846 = vmatpush1.msra.mxu0 0.0
    %1847 = vmatprep.subr.mxu0 0.0
    %1848 = vmatpush1.msra.mxu0 0.0
    %1849 = vmatprep.subr.mxu0 0.0
    %1850 = vmatpush1.msra.mxu0 0.0
    %1851 = vmatprep.subr.mxu0 0.0
    %1852 = vmatpush1.msra.mxu0 0.0
    %1853 = vmatprep.subr.mxu0 0.0
    %1854 = vmatpush1.msra.mxu0 0.0
    %1855 = vmatprep.subr.mxu0 0.0
    %1856 = vmatpush1.msra.mxu0 0.0
    %1857 = vmatprep.subr.mxu0 0.0
    %1858 = vmatpush1.msra.mxu0 0.0
    %1859 = vmatprep.subr.mxu0 0.0
    %1860 = vmatpush1.msra.mxu0 0.0
    %1861 = vmatprep.mubr.f32.mxu0 0.0
    %1862 = vmatmul.mubr.f32.gmra.mrb[0].mxu0 %v1795
    %v1863 = vpop.f32.mrb[0].mxu0
    %v1864 = vadd.f32 0.0, %v1863
    %v1865 = vpop.f32.mrb[0].mxu0
    %v1866 = vadd.f32 0.0, %v1865
    %1867 = vdwg.mxu0
    %v1868 = vadd.f32 %v555, %v1864
    %v1869 = vmul.f32 %v1868, 0.5
    %v1870 = vtanh.pop %v1869
    %v1871 = vadd.f32 %v1870, 1.0
    %v1872 = vmul.f32 %v1871, 0.5
    %v1873 = vadd.f32 %v1866, %v592
    %v1874 = vmul.f32 %v1872, %v1873
    %v1875 = vadd.f32 %v557, %v1874
    %v1876 = vtanh.pop %v1875
    %v1877 = vsub.f32 1.0, %v1872
    %1879 = vrot.lane.b32.xlu0 %v1876, 64
    %v1880 = vpop.permute.xlu0 %1879
    %v1882 = vmul.f32 %v1877, %v1880
    %v1884 = vmul.f32 %v1872, %v1792
    %v1885 = vadd.f32 %v1882, %v1884
    %1887 = vrot.lane.b32.xlu0 %v1885, 64
    %v1888 = vpop.permute.xlu0 %1887
    %v1889 = vsel %vm594, %v1888, 0
    %1891 = vmatprep.subr.mxu0 %v572
    %1892 = vmatpush1.msra.mxu0 %v571
    %1893 = vmatprep.subr.mxu0 %v574
    %1894 = vmatpush1.msra.mxu0 %v573
    %1895 = vmatprep.subr.mxu0 %v576
    %1896 = vmatpush1.msra.mxu0 %v575
    %1897 = vmatprep.subr.mxu0 %v578
    %1898 = vmatpush1.msra.mxu0 %v577
    %1899 = vmatprep.subr.mxu0 %v580
    %1900 = vmatpush1.msra.mxu0 %v579
    %1901 = vmatprep.subr.mxu0 %v582
    %1902 = vmatpush1.msra.mxu0 %v581
    %1903 = vmatprep.subr.mxu0 %v584
    %1904 = vmatpush1.msra.mxu0 %v583
    %1905 = vmatprep.subr.mxu0 %v586
    %1906 = vmatpush1.msra.mxu0 %v585
    %1907 = vmatprep.subr.mxu0 0.0
    %1908 = vmatpush1.msra.mxu0 0.0
    %1909 = vmatprep.subr.mxu0 0.0
    %1910 = vmatpush1.msra.mxu0 0.0
    %1911 = vmatprep.subr.mxu0 0.0
    %1912 = vmatpush1.msra.mxu0 0.0
    %1913 = vmatprep.subr.mxu0 0.0
    %1914 = vmatpush1.msra.mxu0 0.0
    %1915 = vmatprep.subr.mxu0 0.0
    %1916 = vmatpush1.msra.mxu0 0.0
    %1917 = vmatprep.subr.mxu0 0.0
    %1918 = vmatpush1.msra.mxu0 0.0
    %1919 = vmatprep.subr.mxu0 0.0
    %1920 = vmatpush1.msra.mxu0 0.0
    %1921 = vmatprep.subr.mxu0 0.0
    %1922 = vmatpush1.msra.mxu0 0.0
    %1923 = vmatprep.subr.mxu0 0.0
    %1924 = vmatpush1.msra.mxu0 0.0
    %1925 = vmatprep.subr.mxu0 0.0
    %1926 = vmatpush1.msra.mxu0 0.0
    %1927 = vmatprep.subr.mxu0 0.0
    %1928 = vmatpush1.msra.mxu0 0.0
    %1929 = vmatprep.subr.mxu0 0.0
    %1930 = vmatpush1.msra.mxu0 0.0
    %1931 = vmatprep.subr.mxu0 0.0
    %1932 = vmatpush1.msra.mxu0 0.0
    %1933 = vmatprep.subr.mxu0 0.0
    %1934 = vmatpush1.msra.mxu0 0.0
    %1935 = vmatprep.subr.mxu0 0.0
    %1936 = vmatpush1.msra.mxu0 0.0
    %1937 = vmatprep.subr.mxu0 0.0
    %1938 = vmatpush1.msra.mxu0 0.0
    %1939 = vmatprep.subr.mxu0 0.0
    %1940 = vmatpush1.msra.mxu0 0.0
    %1941 = vmatprep.subr.mxu0 0.0
    %1942 = vmatpush1.msra.mxu0 0.0
    %1943 = vmatprep.subr.mxu0 0.0
    %1944 = vmatpush1.msra.mxu0 0.0
    %1945 = vmatprep.subr.mxu0 0.0
    %1946 = vmatpush1.msra.mxu0 0.0
    %1947 = vmatprep.subr.mxu0 0.0
    %1948 = vmatpush1.msra.mxu0 0.0
    %1949 = vmatprep.subr.mxu0 0.0
    %1950 = vmatpush1.msra.mxu0 0.0
    %1951 = vmatprep.subr.mxu0 0.0
    %1952 = vmatpush1.msra.mxu0 0.0
    %1953 = vmatprep.subr.mxu0 0.0
    %1954 = vmatpush1.msra.mxu0 0.0
    %1955 = vmatprep.mubr.f32.mxu0 0.0
    %1956 = vmatmul.mubr.f32.gmra.mrb[0].mxu0 %v1889
    %v1957 = vpop.f32.mrb[0].mxu0
    %v1958 = vadd.f32 0.0, %v1957
    %v1959 = vpop.f32.mrb[0].mxu0
    %v1960 = vadd.f32 0.0, %v1959
    %1961 = vdwg.mxu0
    %v1963 = vrot.slane %v1958, 6
    %v1965 = vadd.f32 %v555, %v1963
    %v1966 = vmul.f32 %v1965, 0.5
    %v1967 = vtanh.pop %v1966
    %v1968 = vadd.f32 %v1967, 1.0
    %v1969 = vmul.f32 %v1968, 0.5
    %v1970 = vadd.f32 %v1960, %v592
    %v1972 = vrot.slane %v1970, 6
    %v1974 = vmul.f32 %v1969, %v1972
    %v1975 = vadd.f32 %v557, %v1974
    %v1976 = vtanh.pop %v1975
    %v1977 = vsub.f32 1.0, %v1969
    %1979 = vrot.lane.b32.xlu0 %v1976, 64
    %v1980 = vpop.permute.xlu0 %1979
    %v1982 = vmul.f32 %v1977, %v1980
    %v1983 = vrot.slane %v1885, 6
    %v1985 = vmul.f32 %v1969, %v1983
    %v1986 = vadd.f32 %v1982, %v1985
    %v1988 = vrot.slane %v1986, 2
    %1989 = vrot.lane.b32.xlu0 %v1988, 64
    %v1990 = vpop.permute.xlu0 %1989
    %v1991 = vsel %vm594, %v1990, 0
    %1993 = vmatprep.subr.mxu0 %v572
    %1994 = vmatpush1.msra.mxu0 %v571
    %1995 = vmatprep.subr.mxu0 %v574
    %1996 = vmatpush1.msra.mxu0 %v573
    %1997 = vmatprep.subr.mxu0 %v576
    %1998 = vmatpush1.msra.mxu0 %v575
    %1999 = vmatprep.subr.mxu0 %v578
    %2000 = vmatpush1.msra.mxu0 %v577
    %2001 = vmatprep.subr.mxu0 %v580
    %2002 = vmatpush1.msra.mxu0 %v579
    %2003 = vmatprep.subr.mxu0 %v582
    %2004 = vmatpush1.msra.mxu0 %v581
    %2005 = vmatprep.subr.mxu0 %v584
    %2006 = vmatpush1.msra.mxu0 %v583
    %2007 = vmatprep.subr.mxu0 %v586
    %2008 = vmatpush1.msra.mxu0 %v585
    %2009 = vmatprep.subr.mxu0 0.0
    %2010 = vmatpush1.msra.mxu0 0.0
    %2011 = vmatprep.subr.mxu0 0.0
    %2012 = vmatpush1.msra.mxu0 0.0
    %2013 = vmatprep.subr.mxu0 0.0
    %2014 = vmatpush1.msra.mxu0 0.0
    %2015 = vmatprep.subr.mxu0 0.0
    %2016 = vmatpush1.msra.mxu0 0.0
    %2017 = vmatprep.subr.mxu0 0.0
    %2018 = vmatpush1.msra.mxu0 0.0
    %2019 = vmatprep.subr.mxu0 0.0
    %2020 = vmatpush1.msra.mxu0 0.0
    %2021 = vmatprep.subr.mxu0 0.0
    %2022 = vmatpush1.msra.mxu0 0.0
    %2023 = vmatprep.subr.mxu0 0.0
    %2024 = vmatpush1.msra.mxu0 0.0
    %2025 = vmatprep.subr.mxu0 0.0
    %2026 = vmatpush1.msra.mxu0 0.0
    %2027 = vmatprep.subr.mxu0 0.0
    %2028 = vmatpush1.msra.mxu0 0.0
    %2029 = vmatprep.subr.mxu0 0.0
    %2030 = vmatpush1.msra.mxu0 0.0
    %2031 = vmatprep.subr.mxu0 0.0
    %2032 = vmatpush1.msra.mxu0 0.0
    %2033 = vmatprep.subr.mxu0 0.0
    %2034 = vmatpush1.msra.mxu0 0.0
    %2035 = vmatprep.subr.mxu0 0.0
    %2036 = vmatpush1.msra.mxu0 0.0
    %2037 = vmatprep.subr.mxu0 0.0
    %2038 = vmatpush1.msra.mxu0 0.0
    %2039 = vmatprep.subr.mxu0 0.0
    %2040 = vmatpush1.msra.mxu0 0.0
    %2041 = vmatprep.subr.mxu0 0.0
    %2042 = vmatpush1.msra.mxu0 0.0
    %2043 = vmatprep.subr.mxu0 0.0
    %2044 = vmatpush1.msra.mxu0 0.0
    %2045 = vmatprep.subr.mxu0 0.0
    %2046 = vmatpush1.msra.mxu0 0.0
    %2047 = vmatprep.subr.mxu0 0.0
    %2048 = vmatpush1.msra.mxu0 0.0
    %2049 = vmatprep.subr.mxu0 0.0
    %2050 = vmatpush1.msra.mxu0 0.0
    %2051 = vmatprep.subr.mxu0 0.0
    %2052 = vmatpush1.msra.mxu0 0.0
    %2053 = vmatprep.subr.mxu0 0.0
    %2054 = vmatpush1.msra.mxu0 0.0
    %2055 = vmatprep.subr.mxu0 0.0
    %2056 = vmatpush1.msra.mxu0 0.0
    %2057 = vmatprep.mubr.f32.mxu0 0.0
    %2058 = vmatmul.mubr.f32.gmra.mrb[0].mxu0 %v1991
    %v2059 = vpop.f32.mrb[0].mxu0
    %v2060 = vadd.f32 0.0, %v2059
    %v2061 = vpop.f32.mrb[0].mxu0
    %v2062 = vadd.f32 0.0, %v2061
    %2063 = vdwg.mxu0
    %v2065 = vrot.slane %v2060, 4
    %v2067 = vadd.f32 %v555, %v2065
    %v2068 = vmul.f32 %v2067, 0.5
    %v2069 = vtanh.pop %v2068
    %v2070 = vadd.f32 %v2069, 1.0
    %v2071 = vmul.f32 %v2070, 0.5
    %v2072 = vadd.f32 %v2062, %v592
    %v2074 = vrot.slane %v2072, 4
    %v2076 = vmul.f32 %v2071, %v2074
    %v2077 = vadd.f32 %v557, %v2076
    %v2078 = vtanh.pop %v2077
    %v2079 = vsub.f32 1.0, %v2071
    %2081 = vrot.lane.b32.xlu0 %v2078, 64
    %v2082 = vpop.permute.xlu0 %2081
    %v2084 = vmul.f32 %v2079, %v2082
    %v2085 = vrot.slane %v1986, 6
    %v2087 = vmul.f32 %v2071, %v2085
    %v2088 = vadd.f32 %v2084, %v2087
    %v2090 = vrot.slane %v2088, 4
    %2091 = vrot.lane.b32.xlu0 %v2090, 64
    %v2092 = vpop.permute.xlu0 %2091
    %v2093 = vsel %vm594, %v2092, 0
    %2095 = vmatprep.subr.mxu0 %v572
    %2096 = vmatpush1.msra.mxu0 %v571
    %2097 = vmatprep.subr.mxu0 %v574
    %2098 = vmatpush1.msra.mxu0 %v573
    %2099 = vmatprep.subr.mxu0 %v576
    %2100 = vmatpush1.msra.mxu0 %v575
    %2101 = vmatprep.subr.mxu0 %v578
    %2102 = vmatpush1.msra.mxu0 %v577
    %2103 = vmatprep.subr.mxu0 %v580
    %2104 = vmatpush1.msra.mxu0 %v579
    %2105 = vmatprep.subr.mxu0 %v582
    %2106 = vmatpush1.msra.mxu0 %v581
    %2107 = vmatprep.subr.mxu0 %v584
    %2108 = vmatpush1.msra.mxu0 %v583
    %2109 = vmatprep.subr.mxu0 %v586
    %2110 = vmatpush1.msra.mxu0 %v585
    %2111 = vmatprep.subr.mxu0 0.0
    %2112 = vmatpush1.msra.mxu0 0.0
    %2113 = vmatprep.subr.mxu0 0.0
    %2114 = vmatpush1.msra.mxu0 0.0
    %2115 = vmatprep.subr.mxu0 0.0
    %2116 = vmatpush1.msra.mxu0 0.0
    %2117 = vmatprep.subr.mxu0 0.0
    %2118 = vmatpush1.msra.mxu0 0.0
    %2119 = vmatprep.subr.mxu0 0.0
    %2120 = vmatpush1.msra.mxu0 0.0
    %2121 = vmatprep.subr.mxu0 0.0
    %2122 = vmatpush1.msra.mxu0 0.0
    %2123 = vmatprep.subr.mxu0 0.0
    %2124 = vmatpush1.msra.mxu0 0.0
    %2125 = vmatprep.subr.mxu0 0.0
    %2126 = vmatpush1.msra.mxu0 0.0
    %2127 = vmatprep.subr.mxu0 0.0
    %2128 = vmatpush1.msra.mxu0 0.0
    %2129 = vmatprep.subr.mxu0 0.0
    %2130 = vmatpush1.msra.mxu0 0.0
    %2131 = vmatprep.subr.mxu0 0.0
    %2132 = vmatpush1.msra.mxu0 0.0
    %2133 = vmatprep.subr.mxu0 0.0
    %2134 = vmatpush1.msra.mxu0 0.0
    %2135 = vmatprep.subr.mxu0 0.0
    %2136 = vmatpush1.msra.mxu0 0.0
    %2137 = vmatprep.subr.mxu0 0.0
    %2138 = vmatpush1.msra.mxu0 0.0
    %2139 = vmatprep.subr.mxu0 0.0
    %2140 = vmatpush1.msra.mxu0 0.0
    %2141 = vmatprep.subr.mxu0 0.0
    %2142 = vmatpush1.msra.mxu0 0.0
    %2143 = vmatprep.subr.mxu0 0.0
    %2144 = vmatpush1.msra.mxu0 0.0
    %2145 = vmatprep.subr.mxu0 0.0
    %2146 = vmatpush1.msra.mxu0 0.0
    %2147 = vmatprep.subr.mxu0 0.0
    %2148 = vmatpush1.msra.mxu0 0.0
    %2149 = vmatprep.subr.mxu0 0.0
    %2150 = vmatpush1.msra.mxu0 0.0
    %2151 = vmatprep.subr.mxu0 0.0
    %2152 = vmatpush1.msra.mxu0 0.0
    %2153 = vmatprep.subr.mxu0 0.0
    %2154 = vmatpush1.msra.mxu0 0.0
    %2155 = vmatprep.subr.mxu0 0.0
    %2156 = vmatpush1.msra.mxu0 0.0
    %2157 = vmatprep.subr.mxu0 0.0
    %2158 = vmatpush1.msra.mxu0 0.0
    %2159 = vmatprep.mubr.f32.mxu0 0.0
    %2160 = vmatmul.mubr.f32.gmra.mrb[0].mxu0 %v2093
    %v2161 = vpop.f32.mrb[0].mxu0
    %v2162 = vadd.f32 0.0, %v2161
    %v2163 = vpop.f32.mrb[0].mxu0
    %v2164 = vadd.f32 0.0, %v2163
    %2165 = vdwg.mxu0
    %v2167 = vrot.slane %v2162, 2
    %v2169 = vadd.f32 %v555, %v2167
    %v2170 = vmul.f32 %v2169, 0.5
    %v2171 = vtanh.pop %v2170
    %v2172 = vadd.f32 %v2171, 1.0
    %v2173 = vmul.f32 %v2172, 0.5
    %v2174 = vadd.f32 %v2164, %v592
    %v2176 = vrot.slane %v2174, 2
    %v2178 = vmul.f32 %v2173, %v2176
    %v2179 = vadd.f32 %v557, %v2178
    %v2180 = vtanh.pop %v2179
    %v2181 = vsub.f32 1.0, %v2173
    %2183 = vrot.lane.b32.xlu0 %v2180, 64
    %v2184 = vpop.permute.xlu0 %2183
    %v2186 = vmul.f32 %v2181, %v2184
    %v2187 = vrot.slane %v2088, 6
    %v2189 = vmul.f32 %v2173, %v2187
    %v2190 = vadd.f32 %v2186, %v2189
    %v2192 = vrot.slane %v2190, 6
    %2193 = vrot.lane.b32.xlu0 %v2192, 64
    %v2194 = vpop.permute.xlu0 %2193
    %v2195 = vsel %vm594, %v2194, 0
    %2197 = vmatprep.subr.mxu0 %v572
    %2198 = vmatpush1.msra.mxu0 %v571
    %2199 = vmatprep.subr.mxu0 %v574
    %2200 = vmatpush1.msra.mxu0 %v573
    %2201 = vmatprep.subr.mxu0 %v576
    %2202 = vmatpush1.msra.mxu0 %v575
    %2203 = vmatprep.subr.mxu0 %v578
    %2204 = vmatpush1.msra.mxu0 %v577
    %2205 = vmatprep.subr.mxu0 %v580
    %2206 = vmatpush1.msra.mxu0 %v579
    %2207 = vmatprep.subr.mxu0 %v582
    %2208 = vmatpush1.msra.mxu0 %v581
    %2209 = vmatprep.subr.mxu0 %v584
    %2210 = vmatpush1.msra.mxu0 %v583
    %2211 = vmatprep.subr.mxu0 %v586
    %2212 = vmatpush1.msra.mxu0 %v585
    %2213 = vmatprep.subr.mxu0 0.0
    %2214 = vmatpush1.msra.mxu0 0.0
    %2215 = vmatprep.subr.mxu0 0.0
    %2216 = vmatpush1.msra.mxu0 0.0
    %2217 = vmatprep.subr.mxu0 0.0
    %2218 = vmatpush1.msra.mxu0 0.0
    %2219 = vmatprep.subr.mxu0 0.0
    %2220 = vmatpush1.msra.mxu0 0.0
    %2221 = vmatprep.subr.mxu0 0.0
    %2222 = vmatpush1.msra.mxu0 0.0
    %2223 = vmatprep.subr.mxu0 0.0
    %2224 = vmatpush1.msra.mxu0 0.0
    %2225 = vmatprep.subr.mxu0 0.0
    %2226 = vmatpush1.msra.mxu0 0.0
    %2227 = vmatprep.subr.mxu0 0.0
    %2228 = vmatpush1.msra.mxu0 0.0
    %2229 = vmatprep.subr.mxu0 0.0
    %2230 = vmatpush1.msra.mxu0 0.0
    %2231 = vmatprep.subr.mxu0 0.0
    %2232 = vmatpush1.msra.mxu0 0.0
    %2233 = vmatprep.subr.mxu0 0.0
    %2234 = vmatpush1.msra.mxu0 0.0
    %2235 = vmatprep.subr.mxu0 0.0
    %2236 = vmatpush1.msra.mxu0 0.0
    %2237 = vmatprep.subr.mxu0 0.0
    %2238 = vmatpush1.msra.mxu0 0.0
    %2239 = vmatprep.subr.mxu0 0.0
    %2240 = vmatpush1.msra.mxu0 0.0
    %2241 = vmatprep.subr.mxu0 0.0
    %2242 = vmatpush1.msra.mxu0 0.0
    %2243 = vmatprep.subr.mxu0 0.0
    %2244 = vmatpush1.msra.mxu0 0.0
    %2245 = vmatprep.subr.mxu0 0.0
    %2246 = vmatpush1.msra.mxu0 0.0
    %2247 = vmatprep.subr.mxu0 0.0
    %2248 = vmatpush1.msra.mxu0 0.0
    %2249 = vmatprep.subr.mxu0 0.0
    %2250 = vmatpush1.msra.mxu0 0.0
    %2251 = vmatprep.subr.mxu0 0.0
    %2252 = vmatpush1.msra.mxu0 0.0
    %2253 = vmatprep.subr.mxu0 0.0
    %2254 = vmatpush1.msra.mxu0 0.0
    %2255 = vmatprep.subr.mxu0 0.0
    %2256 = vmatpush1.msra.mxu0 0.0
    %2257 = vmatprep.subr.mxu0 0.0
    %2258 = vmatpush1.msra.mxu0 0.0
    %2259 = vmatprep.subr.mxu0 0.0
    %2260 = vmatpush1.msra.mxu0 0.0
    %2261 = vmatprep.mubr.f32.mxu0 0.0
    %2262 = vmatmul.mubr.f32.gmra.mrb[0].mxu0 %v2195
    %v2263 = vpop.f32.mrb[0].mxu0
    %v2264 = vadd.f32 0.0, %v2263
    %v2265 = vpop.f32.mrb[0].mxu0
    %v2266 = vadd.f32 0.0, %v2265
    %2267 = vdwg.mxu0
    %v2268 = vadd.f32 %v561, %v2264
    %v2269 = vmul.f32 %v2268, 0.5
    %v2270 = vtanh.pop %v2269
    %v2271 = vadd.f32 %v2270, 1.0
    %v2272 = vmul.f32 %v2271, 0.5
    %v2273 = vadd.f32 %v2266, %v592
    %v2274 = vmul.f32 %v2272, %v2273
    %v2275 = vadd.f32 %v563, %v2274
    %v2276 = vtanh.pop %v2275
    %v2277 = vsub.f32 1.0, %v2272
    %2279 = vrot.lane.b32.xlu0 %v2276, 64
    %v2280 = vpop.permute.xlu0 %2279
    %v2282 = vmul.f32 %v2277, %v2280
    %v2284 = vmul.f32 %v2272, %v2192
    %v2285 = vadd.f32 %v2282, %v2284
    %2287 = vrot.lane.b32.xlu0 %v2285, 64
    %v2288 = vpop.permute.xlu0 %2287
    %v2289 = vsel %vm594, %v2288, 0
    %2291 = vmatprep.subr.mxu0 %v572
    %2292 = vmatpush1.msra.mxu0 %v571
    %2293 = vmatprep.subr.mxu0 %v574
    %2294 = vmatpush1.msra.mxu0 %v573
    %2295 = vmatprep.subr.mxu0 %v576
    %2296 = vmatpush1.msra.mxu0 %v575
    %2297 = vmatprep.subr.mxu0 %v578
    %2298 = vmatpush1.msra.mxu0 %v577
    %2299 = vmatprep.subr.mxu0 %v580
    %2300 = vmatpush1.msra.mxu0 %v579
    %2301 = vmatprep.subr.mxu0 %v582
    %2302 = vmatpush1.msra.mxu0 %v581
    %2303 = vmatprep.subr.mxu0 %v584
    %2304 = vmatpush1.msra.mxu0 %v583
    %2305 = vmatprep.subr.mxu0 %v586
    %2306 = vmatpush1.msra.mxu0 %v585
    %2307 = vmatprep.subr.mxu0 0.0
    %2308 = vmatpush1.msra.mxu0 0.0
    %2309 = vmatprep.subr.mxu0 0.0
    %2310 = vmatpush1.msra.mxu0 0.0
    %2311 = vmatprep.subr.mxu0 0.0
    %2312 = vmatpush1.msra.mxu0 0.0
    %2313 = vmatprep.subr.mxu0 0.0
    %2314 = vmatpush1.msra.mxu0 0.0
    %2315 = vmatprep.subr.mxu0 0.0
    %2316 = vmatpush1.msra.mxu0 0.0
    %2317 = vmatprep.subr.mxu0 0.0
    %2318 = vmatpush1.msra.mxu0 0.0
    %2319 = vmatprep.subr.mxu0 0.0
    %2320 = vmatpush1.msra.mxu0 0.0
    %2321 = vmatprep.subr.mxu0 0.0
    %2322 = vmatpush1.msra.mxu0 0.0
    %2323 = vmatprep.subr.mxu0 0.0
    %2324 = vmatpush1.msra.mxu0 0.0
    %2325 = vmatprep.subr.mxu0 0.0
    %2326 = vmatpush1.msra.mxu0 0.0
    %2327 = vmatprep.subr.mxu0 0.0
    %2328 = vmatpush1.msra.mxu0 0.0
    %2329 = vmatprep.subr.mxu0 0.0
    %2330 = vmatpush1.msra.mxu0 0.0
    %2331 = vmatprep.subr.mxu0 0.0
    %2332 = vmatpush1.msra.mxu0 0.0
    %2333 = vmatprep.subr.mxu0 0.0
    %2334 = vmatpush1.msra.mxu0 0.0
    %2335 = vmatprep.subr.mxu0 0.0
    %2336 = vmatpush1.msra.mxu0 0.0
    %2337 = vmatprep.subr.mxu0 0.0
    %2338 = vmatpush1.msra.mxu0 0.0
    %2339 = vmatprep.subr.mxu0 0.0
    %2340 = vmatpush1.msra.mxu0 0.0
    %2341 = vmatprep.subr.mxu0 0.0
    %2342 = vmatpush1.msra.mxu0 0.0
    %2343 = vmatprep.subr.mxu0 0.0
    %2344 = vmatpush1.msra.mxu0 0.0
    %2345 = vmatprep.subr.mxu0 0.0
    %2346 = vmatpush1.msra.mxu0 0.0
    %2347 = vmatprep.subr.mxu0 0.0
    %2348 = vmatpush1.msra.mxu0 0.0
    %2349 = vmatprep.subr.mxu0 0.0
    %2350 = vmatpush1.msra.mxu0 0.0
    %2351 = vmatprep.subr.mxu0 0.0
    %2352 = vmatpush1.msra.mxu0 0.0
    %2353 = vmatprep.subr.mxu0 0.0
    %2354 = vmatpush1.msra.mxu0 0.0
    %2355 = vmatprep.mubr.f32.mxu0 0.0
    %2356 = vmatmul.mubr.f32.gmra.mrb[0].mxu0 %v2289
    %v2357 = vpop.f32.mrb[0].mxu0
    %v2358 = vadd.f32 0.0, %v2357
    %v2359 = vpop.f32.mrb[0].mxu0
    %v2360 = vadd.f32 0.0, %v2359
    %2361 = vdwg.mxu0
    %v2363 = vrot.slane %v2358, 6
    %v2365 = vadd.f32 %v561, %v2363
    %v2366 = vmul.f32 %v2365, 0.5
    %v2367 = vtanh.pop %v2366
    %v2368 = vadd.f32 %v2367, 1.0
    %v2369 = vmul.f32 %v2368, 0.5
    %v2370 = vadd.f32 %v2360, %v592
    %v2372 = vrot.slane %v2370, 6
    %v2374 = vmul.f32 %v2369, %v2372
    %v2375 = vadd.f32 %v563, %v2374
    %v2376 = vtanh.pop %v2375
    %v2377 = vsub.f32 1.0, %v2369
    %2379 = vrot.lane.b32.xlu0 %v2376, 64
    %v2380 = vpop.permute.xlu0 %2379
    %v2382 = vmul.f32 %v2377, %v2380
    %v2383 = vrot.slane %v2285, 6
    %v2385 = vmul.f32 %v2369, %v2383
    %v2386 = vadd.f32 %v2382, %v2385
    %v2388 = vrot.slane %v2386, 2
    %2389 = vrot.lane.b32.xlu0 %v2388, 64
    %v2390 = vpop.permute.xlu0 %2389
    %v2391 = vsel %vm594, %v2390, 0
    %2393 = vmatprep.subr.mxu0 %v572
    %2394 = vmatpush1.msra.mxu0 %v571
    %2395 = vmatprep.subr.mxu0 %v574
    %2396 = vmatpush1.msra.mxu0 %v573
    %2397 = vmatprep.subr.mxu0 %v576
    %2398 = vmatpush1.msra.mxu0 %v575
    %2399 = vmatprep.subr.mxu0 %v578
    %2400 = vmatpush1.msra.mxu0 %v577
    %2401 = vmatprep.subr.mxu0 %v580
    %2402 = vmatpush1.msra.mxu0 %v579
    %2403 = vmatprep.subr.mxu0 %v582
    %2404 = vmatpush1.msra.mxu0 %v581
    %2405 = vmatprep.subr.mxu0 %v584
    %2406 = vmatpush1.msra.mxu0 %v583
    %2407 = vmatprep.subr.mxu0 %v586
    %2408 = vmatpush1.msra.mxu0 %v585
    %2409 = vmatprep.subr.mxu0 0.0
    %2410 = vmatpush1.msra.mxu0 0.0
    %2411 = vmatprep.subr.mxu0 0.0
    %2412 = vmatpush1.msra.mxu0 0.0
    %2413 = vmatprep.subr.mxu0 0.0
    %2414 = vmatpush1.msra.mxu0 0.0
    %2415 = vmatprep.subr.mxu0 0.0
    %2416 = vmatpush1.msra.mxu0 0.0
    %2417 = vmatprep.subr.mxu0 0.0
    %2418 = vmatpush1.msra.mxu0 0.0
    %2419 = vmatprep.subr.mxu0 0.0
    %2420 = vmatpush1.msra.mxu0 0.0
    %2421 = vmatprep.subr.mxu0 0.0
    %2422 = vmatpush1.msra.mxu0 0.0
    %2423 = vmatprep.subr.mxu0 0.0
    %2424 = vmatpush1.msra.mxu0 0.0
    %2425 = vmatprep.subr.mxu0 0.0
    %2426 = vmatpush1.msra.mxu0 0.0
    %2427 = vmatprep.subr.mxu0 0.0
    %2428 = vmatpush1.msra.mxu0 0.0
    %2429 = vmatprep.subr.mxu0 0.0
    %2430 = vmatpush1.msra.mxu0 0.0
    %2431 = vmatprep.subr.mxu0 0.0
    %2432 = vmatpush1.msra.mxu0 0.0
    %2433 = vmatprep.subr.mxu0 0.0
    %2434 = vmatpush1.msra.mxu0 0.0
    %2435 = vmatprep.subr.mxu0 0.0
    %2436 = vmatpush1.msra.mxu0 0.0
    %2437 = vmatprep.subr.mxu0 0.0
    %2438 = vmatpush1.msra.mxu0 0.0
    %2439 = vmatprep.subr.mxu0 0.0
    %2440 = vmatpush1.msra.mxu0 0.0
    %2441 = vmatprep.subr.mxu0 0.0
    %2442 = vmatpush1.msra.mxu0 0.0
    %2443 = vmatprep.subr.mxu0 0.0
    %2444 = vmatpush1.msra.mxu0 0.0
    %2445 = vmatprep.subr.mxu0 0.0
    %2446 = vmatpush1.msra.mxu0 0.0
    %2447 = vmatprep.subr.mxu0 0.0
    %2448 = vmatpush1.msra.mxu0 0.0
    %2449 = vmatprep.subr.mxu0 0.0
    %2450 = vmatpush1.msra.mxu0 0.0
    %2451 = vmatprep.subr.mxu0 0.0
    %2452 = vmatpush1.msra.mxu0 0.0
    %2453 = vmatprep.subr.mxu0 0.0
    %2454 = vmatpush1.msra.mxu0 0.0
    %2455 = vmatprep.subr.mxu0 0.0
    %2456 = vmatpush1.msra.mxu0 0.0
    %2457 = vmatprep.mubr.f32.mxu0 0.0
    %2458 = vmatmul.mubr.f32.gmra.mrb[0].mxu0 %v2391
    %v2459 = vpop.f32.mrb[0].mxu0
    %v2460 = vadd.f32 0.0, %v2459
    %v2461 = vpop.f32.mrb[0].mxu0
    %v2462 = vadd.f32 0.0, %v2461
    %2463 = vdwg.mxu0
    %v2465 = vrot.slane %v2460, 4
    %v2467 = vadd.f32 %v561, %v2465
    %v2468 = vmul.f32 %v2467, 0.5
    %v2469 = vtanh.pop %v2468
    %v2470 = vadd.f32 %v2469, 1.0
    %v2471 = vmul.f32 %v2470, 0.5
    %v2472 = vadd.f32 %v2462, %v592
    %v2474 = vrot.slane %v2472, 4
    %v2476 = vmul.f32 %v2471, %v2474
    %v2477 = vadd.f32 %v563, %v2476
    %v2478 = vtanh.pop %v2477
    %v2479 = vsub.f32 1.0, %v2471
    %2481 = vrot.lane.b32.xlu0 %v2478, 64
    %v2482 = vpop.permute.xlu0 %2481
    %v2484 = vmul.f32 %v2479, %v2482
    %v2485 = vrot.slane %v2386, 6
    %v2487 = vmul.f32 %v2471, %v2485
    %v2488 = vadd.f32 %v2484, %v2487
    %v2490 = vrot.slane %v2488, 4
    %2491 = vrot.lane.b32.xlu0 %v2490, 64
    %v2492 = vpop.permute.xlu0 %2491
    %v2493 = vsel %vm594, %v2492, 0
    %2495 = vmatprep.subr.mxu0 %v572
    %2496 = vmatpush1.msra.mxu0 %v571
    %2497 = vmatprep.subr.mxu0 %v574
    %2498 = vmatpush1.msra.mxu0 %v573
    %2499 = vmatprep.subr.mxu0 %v576
    %2500 = vmatpush1.msra.mxu0 %v575
    %2501 = vmatprep.subr.mxu0 %v578
    %2502 = vmatpush1.msra.mxu0 %v577
    %2503 = vmatprep.subr.mxu0 %v580
    %2504 = vmatpush1.msra.mxu0 %v579
    %2505 = vmatprep.subr.mxu0 %v582
    %2506 = vmatpush1.msra.mxu0 %v581
    %2507 = vmatprep.subr.mxu0 %v584
    %2508 = vmatpush1.msra.mxu0 %v583
    %2509 = vmatprep.subr.mxu0 %v586
    %2510 = vmatpush1.msra.mxu0 %v585
    %2511 = vmatprep.subr.mxu0 0.0
    %2512 = vmatpush1.msra.mxu0 0.0
    %2513 = vmatprep.subr.mxu0 0.0
    %2514 = vmatpush1.msra.mxu0 0.0
    %2515 = vmatprep.subr.mxu0 0.0
    %2516 = vmatpush1.msra.mxu0 0.0
    %2517 = vmatprep.subr.mxu0 0.0
    %2518 = vmatpush1.msra.mxu0 0.0
    %2519 = vmatprep.subr.mxu0 0.0
    %2520 = vmatpush1.msra.mxu0 0.0
    %2521 = vmatprep.subr.mxu0 0.0
    %2522 = vmatpush1.msra.mxu0 0.0
    %2523 = vmatprep.subr.mxu0 0.0
    %2524 = vmatpush1.msra.mxu0 0.0
    %2525 = vmatprep.subr.mxu0 0.0
    %2526 = vmatpush1.msra.mxu0 0.0
    %2527 = vmatprep.subr.mxu0 0.0
    %2528 = vmatpush1.msra.mxu0 0.0
    %2529 = vmatprep.subr.mxu0 0.0
    %2530 = vmatpush1.msra.mxu0 0.0
    %2531 = vmatprep.subr.mxu0 0.0
    %2532 = vmatpush1.msra.mxu0 0.0
    %2533 = vmatprep.subr.mxu0 0.0
    %2534 = vmatpush1.msra.mxu0 0.0
    %2535 = vmatprep.subr.mxu0 0.0
    %2536 = vmatpush1.msra.mxu0 0.0
    %2537 = vmatprep.subr.mxu0 0.0
    %2538 = vmatpush1.msra.mxu0 0.0
    %2539 = vmatprep.subr.mxu0 0.0
    %2540 = vmatpush1.msra.mxu0 0.0
    %2541 = vmatprep.subr.mxu0 0.0
    %2542 = vmatpush1.msra.mxu0 0.0
    %2543 = vmatprep.subr.mxu0 0.0
    %2544 = vmatpush1.msra.mxu0 0.0
    %2545 = vmatprep.subr.mxu0 0.0
    %2546 = vmatpush1.msra.mxu0 0.0
    %2547 = vmatprep.subr.mxu0 0.0
    %2548 = vmatpush1.msra.mxu0 0.0
    %2549 = vmatprep.subr.mxu0 0.0
    %2550 = vmatpush1.msra.mxu0 0.0
    %2551 = vmatprep.subr.mxu0 0.0
    %2552 = vmatpush1.msra.mxu0 0.0
    %2553 = vmatprep.subr.mxu0 0.0
    %2554 = vmatpush1.msra.mxu0 0.0
    %2555 = vmatprep.subr.mxu0 0.0
    %2556 = vmatpush1.msra.mxu0 0.0
    %2557 = vmatprep.subr.mxu0 0.0
    %2558 = vmatpush1.msra.mxu0 0.0
    %2559 = vmatprep.mubr.f32.mxu0 0.0
    %2560 = vmatmul.mubr.f32.gmra.mrb[0].mxu0 %v2493
    %v2561 = vpop.f32.mrb[0].mxu0
    %v2562 = vadd.f32 0.0, %v2561
    %v2563 = vpop.f32.mrb[0].mxu0
    %v2564 = vadd.f32 0.0, %v2563
    %2565 = vdwg.mxu0
    %v2567 = vrot.slane %v2562, 2
    %v2569 = vadd.f32 %v561, %v2567
    %v2570 = vmul.f32 %v2569, 0.5
    %v2571 = vtanh.pop %v2570
    %v2572 = vadd.f32 %v2571, 1.0
    %v2573 = vmul.f32 %v2572, 0.5
    %v2574 = vadd.f32 %v2564, %v592
    %v2576 = vrot.slane %v2574, 2
    %v2578 = vmul.f32 %v2573, %v2576
    %v2579 = vadd.f32 %v563, %v2578
    %v2580 = vtanh.pop %v2579
    %v2581 = vsub.f32 1.0, %v2573
    %2583 = vrot.lane.b32.xlu0 %v2580, 64
    %v2584 = vpop.permute.xlu0 %2583
    %v2586 = vmul.f32 %v2581, %v2584
    %v2587 = vrot.slane %v2488, 6
    %v2589 = vmul.f32 %v2573, %v2587
    %v2590 = vadd.f32 %v2586, %v2589
    %v2592 = vrot.slane %v2590, 6
    %2593 = vrot.lane.b32.xlu0 %v2592, 64
    %v2594 = vpop.permute.xlu0 %2593
    %v2595 = vsel %vm594, %v2594, 0
    %2597 = vmatprep.subr.mxu0 %v572
    %2598 = vmatpush1.msra.mxu0 %v571
    %2599 = vmatprep.subr.mxu0 %v574
    %2600 = vmatpush1.msra.mxu0 %v573
    %2601 = vmatprep.subr.mxu0 %v576
    %2602 = vmatpush1.msra.mxu0 %v575
    %2603 = vmatprep.subr.mxu0 %v578
    %2604 = vmatpush1.msra.mxu0 %v577
    %2605 = vmatprep.subr.mxu0 %v580
    %2606 = vmatpush1.msra.mxu0 %v579
    %2607 = vmatprep.subr.mxu0 %v582
    %2608 = vmatpush1.msra.mxu0 %v581
    %2609 = vmatprep.subr.mxu0 %v584
    %2610 = vmatpush1.msra.mxu0 %v583
    %2611 = vmatprep.subr.mxu0 %v586
    %2612 = vmatpush1.msra.mxu0 %v585
    %2613 = vmatprep.subr.mxu0 0.0
    %2614 = vmatpush1.msra.mxu0 0.0
    %2615 = vmatprep.subr.mxu0 0.0
    %2616 = vmatpush1.msra.mxu0 0.0
    %2617 = vmatprep.subr.mxu0 0.0
    %2618 = vmatpush1.msra.mxu0 0.0
    %2619 = vmatprep.subr.mxu0 0.0
    %2620 = vmatpush1.msra.mxu0 0.0
    %2621 = vmatprep.subr.mxu0 0.0
    %2622 = vmatpush1.msra.mxu0 0.0
    %2623 = vmatprep.subr.mxu0 0.0
    %2624 = vmatpush1.msra.mxu0 0.0
    %2625 = vmatprep.subr.mxu0 0.0
    %2626 = vmatpush1.msra.mxu0 0.0
    %2627 = vmatprep.subr.mxu0 0.0
    %2628 = vmatpush1.msra.mxu0 0.0
    %2629 = vmatprep.subr.mxu0 0.0
    %2630 = vmatpush1.msra.mxu0 0.0
    %2631 = vmatprep.subr.mxu0 0.0
    %2632 = vmatpush1.msra.mxu0 0.0
    %2633 = vmatprep.subr.mxu0 0.0
    %2634 = vmatpush1.msra.mxu0 0.0
    %2635 = vmatprep.subr.mxu0 0.0
    %2636 = vmatpush1.msra.mxu0 0.0
    %2637 = vmatprep.subr.mxu0 0.0
    %2638 = vmatpush1.msra.mxu0 0.0
    %2639 = vmatprep.subr.mxu0 0.0
    %2640 = vmatpush1.msra.mxu0 0.0
    %2641 = vmatprep.subr.mxu0 0.0
    %2642 = vmatpush1.msra.mxu0 0.0
    %2643 = vmatprep.subr.mxu0 0.0
    %2644 = vmatpush1.msra.mxu0 0.0
    %2645 = vmatprep.subr.mxu0 0.0
    %2646 = vmatpush1.msra.mxu0 0.0
    %2647 = vmatprep.subr.mxu0 0.0
    %2648 = vmatpush1.msra.mxu0 0.0
    %2649 = vmatprep.subr.mxu0 0.0
    %2650 = vmatpush1.msra.mxu0 0.0
    %2651 = vmatprep.subr.mxu0 0.0
    %2652 = vmatpush1.msra.mxu0 0.0
    %2653 = vmatprep.subr.mxu0 0.0
    %2654 = vmatpush1.msra.mxu0 0.0
    %2655 = vmatprep.subr.mxu0 0.0
    %2656 = vmatpush1.msra.mxu0 0.0
    %2657 = vmatprep.subr.mxu0 0.0
    %2658 = vmatpush1.msra.mxu0 0.0
    %2659 = vmatprep.subr.mxu0 0.0
    %2660 = vmatpush1.msra.mxu0 0.0
    %2661 = vmatprep.mubr.f32.mxu0 0.0
    %2662 = vmatmul.mubr.f32.gmra.mrb[0].mxu0 %v2595
    %v2663 = vpop.f32.mrb[0].mxu0
    %v2664 = vadd.f32 0.0, %v2663
    %v2665 = vpop.f32.mrb[0].mxu0
    %v2666 = vadd.f32 0.0, %v2665
    %2667 = vdwg.mxu0
    %v2668 = vadd.f32 %v567, %v2664
    %v2669 = vmul.f32 %v2668, 0.5
    %v2670 = vtanh.pop %v2669
    %v2671 = vadd.f32 %v2670, 1.0
    %v2672 = vmul.f32 %v2671, 0.5
    %v2673 = vadd.f32 %v2666, %v592
    %v2674 = vmul.f32 %v2672, %v2673
    %v2675 = vadd.f32 %v569, %v2674
    %v2676 = vtanh.pop %v2675
    %v2677 = vsub.f32 1.0, %v2672
    %2679 = vrot.lane.b32.xlu0 %v2676, 64
    %v2680 = vpop.permute.xlu0 %2679
    %v2682 = vmul.f32 %v2677, %v2680
    %v2684 = vmul.f32 %v2672, %v2592
    %v2685 = vadd.f32 %v2682, %v2684
    %2687 = vrot.lane.b32.xlu0 %v2685, 64
    %v2688 = vpop.permute.xlu0 %2687
    %v2689 = vsel %vm594, %v2688, 0
    %2691 = vmatprep.subr.mxu0 %v572
    %2692 = vmatpush1.msra.mxu0 %v571
    %2693 = vmatprep.subr.mxu0 %v574
    %2694 = vmatpush1.msra.mxu0 %v573
    %2695 = vmatprep.subr.mxu0 %v576
    %2696 = vmatpush1.msra.mxu0 %v575
    %2697 = vmatprep.subr.mxu0 %v578
    %2698 = vmatpush1.msra.mxu0 %v577
    %2699 = vmatprep.subr.mxu0 %v580
    %2700 = vmatpush1.msra.mxu0 %v579
    %2701 = vmatprep.subr.mxu0 %v582
    %2702 = vmatpush1.msra.mxu0 %v581
    %2703 = vmatprep.subr.mxu0 %v584
    %2704 = vmatpush1.msra.mxu0 %v583
    %2705 = vmatprep.subr.mxu0 %v586
    %2706 = vmatpush1.msra.mxu0 %v585
    %2707 = vmatprep.subr.mxu0 0.0
    %2708 = vmatpush1.msra.mxu0 0.0
    %2709 = vmatprep.subr.mxu0 0.0
    %2710 = vmatpush1.msra.mxu0 0.0
    %2711 = vmatprep.subr.mxu0 0.0
    %2712 = vmatpush1.msra.mxu0 0.0
    %2713 = vmatprep.subr.mxu0 0.0
    %2714 = vmatpush1.msra.mxu0 0.0
    %2715 = vmatprep.subr.mxu0 0.0
    %2716 = vmatpush1.msra.mxu0 0.0
    %2717 = vmatprep.subr.mxu0 0.0
    %2718 = vmatpush1.msra.mxu0 0.0
    %2719 = vmatprep.subr.mxu0 0.0
    %2720 = vmatpush1.msra.mxu0 0.0
    %2721 = vmatprep.subr.mxu0 0.0
    %2722 = vmatpush1.msra.mxu0 0.0
    %2723 = vmatprep.subr.mxu0 0.0
    %2724 = vmatpush1.msra.mxu0 0.0
    %2725 = vmatprep.subr.mxu0 0.0
    %2726 = vmatpush1.msra.mxu0 0.0
    %2727 = vmatprep.subr.mxu0 0.0
    %2728 = vmatpush1.msra.mxu0 0.0
    %2729 = vmatprep.subr.mxu0 0.0
    %2730 = vmatpush1.msra.mxu0 0.0
    %2731 = vmatprep.subr.mxu0 0.0
    %2732 = vmatpush1.msra.mxu0 0.0
    %2733 = vmatprep.subr.mxu0 0.0
    %2734 = vmatpush1.msra.mxu0 0.0
    %2735 = vmatprep.subr.mxu0 0.0
    %2736 = vmatpush1.msra.mxu0 0.0
    %2737 = vmatprep.subr.mxu0 0.0
    %2738 = vmatpush1.msra.mxu0 0.0
    %2739 = vmatprep.subr.mxu0 0.0
    %2740 = vmatpush1.msra.mxu0 0.0
    %2741 = vmatprep.subr.mxu0 0.0
    %2742 = vmatpush1.msra.mxu0 0.0
    %2743 = vmatprep.subr.mxu0 0.0
    %2744 = vmatpush1.msra.mxu0 0.0
    %2745 = vmatprep.subr.mxu0 0.0
    %2746 = vmatpush1.msra.mxu0 0.0
    %2747 = vmatprep.subr.mxu0 0.0
    %2748 = vmatpush1.msra.mxu0 0.0
    %2749 = vmatprep.subr.mxu0 0.0
    %2750 = vmatpush1.msra.mxu0 0.0
    %2751 = vmatprep.subr.mxu0 0.0
    %2752 = vmatpush1.msra.mxu0 0.0
    %2753 = vmatprep.subr.mxu0 0.0
    %2754 = vmatpush1.msra.mxu0 0.0
    %2755 = vmatprep.mubr.f32.mxu0 0.0
    %2756 = vmatmul.mubr.f32.gmra.mrb[0].mxu0 %v2689
    %v2757 = vpop.f32.mrb[0].mxu0
    %v2758 = vadd.f32 0.0, %v2757
    %v2759 = vpop.f32.mrb[0].mxu0
    %v2760 = vadd.f32 0.0, %v2759
    %2761 = vdwg.mxu0
    %v2763 = vrot.slane %v2758, 6
    %v2765 = vadd.f32 %v567, %v2763
    %v2766 = vmul.f32 %v2765, 0.5
    %v2767 = vtanh.pop %v2766
    %v2768 = vadd.f32 %v2767, 1.0
    %v2769 = vmul.f32 %v2768, 0.5
    %v2770 = vadd.f32 %v2760, %v592
    %v2772 = vrot.slane %v2770, 6
    %v2774 = vmul.f32 %v2769, %v2772
    %v2775 = vadd.f32 %v569, %v2774
    %v2776 = vtanh.pop %v2775
    %v2777 = vsub.f32 1.0, %v2769
    %2779 = vrot.lane.b32.xlu0 %v2776, 64
    %v2780 = vpop.permute.xlu0 %2779
    %v2782 = vmul.f32 %v2777, %v2780
    %v2783 = vrot.slane %v2685, 6
    %v2785 = vmul.f32 %v2769, %v2783
    %v2786 = vadd.f32 %v2782, %v2785
    %v2788 = vrot.slane %v2786, 2
    %2789 = vrot.lane.b32.xlu0 %v2788, 64
    %v2790 = vpop.permute.xlu0 %2789
    %v2791 = vsel %vm594, %v2790, 0
    %2793 = vmatprep.subr.mxu0 %v572
    %2794 = vmatpush1.msra.mxu0 %v571
    %2795 = vmatprep.subr.mxu0 %v574
    %2796 = vmatpush1.msra.mxu0 %v573
    %2797 = vmatprep.subr.mxu0 %v576
    %2798 = vmatpush1.msra.mxu0 %v575
    %2799 = vmatprep.subr.mxu0 %v578
    %2800 = vmatpush1.msra.mxu0 %v577
    %2801 = vmatprep.subr.mxu0 %v580
    %2802 = vmatpush1.msra.mxu0 %v579
    %2803 = vmatprep.subr.mxu0 %v582
    %2804 = vmatpush1.msra.mxu0 %v581
    %2805 = vmatprep.subr.mxu0 %v584
    %2806 = vmatpush1.msra.mxu0 %v583
    %2807 = vmatprep.subr.mxu0 %v586
    %2808 = vmatpush1.msra.mxu0 %v585
    %2809 = vmatprep.subr.mxu0 0.0
    %2810 = vmatpush1.msra.mxu0 0.0
    %2811 = vmatprep.subr.mxu0 0.0
    %2812 = vmatpush1.msra.mxu0 0.0
    %2813 = vmatprep.subr.mxu0 0.0
    %2814 = vmatpush1.msra.mxu0 0.0
    %2815 = vmatprep.subr.mxu0 0.0
    %2816 = vmatpush1.msra.mxu0 0.0
    %2817 = vmatprep.subr.mxu0 0.0
    %2818 = vmatpush1.msra.mxu0 0.0
    %2819 = vmatprep.subr.mxu0 0.0
    %2820 = vmatpush1.msra.mxu0 0.0
    %2821 = vmatprep.subr.mxu0 0.0
    %2822 = vmatpush1.msra.mxu0 0.0
    %2823 = vmatprep.subr.mxu0 0.0
    %2824 = vmatpush1.msra.mxu0 0.0
    %2825 = vmatprep.subr.mxu0 0.0
    %2826 = vmatpush1.msra.mxu0 0.0
    %2827 = vmatprep.subr.mxu0 0.0
    %2828 = vmatpush1.msra.mxu0 0.0
    %2829 = vmatprep.subr.mxu0 0.0
    %2830 = vmatpush1.msra.mxu0 0.0
    %2831 = vmatprep.subr.mxu0 0.0
    %2832 = vmatpush1.msra.mxu0 0.0
    %2833 = vmatprep.subr.mxu0 0.0
    %2834 = vmatpush1.msra.mxu0 0.0
    %2835 = vmatprep.subr.mxu0 0.0
    %2836 = vmatpush1.msra.mxu0 0.0
    %2837 = vmatprep.subr.mxu0 0.0
    %2838 = vmatpush1.msra.mxu0 0.0
    %2839 = vmatprep.subr.mxu0 0.0
    %2840 = vmatpush1.msra.mxu0 0.0
    %2841 = vmatprep.subr.mxu0 0.0
    %2842 = vmatpush1.msra.mxu0 0.0
    %2843 = vmatprep.subr.mxu0 0.0
    %2844 = vmatpush1.msra.mxu0 0.0
    %2845 = vmatprep.subr.mxu0 0.0
    %2846 = vmatpush1.msra.mxu0 0.0
    %2847 = vmatprep.subr.mxu0 0.0
    %2848 = vmatpush1.msra.mxu0 0.0
    %2849 = vmatprep.subr.mxu0 0.0
    %2850 = vmatpush1.msra.mxu0 0.0
    %2851 = vmatprep.subr.mxu0 0.0
    %2852 = vmatpush1.msra.mxu0 0.0
    %2853 = vmatprep.subr.mxu0 0.0
    %2854 = vmatpush1.msra.mxu0 0.0
    %2855 = vmatprep.subr.mxu0 0.0
    %2856 = vmatpush1.msra.mxu0 0.0
    %2857 = vmatprep.mubr.f32.mxu0 0.0
    %2858 = vmatmul.mubr.f32.gmra.mrb[0].mxu0 %v2791
    %v2859 = vpop.f32.mrb[0].mxu0
    %v2860 = vadd.f32 0.0, %v2859
    %v2861 = vpop.f32.mrb[0].mxu0
    %v2862 = vadd.f32 0.0, %v2861
    %2863 = vdwg.mxu0
    %v2865 = vrot.slane %v2860, 4
    %v2867 = vadd.f32 %v567, %v2865
    %v2868 = vmul.f32 %v2867, 0.5
    %v2869 = vtanh.pop %v2868
    %v2870 = vadd.f32 %v2869, 1.0
    %v2871 = vmul.f32 %v2870, 0.5
    %v2872 = vadd.f32 %v2862, %v592
    %v2874 = vrot.slane %v2872, 4
    %v2876 = vmul.f32 %v2871, %v2874
    %v2877 = vadd.f32 %v569, %v2876
    %v2878 = vtanh.pop %v2877
    %v2879 = vsub.f32 1.0, %v2871
    %2881 = vrot.lane.b32.xlu0 %v2878, 64
    %v2882 = vpop.permute.xlu0 %2881
    %v2884 = vmul.f32 %v2879, %v2882
    %v2885 = vrot.slane %v2786, 6
    %v2887 = vmul.f32 %v2871, %v2885
    %v2888 = vadd.f32 %v2884, %v2887
    %v2890 = vrot.slane %v2888, 4
    %2891 = vrot.lane.b32.xlu0 %v2890, 64
    %v2892 = vpop.permute.xlu0 %2891
    %v2893 = vsel %vm594, %v2892, 0
    %2895 = vmatprep.subr.mxu0 %v572
    %2896 = vmatpush1.msra.mxu0 %v571
    %2897 = vmatprep.subr.mxu0 %v574
    %2898 = vmatpush1.msra.mxu0 %v573
    %2899 = vmatprep.subr.mxu0 %v576
    %2900 = vmatpush1.msra.mxu0 %v575
    %2901 = vmatprep.subr.mxu0 %v578
    %2902 = vmatpush1.msra.mxu0 %v577
    %2903 = vmatprep.subr.mxu0 %v580
    %2904 = vmatpush1.msra.mxu0 %v579
    %2905 = vmatprep.subr.mxu0 %v582
    %2906 = vmatpush1.msra.mxu0 %v581
    %2907 = vmatprep.subr.mxu0 %v584
    %2908 = vmatpush1.msra.mxu0 %v583
    %2909 = vmatprep.subr.mxu0 %v586
    %2910 = vmatpush1.msra.mxu0 %v585
    %2911 = vmatprep.subr.mxu0 0.0
    %2912 = vmatpush1.msra.mxu0 0.0
    %2913 = vmatprep.subr.mxu0 0.0
    %2914 = vmatpush1.msra.mxu0 0.0
    %2915 = vmatprep.subr.mxu0 0.0
    %2916 = vmatpush1.msra.mxu0 0.0
    %2917 = vmatprep.subr.mxu0 0.0
    %2918 = vmatpush1.msra.mxu0 0.0
    %2919 = vmatprep.subr.mxu0 0.0
    %2920 = vmatpush1.msra.mxu0 0.0
    %2921 = vmatprep.subr.mxu0 0.0
    %2922 = vmatpush1.msra.mxu0 0.0
    %2923 = vmatprep.subr.mxu0 0.0
    %2924 = vmatpush1.msra.mxu0 0.0
    %2925 = vmatprep.subr.mxu0 0.0
    %2926 = vmatpush1.msra.mxu0 0.0
    %2927 = vmatprep.subr.mxu0 0.0
    %2928 = vmatpush1.msra.mxu0 0.0
    %2929 = vmatprep.subr.mxu0 0.0
    %2930 = vmatpush1.msra.mxu0 0.0
    %2931 = vmatprep.subr.mxu0 0.0
    %2932 = vmatpush1.msra.mxu0 0.0
    %2933 = vmatprep.subr.mxu0 0.0
    %2934 = vmatpush1.msra.mxu0 0.0
    %2935 = vmatprep.subr.mxu0 0.0
    %2936 = vmatpush1.msra.mxu0 0.0
    %2937 = vmatprep.subr.mxu0 0.0
    %2938 = vmatpush1.msra.mxu0 0.0
    %2939 = vmatprep.subr.mxu0 0.0
    %2940 = vmatpush1.msra.mxu0 0.0
    %2941 = vmatprep.subr.mxu0 0.0
    %2942 = vmatpush1.msra.mxu0 0.0
    %2943 = vmatprep.subr.mxu0 0.0
    %2944 = vmatpush1.msra.mxu0 0.0
    %2945 = vmatprep.subr.mxu0 0.0
    %2946 = vmatpush1.msra.mxu0 0.0
    %2947 = vmatprep.subr.mxu0 0.0
    %2948 = vmatpush1.msra.mxu0 0.0
    %2949 = vmatprep.subr.mxu0 0.0
    %2950 = vmatpush1.msra.mxu0 0.0
    %2951 = vmatprep.subr.mxu0 0.0
    %2952 = vmatpush1.msra.mxu0 0.0
    %2953 = vmatprep.subr.mxu0 0.0
    %2954 = vmatpush1.msra.mxu0 0.0
    %2955 = vmatprep.subr.mxu0 0.0
    %2956 = vmatpush1.msra.mxu0 0.0
    %2957 = vmatprep.subr.mxu0 0.0
    %2958 = vmatpush1.msra.mxu0 0.0
    %2959 = vmatprep.mubr.f32.mxu0 0.0
    %2960 = vmatmul.mubr.f32.gmra.mrb[0].mxu0 %v2893
    %v2961 = vpop.f32.mrb[0].mxu0
    %v2962 = vadd.f32 0.0, %v2961
    %v2963 = vpop.f32.mrb[0].mxu0
    %v2964 = vadd.f32 0.0, %v2963
    %2965 = vdwg.mxu0
    %v2967 = vrot.slane %v2962, 2
    %v2969 = vadd.f32 %v567, %v2967
    %v2970 = vmul.f32 %v2969, 0.5
    %v2971 = vtanh.pop %v2970
    %v2972 = vadd.f32 %v2971, 1.0
    %v2973 = vmul.f32 %v2972, 0.5
    %v2974 = vadd.f32 %v2964, %v592
    %v2976 = vrot.slane %v2974, 2
    %v2978 = vmul.f32 %v2973, %v2976
    %v2979 = vadd.f32 %v569, %v2978
    %v2980 = vtanh.pop %v2979
    %v2981 = vsub.f32 1.0, %v2973
    %2983 = vrot.lane.b32.xlu0 %v2980, 64
    %v2984 = vpop.permute.xlu0 %2983
    %v2986 = vmul.f32 %v2981, %v2984
    %v2987 = vrot.slane %v2888, 6
    %v2989 = vmul.f32 %v2973, %v2987
    %v2990 = vadd.f32 %v2986, %v2989
    %v2991 = vld [vmem:[%s1] sm:$0x3]
    %v2992 = vld [vmem:[#allocation11] sm:$0xff]
    %v2993 = vld [vmem:[#allocation11 + $0x8] sm:$0xff]
    %v2994 = vld [vmem:[#allocation11 + $0x10] sm:$0xff]
    %v2995 = vld [vmem:[#allocation11 + $0x18] sm:$0xff]
    %v2996 = vld [vmem:[#allocation11 + $0x20] sm:$0xff]
    %v2997 = vld [vmem:[#allocation11 + $0x28] sm:$0xff]
    %v2998 = vld [vmem:[#allocation11 + $0x30] sm:$0xff]
    %v2999 = vld [vmem:[#allocation11 + $0x38] sm:$0xff]
    %v3000 = vld [vmem:[#allocation11 + $0x40] sm:$0xff]
    %v3001 = vld [vmem:[%s12] sm:$0x1]
    %v3003 = vlaneseq
    %v3004 = vshrl.u32 %v3003, 7
    %v3005 = vsub.s32 0, %v3004
    %v3006 = vrot.slane %v3001, %v3005
    %vm3008 = vcmask 588800
    %v3010 = vsel %vm3008, %v2991, 0
    %3012 = vmatprep.subr.mxu0 0.0
    %3013 = vmatpush1.msra.mxu0 %v2992
    %3014 = vmatprep.subr.mxu0 0.0
    %3015 = vmatpush1.msra.mxu0 %v2993
    %3016 = vmatprep.subr.mxu0 0.0
    %3017 = vmatpush1.msra.mxu0 %v2994
    %3018 = vmatprep.subr.mxu0 0.0
    %3019 = vmatpush1.msra.mxu0 %v2995
    %3020 = vmatprep.subr.mxu0 0.0
    %3021 = vmatpush1.msra.mxu0 %v2996
    %3022 = vmatprep.subr.mxu0 0.0
    %3023 = vmatpush1.msra.mxu0 %v2997
    %3024 = vmatprep.subr.mxu0 0.0
    %3025 = vmatpush1.msra.mxu0 %v2998
    %3026 = vmatprep.subr.mxu0 0.0
    %3027 = vmatpush1.msra.mxu0 %v2999
    %3028 = vmatprep.subr.mxu0 0.0
    %3029 = vmatpush1.msra.mxu0 %v3000
    %3030 = vmatprep.subr.mxu0 0.0
    %3031 = vmatpush1.msra.mxu0 0.0
    %3032 = vmatprep.subr.mxu0 0.0
    %3033 = vmatpush1.msra.mxu0 0.0
    %3034 = vmatprep.subr.mxu0 0.0
    %3035 = vmatpush1.msra.mxu0 0.0
    %3036 = vmatprep.subr.mxu0 0.0
    %3037 = vmatpush1.msra.mxu0 0.0
    %3038 = vmatprep.subr.mxu0 0.0
    %3039 = vmatpush1.msra.mxu0 0.0
    %3040 = vmatprep.subr.mxu0 0.0
    %3041 = vmatpush1.msra.mxu0 0.0
    %3042 = vmatprep.subr.mxu0 0.0
    %3043 = vmatpush1.msra.mxu0 0.0
    %3044 = vmatprep.subr.mxu0 0.0
    %3045 = vmatpush1.msra.mxu0 0.0
    %3046 = vmatprep.subr.mxu0 0.0
    %3047 = vmatpush1.msra.mxu0 0.0
    %3048 = vmatprep.subr.mxu0 0.0
    %3049 = vmatpush1.msra.mxu0 0.0
    %3050 = vmatprep.subr.mxu0 0.0
    %3051 = vmatpush1.msra.mxu0 0.0
    %3052 = vmatprep.subr.mxu0 0.0
    %3053 = vmatpush1.msra.mxu0 0.0
    %3054 = vmatprep.subr.mxu0 0.0
    %3055 = vmatpush1.msra.mxu0 0.0
    %3056 = vmatprep.subr.mxu0 0.0
    %3057 = vmatpush1.msra.mxu0 0.0
    %3058 = vmatprep.subr.mxu0 0.0
    %3059 = vmatpush1.msra.mxu0 0.0
    %3060 = vmatprep.subr.mxu0 0.0
    %3061 = vmatpush1.msra.mxu0 0.0
    %3062 = vmatprep.subr.mxu0 0.0
    %3063 = vmatpush1.msra.mxu0 0.0
    %3064 = vmatprep.subr.mxu0 0.0
    %3065 = vmatpush1.msra.mxu0 0.0
    %3066 = vmatprep.subr.mxu0 0.0
    %3067 = vmatpush1.msra.mxu0 0.0
    %3068 = vmatprep.subr.mxu0 0.0
    %3069 = vmatpush1.msra.mxu0 0.0
    %3070 = vmatprep.subr.mxu0 0.0
    %3071 = vmatpush1.msra.mxu0 0.0
    %3072 = vmatprep.subr.mxu0 0.0
    %3073 = vmatpush1.msra.mxu0 0.0
    %3074 = vmatprep.subr.mxu0 0.0
    %3075 = vmatpush1.msra.mxu0 0.0
    %3076 = vmatprep.mubr.f32.mxu0 0.0
    %3077 = vmatmul.mubr.f32.gmra.mrb[0].mxu0 %v3010
    %v3078 = vpop.f32.mrb[0].mxu0
    %v3079 = vadd.f32 %v3006, %v3078
    %v3080 = vpop.f32.mrb[0].mxu0
    %3081 = vdwg.mxu0
    %v3082 = vtanh.pop %v3079
    %v3083 = vld [vmem:[#allocation13] sm:$0xff]
    %v3084 = vld [vmem:[#allocation13 + $0x8] sm:$0xff]
    %v3085 = vld [vmem:[#allocation13 + $0x10] sm:$0xff]
    %v3086 = vld [vmem:[#allocation13 + $0x18] sm:$0xff]
    %v3087 = vld [vmem:[#allocation13 + $0x20] sm:$0xff]
    %v3088 = vld [vmem:[#allocation13 + $0x28] sm:$0xff]
    %v3089 = vld [vmem:[#allocation13 + $0x30] sm:$0xff]
    %v3090 = vld [vmem:[#allocation13 + $0x38] sm:$0xff]
    %v3091 = vld [vmem:[#allocation13 + $0x40] sm:$0xff]
    %v3092 = vld [vmem:[#allocation13 + $0x48] sm:$0xff]
    %v3093 = vld [vmem:[#allocation13 + $0x50] sm:$0xff]
    %v3094 = vld [vmem:[#allocation13 + $0x58] sm:$0xff]
    %v3095 = vld [vmem:[#allocation13 + $0x60] sm:$0xff]
    %v3096 = vld [vmem:[#allocation13 + $0x68] sm:$0xff]
    %v3097 = vld [vmem:[#allocation13 + $0x70] sm:$0xff]
    %v3098 = vld [vmem:[#allocation13 + $0x78] sm:$0xff]
    %v3099 = vld [vmem:[%s14] sm:$0x1]
    %v3101 = vlaneseq
    %v3102 = vshrl.u32 %v3101, 7
    %v3103 = vsub.s32 0, %v3102
    %v3104 = vrot.slane %v3099, %v3103
    %3106 = vmatprep.subr.mxu0 0.0
    %3107 = vmatpush1.msra.mxu0 %v3083
    %3108 = vmatprep.subr.mxu0 0.0
    %3109 = vmatpush1.msra.mxu0 %v3084
    %3110 = vmatprep.subr.mxu0 0.0
    %3111 = vmatpush1.msra.mxu0 %v3085
    %3112 = vmatprep.subr.mxu0 0.0
    %3113 = vmatpush1.msra.mxu0 %v3086
    %3114 = vmatprep.subr.mxu0 0.0
    %3115 = vmatpush1.msra.mxu0 %v3087
    %3116 = vmatprep.subr.mxu0 0.0
    %3117 = vmatpush1.msra.mxu0 %v3088
    %3118 = vmatprep.subr.mxu0 0.0
    %3119 = vmatpush1.msra.mxu0 %v3089
    %3120 = vmatprep.subr.mxu0 0.0
    %3121 = vmatpush1.msra.mxu0 %v3090
    %3122 = vmatprep.subr.mxu0 0.0
    %3123 = vmatpush1.msra.mxu0 %v3091
    %3124 = vmatprep.subr.mxu0 0.0
    %3125 = vmatpush1.msra.mxu0 %v3092
    %3126 = vmatprep.subr.mxu0 0.0
    %3127 = vmatpush1.msra.mxu0 %v3093
    %3128 = vmatprep.subr.mxu0 0.0
    %3129 = vmatpush1.msra.mxu0 %v3094
    %3130 = vmatprep.subr.mxu0 0.0
    %3131 = vmatpush1.msra.mxu0 %v3095
    %3132 = vmatprep.subr.mxu0 0.0
    %3133 = vmatpush1.msra.mxu0 %v3096
    %3134 = vmatprep.subr.mxu0 0.0
    %3135 = vmatpush1.msra.mxu0 %v3097
    %3136 = vmatprep.subr.mxu0 0.0
    %3137 = vmatpush1.msra.mxu0 %v3098
    %3138 = vmatprep.subr.mxu0 0.0
    %3139 = vmatpush1.msra.mxu0 0.0
    %3140 = vmatprep.subr.mxu0 0.0
    %3141 = vmatpush1.msra.mxu0 0.0
    %3142 = vmatprep.subr.mxu0 0.0
    %3143 = vmatpush1.msra.mxu0 0.0
    %3144 = vmatprep.subr.mxu0 0.0
    %3145 = vmatpush1.msra.mxu0 0.0
    %3146 = vmatprep.subr.mxu0 0.0
    %3147 = vmatpush1.msra.mxu0 0.0
    %3148 = vmatprep.subr.mxu0 0.0
    %3149 = vmatpush1.msra.mxu0 0.0
    %3150 = vmatprep.subr.mxu0 0.0
    %3151 = vmatpush1.msra.mxu0 0.0
    %3152 = vmatprep.subr.mxu0 0.0
    %3153 = vmatpush1.msra.mxu0 0.0
    %3154 = vmatprep.subr.mxu0 0.0
    %3155 = vmatpush1.msra.mxu0 0.0
    %3156 = vmatprep.subr.mxu0 0.0
    %3157 = vmatpush1.msra.mxu0 0.0
    %3158 = vmatprep.subr.mxu0 0.0
    %3159 = vmatpush1.msra.mxu0 0.0
    %3160 = vmatprep.subr.mxu0 0.0
    %3161 = vmatpush1.msra.mxu0 0.0
    %3162 = vmatprep.subr.mxu0 0.0
    %3163 = vmatpush1.msra.mxu0 0.0
    %3164 = vmatprep.subr.mxu0 0.0
    %3165 = vmatpush1.msra.mxu0 0.0
    %3166 = vmatprep.subr.mxu0 0.0
    %3167 = vmatpush1.msra.mxu0 0.0
    %3168 = vmatprep.subr.mxu0 0.0
    %3169 = vmatpush1.msra.mxu0 0.0
    %3170 = vmatprep.mubr.f32.mxu0 0.0
    %3171 = vmatmul.mubr.f32.gmra.mrb[0].mxu0 %v3082
    %v3172 = vpop.f32.mrb[0].mxu0
    %v3173 = vadd.f32 %v3104, %v3172
    %v3174 = vpop.f32.mrb[0].mxu0
    %3175 = vdwg.mxu0
    %v3176 = vtanh.pop %v3173
    %v3177 = vld [vmem:[%s15] sm:$0xff]
    %v3178 = vld [vmem:[%s15 + $0x8] sm:$0xff]
    %v3179 = vld [vmem:[%s15 + $0x10] sm:$0xff]
    %v3180 = vld [vmem:[%s15 + $0x18] sm:$0xff]
    %v3181 = vld [vmem:[%s15 + $0x20] sm:$0xff]
    %v3182 = vld [vmem:[%s15 + $0x28] sm:$0xff]
    %v3183 = vld [vmem:[%s15 + $0x30] sm:$0xff]
    %v3184 = vld [vmem:[%s15 + $0x38] sm:$0xff]
    %v3185 = vld [vmem:[%s15 + $0x40] sm:$0xff]
    %v3186 = vld [vmem:[%s15 + $0x48] sm:$0xff]
    %v3187 = vld [vmem:[%s15 + $0x50] sm:$0xff]
    %v3188 = vld [vmem:[%s15 + $0x58] sm:$0xff]
    %v3189 = vld [vmem:[%s15 + $0x60] sm:$0xff]
    %v3190 = vld [vmem:[%s15 + $0x68] sm:$0xff]
    %v3191 = vld [vmem:[%s15 + $0x70] sm:$0xff]
    %v3192 = vld [vmem:[%s15 + $0x78] sm:$0xff]
    %v3193 = vld [vmem:[%s16] sm:$0x1]
    %v3195 = vlaneseq
    %v3196 = vshrl.u32 %v3195, 7
    %v3197 = vsub.s32 0, %v3196
    %v3198 = vrot.slane %v3193, %v3197
    %3200 = vmatprep.subr.mxu0 0.0
    %3201 = vmatpush1.msra.mxu0 %v3177
    %3202 = vmatprep.subr.mxu0 0.0
    %3203 = vmatpush1.msra.mxu0 %v3178
    %3204 = vmatprep.subr.mxu0 0.0
    %3205 = vmatpush1.msra.mxu0 %v3179
    %3206 = vmatprep.subr.mxu0 0.0
    %3207 = vmatpush1.msra.mxu0 %v3180
    %3208 = vmatprep.subr.mxu0 0.0
    %3209 = vmatpush1.msra.mxu0 %v3181
    %3210 = vmatprep.subr.mxu0 0.0
    %3211 = vmatpush1.msra.mxu0 %v3182
    %3212 = vmatprep.subr.mxu0 0.0
    %3213 = vmatpush1.msra.mxu0 %v3183
    %3214 = vmatprep.subr.mxu0 0.0
    %3215 = vmatpush1.msra.mxu0 %v3184
    %3216 = vmatprep.subr.mxu0 0.0
    %3217 = vmatpush1.msra.mxu0 %v3185
    %3218 = vmatprep.subr.mxu0 0.0
    %3219 = vmatpush1.msra.mxu0 %v3186
    %3220 = vmatprep.subr.mxu0 0.0
    %3221 = vmatpush1.msra.mxu0 %v3187
    %3222 = vmatprep.subr.mxu0 0.0
    %3223 = vmatpush1.msra.mxu0 %v3188
    %3224 = vmatprep.subr.mxu0 0.0
    %3225 = vmatpush1.msra.mxu0 %v3189
    %3226 = vmatprep.subr.mxu0 0.0
    %3227 = vmatpush1.msra.mxu0 %v3190
    %3228 = vmatprep.subr.mxu0 0.0
    %3229 = vmatpush1.msra.mxu0 %v3191
    %3230 = vmatprep.subr.mxu0 0.0
    %3231 = vmatpush1.msra.mxu0 %v3192
    %3232 = vmatprep.subr.mxu0 0.0
    %3233 = vmatpush1.msra.mxu0 0.0
    %3234 = vmatprep.subr.mxu0 0.0
    %3235 = vmatpush1.msra.mxu0 0.0
    %3236 = vmatprep.subr.mxu0 0.0
    %3237 = vmatpush1.msra.mxu0 0.0
    %3238 = vmatprep.subr.mxu0 0.0
    %3239 = vmatpush1.msra.mxu0 0.0
    %3240 = vmatprep.subr.mxu0 0.0
    %3241 = vmatpush1.msra.mxu0 0.0
    %3242 = vmatprep.subr.mxu0 0.0
    %3243 = vmatpush1.msra.mxu0 0.0
    %3244 = vmatprep.subr.mxu0 0.0
    %3245 = vmatpush1.msra.mxu0 0.0
    %3246 = vmatprep.subr.mxu0 0.0
    %3247 = vmatpush1.msra.mxu0 0.0
    %3248 = vmatprep.subr.mxu0 0.0
    %3249 = vmatpush1.msra.mxu0 0.0
    %3250 = vmatprep.subr.mxu0 0.0
    %3251 = vmatpush1.msra.mxu0 0.0
    %3252 = vmatprep.subr.mxu0 0.0
    %3253 = vmatpush1.msra.mxu0 0.0
    %3254 = vmatprep.subr.mxu0 0.0
    %3255 = vmatpush1.msra.mxu0 0.0
    %3256 = vmatprep.subr.mxu0 0.0
    %3257 = vmatpush1.msra.mxu0 0.0
    %3258 = vmatprep.subr.mxu0 0.0
    %3259 = vmatpush1.msra.mxu0 0.0
    %3260 = vmatprep.subr.mxu0 0.0
    %3261 = vmatpush1.msra.mxu0 0.0
    %3262 = vmatprep.subr.mxu0 0.0
    %3263 = vmatpush1.msra.mxu0 0.0
    %3264 = vmatprep.mubr.f32.mxu0 0.0
    %3265 = vmatmul.mubr.f32.gmra.mrb[0].mxu0 %v3176
    %v3266 = vpop.f32.mrb[0].mxu0
    %v3267 = vadd.f32 %v3198, %v3266
    %v3268 = vpop.f32.mrb[0].mxu0
    %3269 = vdwg.mxu0
    %v3270 = vtanh.pop %v3267
    %v3271 = vtanh.pop %v2990
    %v3272 = vtanh.pop %v3270
    %3274 = vrot.lane.b32.xlu0 %v3271, 64
    %v3275 = vpop.permute.xlu0 %3274
    %v3278 = vrot.slane %v3272, 2
    %3279 = vrot.lane.b32.xlu0 %v3278, 64
    %v3280 = vpop.permute.xlu0 %3279
    %v3282 = vsel %vm594, %v3275, %v3280
    %v3283 = vld [vmem:[%s17] sm:$0xff]
    %v3284 = vld [vmem:[%s17 + $0x8] sm:$0xff]
    %v3285 = vld [vmem:[%s17 + $0x10] sm:$0xff]
    %v3286 = vld [vmem:[%s17 + $0x18] sm:$0xff]
    %v3287 = vld [vmem:[%s17 + $0x20] sm:$0xff]
    %v3288 = vld [vmem:[%s17 + $0x28] sm:$0xff]
    %v3289 = vld [vmem:[%s17 + $0x30] sm:$0xff]
    %v3290 = vld [vmem:[%s17 + $0x38] sm:$0xff]
    %v3291 = vld [vmem:[%s17 + $0x40] sm:$0xff]
    %v3292 = vld [vmem:[%s17 + $0x48] sm:$0xff]
    %v3293 = vld [vmem:[%s17 + $0x50] sm:$0xff]
    %v3294 = vld [vmem:[%s17 + $0x58] sm:$0xff]
    %v3295 = vld [vmem:[%s17 + $0x60] sm:$0xff]
    %v3296 = vld [vmem:[%s17 + $0x68] sm:$0xff]
    %v3297 = vld [vmem:[%s17 + $0x70] sm:$0xff]
    %v3298 = vld [vmem:[%s17 + $0x78] sm:$0xff]
    %v3299 = vld [vmem:[%s17 + $0x80] sm:$0xff]
    %v3300 = vld [vmem:[%s17 + $0x88] sm:$0xff]
    %v3301 = vld [vmem:[%s17 + $0x90] sm:$0xff]
    %v3302 = vld [vmem:[%s17 + $0x98] sm:$0xff]
    %v3303 = vld [vmem:[%s17 + $0xa0] sm:$0xff]
    %v3304 = vld [vmem:[%s17 + $0xa8] sm:$0xff]
    %v3305 = vld [vmem:[%s17 + $0xb0] sm:$0xff]
    %v3306 = vld [vmem:[%s17 + $0xb8] sm:$0xff]
    %v3307 = vld [vmem:[%s17 + $0xc0] sm:$0xff]
    %v3308 = vld [vmem:[%s17 + $0xc8] sm:$0xff]
    %v3309 = vld [vmem:[%s17 + $0xd0] sm:$0xff]
    %v3310 = vld [vmem:[%s17 + $0xd8] sm:$0xff]
    %v3311 = vld [vmem:[%s17 + $0xe0] sm:$0xff]
    %v3312 = vld [vmem:[%s17 + $0xe8] sm:$0xff]
    %v3313 = vld [vmem:[%s17 + $0xf0] sm:$0xff]
    %v3314 = vld [vmem:[%s17 + $0xf8] sm:$0xff]
    %v3315 = vld [vmem:[%s19] sm:$0x3]
    %v3317 = vlaneseq
    %v3318 = vshrl.u32 %v3317, 7
    %v3319 = vsub.s32 0, %v3318
    %v3320 = vrot.slane %v3315, %v3319
    %v3321 = vlaneseq
    %v3322 = vshrl.u32 %v3321, 7
    %v3323 = vsub.s32 1, %v3322
    %v3324 = vrot.slane %v3315, %v3323
    %v3328 = vrot.slane %v3282, 6
    %3330 = vmatprep.subr.mxu0 %v3284
    %3331 = vmatpush1.msra.mxu0 %v3283
    %3332 = vmatprep.subr.mxu0 %v3286
    %3333 = vmatpush1.msra.mxu0 %v3285
    %3334 = vmatprep.subr.mxu0 %v3288
    %3335 = vmatpush1.msra.mxu0 %v3287
    %3336 = vmatprep.subr.mxu0 %v3290
    %3337 = vmatpush1.msra.mxu0 %v3289
    %3338 = vmatprep.subr.mxu0 %v3292
    %3339 = vmatpush1.msra.mxu0 %v3291
    %3340 = vmatprep.subr.mxu0 %v3294
    %3341 = vmatpush1.msra.mxu0 %v3293
    %3342 = vmatprep.subr.mxu0 %v3296
    %3343 = vmatpush1.msra.mxu0 %v3295
    %3344 = vmatprep.subr.mxu0 %v3298
    %3345 = vmatpush1.msra.mxu0 %v3297
    %3346 = vmatprep.subr.mxu0 %v3300
    %3347 = vmatpush1.msra.mxu0 %v3299
    %3348 = vmatprep.subr.mxu0 %v3302
    %3349 = vmatpush1.msra.mxu0 %v3301
    %3350 = vmatprep.subr.mxu0 %v3304
    %3351 = vmatpush1.msra.mxu0 %v3303
    %3352 = vmatprep.subr.mxu0 %v3306
    %3353 = vmatpush1.msra.mxu0 %v3305
    %3354 = vmatprep.subr.mxu0 %v3308
    %3355 = vmatpush1.msra.mxu0 %v3307
    %3356 = vmatprep.subr.mxu0 %v3310
    %3357 = vmatpush1.msra.mxu0 %v3309
    %3358 = vmatprep.subr.mxu0 %v3312
    %3359 = vmatpush1.msra.mxu0 %v3311
    %3360 = vmatprep.subr.mxu0 %v3314
    %3361 = vmatpush1.msra.mxu0 %v3313
    %3362 = vmatprep.subr.mxu0 0.0
    %3363 = vmatpush1.msra.mxu0 0.0
    %3364 = vmatprep.subr.mxu0 0.0
    %3365 = vmatpush1.msra.mxu0 0.0
    %3366 = vmatprep.subr.mxu0 0.0
    %3367 = vmatpush1.msra.mxu0 0.0
    %3368 = vmatprep.subr.mxu0 0.0
    %3369 = vmatpush1.msra.mxu0 0.0
    %3370 = vmatprep.subr.mxu0 0.0
    %3371 = vmatpush1.msra.mxu0 0.0
    %3372 = vmatprep.subr.mxu0 0.0
    %3373 = vmatpush1.msra.mxu0 0.0
    %3374 = vmatprep.subr.mxu0 0.0
    %3375 = vmatpush1.msra.mxu0 0.0
    %3376 = vmatprep.subr.mxu0 0.0
    %3377 = vmatpush1.msra.mxu0 0.0
    %3378 = vmatprep.subr.mxu0 0.0
    %3379 = vmatpush1.msra.mxu0 0.0
    %3380 = vmatprep.subr.mxu0 0.0
    %3381 = vmatpush1.msra.mxu0 0.0
    %3382 = vmatprep.subr.mxu0 0.0
    %3383 = vmatpush1.msra.mxu0 0.0
    %3384 = vmatprep.subr.mxu0 0.0
    %3385 = vmatpush1.msra.mxu0 0.0
    %3386 = vmatprep.subr.mxu0 0.0
    %3387 = vmatpush1.msra.mxu0 0.0
    %3388 = vmatprep.subr.mxu0 0.0
    %3389 = vmatpush1.msra.mxu0 0.0
    %3390 = vmatprep.subr.mxu0 0.0
    %3391 = vmatpush1.msra.mxu0 0.0
    %3392 = vmatprep.subr.mxu0 0.0
    %3393 = vmatpush1.msra.mxu0 0.0
    %3394 = vmatprep.mubr.f32.mxu0 0.0
    %3395 = vmatmul.mubr.f32.gmra.mrb[0].mxu0 %v3328
    %v3396 = vpop.f32.mrb[0].mxu0
    %v3397 = vadd.f32 %v3320, %v3396
    %v3398 = vpop.f32.mrb[0].mxu0
    %v3399 = vadd.f32 %v3324, %v3398
    %3400 = vdwg.mxu0
    %v3401 = vld [vmem:[%s2] sm:$0x3]
    %v3402 = vtanh.pop %v3401
    %v3403 = vld [vmem:[%s18] sm:$0x3f]
    %v3404 = vld [vmem:[%s18 + $0x8] sm:$0x3f]
    %3406 = vset.pattern.permute.xlu0 0
    %3407 = vperm.xlu0 %3406, %v3402
    %v3408 = vpop.permute.xlu0 %3407
    %v3410 = vlaneseq
    %v3411 = vshrl.u32 %v3410, 7
    %v3412 = vsub.s32 0, %v3411
    %v3413 = vrot.slane %v3403, %v3412
    %v3414 = vlaneseq
    %v3415 = vshrl.u32 %v3414, 7
    %v3416 = vsub.s32 0, %v3415
    %v3417 = vrot.slane %v3404, %v3416
    %v3418 = vmul.f32 %v3408, %v3413
    %v3419 = vmul.f32 %v3408, %v3417
    %v3420 = vadd.f32 %v3397, %v3418
    %v3421 = vadd.f32 %v3399, %v3419
    %3422 = vset.pattern.permute.xlu0 1
    %3423 = vperm.xlu0 %3422, %v3402
    %v3424 = vpop.permute.xlu0 %3423
    %v3426 = vlaneseq
    %v3427 = vshrl.u32 %v3426, 7
    %v3428 = vsub.s32 1, %v3427
    %v3429 = vrot.slane %v3403, %v3428
    %v3430 = vlaneseq
    %v3431 = vshrl.u32 %v3430, 7
    %v3432 = vsub.s32 1, %v3431
    %v3433 = vrot.slane %v3404, %v3432
    %v3434 = vmul.f32 %v3424, %v3429
    %v3435 = vmul.f32 %v3424, %v3433
    %v3436 = vadd.f32 %v3420, %v3434
    %v3437 = vadd.f32 %v3421, %v3435
    %3438 = vset.pattern.permute.xlu0 2
    %3439 = vperm.xlu0 %3438, %v3402
    %v3440 = vpop.permute.xlu0 %3439
    %v3442 = vlaneseq
    %v3443 = vshrl.u32 %v3442, 7
    %v3444 = vsub.s32 2, %v3443
    %v3445 = vrot.slane %v3403, %v3444
    %v3446 = vlaneseq
    %v3447 = vshrl.u32 %v3446, 7
    %v3448 = vsub.s32 2, %v3447
    %v3449 = vrot.slane %v3404, %v3448
    %v3450 = vmul.f32 %v3440, %v3445
    %v3451 = vmul.f32 %v3440, %v3449
    %v3452 = vadd.f32 %v3436, %v3450
    %v3453 = vadd.f32 %v3437, %v3451
    %3454 = vset.pattern.permute.xlu0 3
    %3455 = vperm.xlu0 %3454, %v3402
    %v3456 = vpop.permute.xlu0 %3455
    %v3458 = vlaneseq
    %v3459 = vshrl.u32 %v3458, 7
    %v3460 = vsub.s32 3, %v3459
    %v3461 = vrot.slane %v3403, %v3460
    %v3462 = vlaneseq
    %v3463 = vshrl.u32 %v3462, 7
    %v3464 = vsub.s32 3, %v3463
    %v3465 = vrot.slane %v3404, %v3464
    %v3466 = vmul.f32 %v3456, %v3461
    %v3467 = vmul.f32 %v3456, %v3465
    %v3468 = vadd.f32 %v3452, %v3466
    %v3469 = vadd.f32 %v3453, %v3467
    %3470 = vset.pattern.permute.xlu0 4
    %3471 = vperm.xlu0 %3470, %v3402
    %v3472 = vpop.permute.xlu0 %3471
    %v3474 = vlaneseq
    %v3475 = vshrl.u32 %v3474, 7
    %v3476 = vsub.s32 4, %v3475
    %v3477 = vrot.slane %v3403, %v3476
    %v3478 = vlaneseq
    %v3479 = vshrl.u32 %v3478, 7
    %v3480 = vsub.s32 4, %v3479
    %v3481 = vrot.slane %v3404, %v3480
    %v3482 = vmul.f32 %v3472, %v3477
    %v3483 = vmul.f32 %v3472, %v3481
    %v3484 = vadd.f32 %v3468, %v3482
    %v3485 = vadd.f32 %v3469, %v3483
    %3486 = vset.pattern.permute.xlu0 5
    %3487 = vperm.xlu0 %3486, %v3402
    %v3488 = vpop.permute.xlu0 %3487
    %v3490 = vlaneseq
    %v3491 = vshrl.u32 %v3490, 7
    %v3492 = vsub.s32 5, %v3491
    %v3493 = vrot.slane %v3403, %v3492
    %v3494 = vlaneseq
    %v3495 = vshrl.u32 %v3494, 7
    %v3496 = vsub.s32 5, %v3495
    %v3497 = vrot.slane %v3404, %v3496
    %v3498 = vmul.f32 %v3488, %v3493
    %v3499 = vmul.f32 %v3488, %v3497
    %v3500 = vadd.f32 %v3484, %v3498
    %v3501 = vadd.f32 %v3485, %v3499
    %v3502 = vtanh.pop %v3500
    %v3503 = vtanh.pop %v3501
    %v3504 = vld [vmem:[%s20] sm:$0xff]
    %v3505 = vld [vmem:[%s20 + $0x8] sm:$0xff]
    %v3506 = vld [vmem:[%s20 + $0x10] sm:$0xff]
    %v3507 = vld [vmem:[%s20 + $0x18] sm:$0xff]
    %v3508 = vld [vmem:[%s20 + $0x20] sm:$0xff]
    %v3509 = vld [vmem:[%s20 + $0x28] sm:$0xff]
    %v3510 = vld [vmem:[%s20 + $0x30] sm:$0xff]
    %v3511 = vld [vmem:[%s20 + $0x38] sm:$0xff]
    %v3512 = vld [vmem:[%s20 + $0x40] sm:$0xff]
    %v3513 = vld [vmem:[%s20 + $0x48] sm:$0xff]
    %v3514 = vld [vmem:[%s20 + $0x50] sm:$0xff]
    %v3515 = vld [vmem:[%s20 + $0x58] sm:$0xff]
    %v3516 = vld [vmem:[%s20 + $0x60] sm:$0xff]
    %v3517 = vld [vmem:[%s20 + $0x68] sm:$0xff]
    %v3518 = vld [vmem:[%s20 + $0x70] sm:$0xff]
    %v3519 = vld [vmem:[%s20 + $0x78] sm:$0xff]
    %v3520 = vld [vmem:[%s20 + $0x80] sm:$0xff]
    %v3521 = vld [vmem:[%s20 + $0x88] sm:$0xff]
    %v3522 = vld [vmem:[%s20 + $0x90] sm:$0xff]
    %v3523 = vld [vmem:[%s20 + $0x98] sm:$0xff]
    %v3524 = vld [vmem:[%s20 + $0xa0] sm:$0xff]
    %v3525 = vld [vmem:[%s20 + $0xa8] sm:$0xff]
    %v3526 = vld [vmem:[%s20 + $0xb0] sm:$0xff]
    %v3527 = vld [vmem:[%s20 + $0xb8] sm:$0xff]
    %v3528 = vld [vmem:[%s20 + $0xc0] sm:$0xff]
    %v3529 = vld [vmem:[%s20 + $0xc8] sm:$0xff]
    %v3530 = vld [vmem:[%s20 + $0xd0] sm:$0xff]
    %v3531 = vld [vmem:[%s20 + $0xd8] sm:$0xff]
    %v3532 = vld [vmem:[%s20 + $0xe0] sm:$0xff]
    %v3533 = vld [vmem:[%s20 + $0xe8] sm:$0xff]
    %v3534 = vld [vmem:[%s20 + $0xf0] sm:$0xff]
    %v3535 = vld [vmem:[%s20 + $0xf8] sm:$0xff]
    %v3536 = vld [vmem:[%s21] sm:$0x1]
    %v3538 = vlaneseq
    %v3539 = vshrl.u32 %v3538, 7
    %v3540 = vsub.s32 0, %v3539
    %v3541 = vrot.slane %v3536, %v3540
    %3543 = vmatprep.subr.mxu0 0.0
    %3544 = vmatpush1.msra.mxu0 %v3504
    %3545 = vmatprep.subr.mxu0 0.0
    %3546 = vmatpush1.msra.mxu0 %v3505
    %3547 = vmatprep.subr.mxu0 0.0
    %3548 = vmatpush1.msra.mxu0 %v3506
    %3549 = vmatprep.subr.mxu0 0.0
    %3550 = vmatpush1.msra.mxu0 %v3507
    %3551 = vmatprep.subr.mxu0 0.0
    %3552 = vmatpush1.msra.mxu0 %v3508
    %3553 = vmatprep.subr.mxu0 0.0
    %3554 = vmatpush1.msra.mxu0 %v3509
    %3555 = vmatprep.subr.mxu0 0.0
    %3556 = vmatpush1.msra.mxu0 %v3510
    %3557 = vmatprep.subr.mxu0 0.0
    %3558 = vmatpush1.msra.mxu0 %v3511
    %3559 = vmatprep.subr.mxu0 0.0
    %3560 = vmatpush1.msra.mxu0 %v3512
    %3561 = vmatprep.subr.mxu0 0.0
    %3562 = vmatpush1.msra.mxu0 %v3513
    %3563 = vmatprep.subr.mxu0 0.0
    %3564 = vmatpush1.msra.mxu0 %v3514
    %3565 = vmatprep.subr.mxu0 0.0
    %3566 = vmatpush1.msra.mxu0 %v3515
    %3567 = vmatprep.subr.mxu0 0.0
    %3568 = vmatpush1.msra.mxu0 %v3516
    %3569 = vmatprep.subr.mxu0 0.0
    %3570 = vmatpush1.msra.mxu0 %v3517
    %3571 = vmatprep.subr.mxu0 0.0
    %3572 = vmatpush1.msra.mxu0 %v3518
    %3573 = vmatprep.subr.mxu0 0.0
    %3574 = vmatpush1.msra.mxu0 %v3519
    %3575 = vmatprep.subr.mxu0 0.0
    %3576 = vmatpush1.msra.mxu0 %v3520
    %3577 = vmatprep.subr.mxu0 0.0
    %3578 = vmatpush1.msra.mxu0 %v3521
    %3579 = vmatprep.subr.mxu0 0.0
    %3580 = vmatpush1.msra.mxu0 %v3522
    %3581 = vmatprep.subr.mxu0 0.0
    %3582 = vmatpush1.msra.mxu0 %v3523
    %3583 = vmatprep.subr.mxu0 0.0
    %3584 = vmatpush1.msra.mxu0 %v3524
    %3585 = vmatprep.subr.mxu0 0.0
    %3586 = vmatpush1.msra.mxu0 %v3525
    %3587 = vmatprep.subr.mxu0 0.0
    %3588 = vmatpush1.msra.mxu0 %v3526
    %3589 = vmatprep.subr.mxu0 0.0
    %3590 = vmatpush1.msra.mxu0 %v3527
    %3591 = vmatprep.subr.mxu0 0.0
    %3592 = vmatpush1.msra.mxu0 %v3528
    %3593 = vmatprep.subr.mxu0 0.0
    %3594 = vmatpush1.msra.mxu0 %v3529
    %3595 = vmatprep.subr.mxu0 0.0
    %3596 = vmatpush1.msra.mxu0 %v3530
    %3597 = vmatprep.subr.mxu0 0.0
    %3598 = vmatpush1.msra.mxu0 %v3531
    %3599 = vmatprep.subr.mxu0 0.0
    %3600 = vmatpush1.msra.mxu0 %v3532
    %3601 = vmatprep.subr.mxu0 0.0
    %3602 = vmatpush1.msra.mxu0 %v3533
    %3603 = vmatprep.subr.mxu0 0.0
    %3604 = vmatpush1.msra.mxu0 %v3534
    %3605 = vmatprep.subr.mxu0 0.0
    %3606 = vmatpush1.msra.mxu0 %v3535
    %3607 = vmatprep.mubr.f32.mxu0 %v3503
    %3608 = vmatmul.mubr.f32.gmra.mrb[0].mxu0 %v3502
    %v3609 = vpop.f32.mrb[0].mxu0
    %v3610 = vadd.f32 %v3541, %v3609
    %v3611 = vpop.f32.mrb[0].mxu0
    %3612 = vdwg.mxu0
    %v3613 = vtanh.pop %v3610
    %v3614 = vld [vmem:[%s22] sm:$0x1]
    %v3616 = vlaneseq
    %v3617 = vshrl.u32 %v3616, 7
    %v3618 = vsub.s32 0, %v3617
    %v3619 = vrot.slane %v3614, %v3618
    %v3621 = vmul.f32 %v3613, %v3619
    %vm3622 = vcmask 1041408
    %v3623 = vsel %vm3622, %v3621, 0.0
    %3624 = vadd.xlane.f32.xlu0 %v3623
    %v3625 = vpop.xlane.xlu0 %3624
    %v3626 = vld [vmem:[#allocation2] sm:$0x1]
    %v3628 = vlaneseq
    %v3629 = vshrl.u32 %v3628, 7
    %v3630 = vsub.s32 0, %v3629
    %v3631 = vrot.slane %v3626, %v3630
    %v3633 = vadd.f32 %v3625, %v3631
    %vm3634 = vcmask 1024
    %3635 = vst.msk [vmem:[%s24] sm:$0x3] %vm3634, %v3633
    // Predicated region
    $region126: #{tpu_custom_call.1} parent=1 // pred_check
      _
    $region127: #{tpu_custom_call.1} parent=1 // pred_check_branch
      %3637 = sbr.rel (0) target = $region129
    $region128: #{tpu_custom_call.1} parent=1 // pred_region
      _
    $region129: #{tpu_custom_call.1} parent=1 // pred_fallthru
      _
    // Predicated region
    $region130: #{tpu_custom_call.1} parent=1 // pred_check
      _
    $region131: #{tpu_custom_call.1} parent=1 // pred_check_branch
      %3639 = sbr.rel (0) target = $region133
    $region132: #{tpu_custom_call.1} parent=1 // pred_region
      _
    $region133: #{tpu_custom_call.1} parent=1 // pred_fallthru
      _
    %3640 = vsyncpa [#allocation4], 1
    %3641 = vsyncpa [#allocation6], 1
    %3642 = vsyncpa [#allocation9], 1
    %3643 = vsyncpa [#allocation12], 1

</llo_original>
